<compile_context>
chip_gen: v6e
topology: v6e:2x2x1
jax: 0.10.0
libtpu: 0.0.40
codegen_flags: <defaults>
</compile_context>

<pallas_src>
import jax
import jax.numpy as jnp
from jax import lax
from jax.experimental import pallas as pl
from jax.experimental.pallas import tpu as pltpu

EPS = 1e-5                      # nn.BatchNorm2d default eps
SLOPE = 0.2                     # LeakyReLU negative slope
TM_MAX = 512                    # M tile (rows of the im2col matrix) per step
LANE = 128                      # output channels padded to a multiple of 128


def _round_up(x, m):
    return (x + m - 1) // m * m


def _pick_tm(m_valid):
    """M tile: as big as possible (<= TM_MAX), but split into >= 2 blocks
    when there is enough work so both v7x TensorCores get a share of the
    'parallel' M axis.  Always a multiple of 8 (sublane granularity)."""
    half = _round_up((m_valid + 1) // 2, 8)
    return max(8, min(TM_MAX, half))


def _vmem_limit_bytes(tm, k, co_pad, out_itemsize):
    """Scoped-VMEM limit derived from the actual working set (+ headroom)."""
    a_bytes = 2 * tm * k * 2                   # A tile, bf16, double-buffered
    b_bytes = 2 * k * co_pad * 2               # resident B (budget 2 buffers)
    y_bytes = 2 * tm * co_pad * out_itemsize   # output tile, double-buffered
    stat_bytes = 4 * 2 * co_pad * 4            # per-block BN partials
    ws = a_bytes + b_bytes + y_bytes + stat_bytes
    # 25% + 4 MiB headroom for Mosaic internal scratch; stay under v7x 64 MiB.
    return int(min(max(ws + ws // 4 + (4 << 20), 8 << 20), 60 << 20))


# ----------------------------------------------------------------------------
# Pallas kernels
# ----------------------------------------------------------------------------
def _conv_stats_kernel(a_ref, b_ref, y_ref, sum_ref, sq_ref):
    """One (tm, Co_pad) output tile: Y = A @ B over the full VMEM-resident K,
    plus this M-block's per-channel sum / sum-of-squares (partials for the
    training-mode BatchNorm statistics)."""
    y = jnp.dot(a_ref[...], b_ref[...], preferred_element_type=jnp.float32)
    y_ref[...] = y.astype(y_ref.dtype)
    sum_ref[0] = jnp.sum(y, axis=0, keepdims=True)
    sq_ref[0] = jnp.sum(y * y, axis=0, keepdims=True)


def _conv_kernel(a_ref, b_ref, y_ref):
    """Same matmul without the BN statistics (final conv layer)."""
    y_ref[...] = jnp.dot(a_ref[...], b_ref[...],
                         preferred_element_type=jnp.float32).astype(y_ref.dtype)


# ----------------------------------------------------------------------------
# Pallas wrappers
# ----------------------------------------------------------------------------
def conv_matmul(a, b, tm, with_stats, out_dtype):
    """a: (M_pad, K) bf16 im2col patches, b: (K, Co_pad) bf16 weights.

    Grid is the M axis only; B has a constant index_map so it is DMA'd into
    VMEM once and stays resident for every M block (no per-block re-stream).
    """
    m_pad, k_total = a.shape
    co_pad = b.shape[1]
    m_blocks = m_pad // tm

    # TODO(synk): on v5e, add pipeline_mode=pl.Buffered(3) to a_spec if the A
    # stream is still DMA-exposed after B residency.
    a_spec = pl.BlockSpec((tm, k_total), lambda i: (i, 0))
    b_spec = pl.BlockSpec((k_total, co_pad), lambda i: (0, 0))   # resident B
    y_spec = pl.BlockSpec((tm, co_pad), lambda i: (i, 0))

    params = pltpu.CompilerParams(
        dimension_semantics=("parallel",),       # M shards across TCs (v7x)
        vmem_limit_bytes=_vmem_limit_bytes(
            tm, k_total, co_pad, jnp.dtype(out_dtype).itemsize))

    if with_stats:
        stat_spec = pl.BlockSpec((1, 1, co_pad), lambda i: (i, 0, 0))
        return pl.pallas_call(
            _conv_stats_kernel,
            out_shape=(
                jax.ShapeDtypeStruct((m_pad, co_pad), out_dtype),
                jax.ShapeDtypeStruct((m_blocks, 1, co_pad), jnp.float32),
                jax.ShapeDtypeStruct((m_blocks, 1, co_pad), jnp.float32),
            ),
            grid_spec=pltpu.PrefetchScalarGridSpec(
                num_scalar_prefetch=0,
                grid=(m_blocks,),
                in_specs=[a_spec, b_spec],
                out_specs=[y_spec, stat_spec, stat_spec],
            ),
            compiler_params=params,
        )(a, b)

    y = pl.pallas_call(
        _conv_kernel,
        out_shape=jax.ShapeDtypeStruct((m_pad, co_pad), out_dtype),
        grid_spec=pltpu.PrefetchScalarGridSpec(
            num_scalar_prefetch=0,
            grid=(m_blocks,),
            in_specs=[a_spec, b_spec],
            out_specs=y_spec,
        ),
        compiler_params=params,
    )(a, b)
    return y, None, None


# ----------------------------------------------------------------------------
# Glue: im2col + layer composition
# ----------------------------------------------------------------------------
def im2col(x_nhwc, ksize, stride, pad):
    # TODO(synk): stream patch extraction inside the matmul kernel (manual DMA
    # over (kh, kw) taps from the padded NHWC input) so the k^2-expanded
    # im2col matrix never hits HBM.
    n, h, w, c = x_nhwc.shape
    xp = jnp.pad(x_nhwc, ((0, 0), (pad, pad), (pad, pad), (0, 0)))
    ho = (h + 2 * pad - ksize) // stride + 1
    wo = (w + 2 * pad - ksize) // stride + 1
    cols = []
    for ki in range(ksize):
        for kj in range(ksize):
            cols.append(xp[:, ki:ki + stride * ho:stride,
                           kj:kj + stride * wo:stride, :])
    a = jnp.stack(cols, axis=3).reshape(n * ho * wo, ksize * ksize * c)
    return a, (n, ho, wo), n * ho * wo


def conv_layer(x_nhwc, w_oihw, gamma, beta, stride, in_scale=None,
               in_shift=None, last=False):
    """Conv2d(k=4, stride, pad=1, bias=False) [+ BatchNorm2d statistics].

    When (in_scale, in_shift) are given, the PREVIOUS layer's BatchNorm affine
    + LeakyReLU(0.2) is applied here, folded into this layer's im2col producer
    (elementwise; fused by XLA with the pad/slice/stack under jit) so the
    activation takes no extra HBM round-trip.

    Returns (y NHWC lane-padded, bn_scale, bn_shift); for the last layer the
    scale/shift are None and y is f32.
    """
    if in_scale is not None:
        xf = x_nhwc.astype(jnp.float32) * in_scale + in_shift
        x_nhwc = jnp.where(xf >= 0.0, xf, SLOPE * xf).astype(jnp.bfloat16)

    ci_act = x_nhwc.shape[-1]
    co = w_oihw.shape[0]
    co_pad = _round_up(co, LANE)

    a, (n, ho, wo), m_valid = im2col(x_nhwc, 4, stride, 1)
    tm = _pick_tm(m_valid)
    m_pad = _round_up(m_valid, tm)
    if m_pad != m_valid:
        a = jnp.pad(a, ((0, m_pad - m_valid), (0, 0)))   # zero rows -> zero y

    # (Co, Ci, kh, kw) -> (kh, kw, Ci, Co) -> (kh*kw*Ci_act, Co_pad); matches
    # the im2col column order; zero-padded in Ci (to activation width) and Co.
    w = jnp.transpose(w_oihw, (2, 3, 1, 0))
    w = jnp.pad(w, ((0, 0), (0, 0),
                    (0, ci_act - w.shape[2]), (0, co_pad - co)))
    b = w.reshape(-1, co_pad).astype(jnp.bfloat16)

    if last:
        y, _, _ = conv_matmul(a, b, tm, with_stats=False, out_dtype=jnp.float32)
        return y[:m_valid].reshape(n, ho, wo, co_pad), None, None

    y, psum, psq = conv_matmul(a, b, tm, with_stats=True, out_dtype=jnp.bfloat16)

    # Training-mode BatchNorm statistics (biased variance over N*Ho*Wo),
    # reduced in JAX from tiny per-M-block f32 partials (M-pad rows are 0).
    ysum = jnp.sum(psum, axis=(0, 1))
    ysq = jnp.sum(psq, axis=(0, 1))
    mean = ysum / m_valid
    var = jnp.maximum(ysq / m_valid - mean * mean, 0.0)
    # TODO(synk): for production-scale M a two-pass / Welford reduction is
    # safer than E[y^2] - mean^2 against cancellation.
    gamma_p = jnp.pad(gamma, (0, co_pad - co)).astype(jnp.float32)
    beta_p = jnp.pad(beta, (0, co_pad - co)).astype(jnp.float32)
    scale = gamma_p / jnp.sqrt(var + EPS)
    shift = beta_p - mean * scale
    # Padded lanes: gamma = beta = 0 -> scale = shift = 0, so padded channels
    # stay exactly zero into the next layer (lane-padding invariant preserved
    # even though the BN affine is now applied by the consumer).

    return y[:m_valid].reshape(n, ho, wo, co_pad), scale, shift


def discriminator1_forward(x_nchw, params):
    (w1, g1, b1), (w2, g2, b2), (w3, g3, b3), (w4,) = params
    x = jnp.transpose(x_nchw, (0, 2, 3, 1))              # NCHW -> NHWC
    nc = x.shape[-1]
    nc_pad = _round_up(nc, 8)                            # so 16*Ci % 128 == 0
    if nc_pad != nc:
        x = jnp.pad(x, ((0, 0), (0, 0), (0, 0), (0, nc_pad - nc)))
    x = x.astype(jnp.bfloat16)

    x, s, t = conv_layer(x, w1, g1, b1, stride=2)
    x, s, t = conv_layer(x, w2, g2, b2, stride=2, in_scale=s, in_shift=t)
    x, s, t = conv_layer(x, w3, g3, b3, stride=2, in_scale=s, in_shift=t)
    y, _, _ = conv_layer(x, w4, None, None, stride=1,
                         in_scale=s, in_shift=t, last=True)
    y = y[..., :w4.shape[0]]                             # drop Co lane padding
    return jnp.transpose(y, (0, 3, 1, 2))                # NHWC -> NCHW


# ----------------------------------------------------------------------------
# Pure-JAX f32 reference (mirrors the PyTorch forward in training mode)
# ----------------------------------------------------------------------------
def reference_forward(x_nchw, params):
    def conv(x, w, s):
        return lax.conv_general_dilated(
            x, w, window_strides=(s, s), padding=((1, 1), (1, 1)),
            dimension_numbers=("NCHW", "OIHW", "NCHW"))

    (w1, g1, b1), (w2, g2, b2), (w3, g3, b3), (w4,) = params
    y = x_nchw
    for w, g, b, s in ((w1, g1, b1, 2), (w2, g2, b2, 2), (w3, g3, b3, 2)):
        y = conv(y, w, s)
        mean = y.mean(axis=(0, 2, 3))
        var = y.var(axis=(0, 2, 3))
        y = (y - mean[None, :, None, None]) / jnp.sqrt(var + EPS)[None, :, None, None]
        y = y * g[None, :, None, None] + b[None, :, None, None]
        y = jnp.where(y >= 0.0, y, SLOPE * y)
    return conv(y, w4, 1)


# ----------------------------------------------------------------------------
# Parameter init (deterministic, synthetic)
# ----------------------------------------------------------------------------
def init_params(key, nc, ndf):
    ks = jax.random.split(key, 10)

    def w(k, co, ci):
        return 0.02 * jax.random.normal(k, (co, ci, 4, 4), jnp.float32)

    def gamma(k, c):
        return 1.0 + 0.1 * jax.random.normal(k, (c,), jnp.float32)

    def beta(k, c):
        return 0.1 * jax.random.normal(k, (c,), jnp.float32)

    return (
        (w(ks[0], ndf, nc), gamma(ks[1], ndf), beta(ks[2], ndf)),
        (w(ks[3], ndf * 2, ndf), gamma(ks[4], ndf * 2), beta(ks[5], ndf * 2)),
        (w(ks[6], ndf * 4, ndf * 2), gamma(ks[7], ndf * 4), beta(ks[8], ndf * 4)),
        (w(ks[9], 1, ndf * 4),),
    )


# ----------------------------------------------------------------------------
if __name__ == "__main__":
    key = jax.random.PRNGKey(0)
    kx, kp = jax.random.split(key)

    # Small shapes consistent with the module (original nc=ndf=128; scaled down).
    NC, NDF = 16, 16
    x = jax.random.normal(kx, (2, NC, 16, 16), jnp.float32)   # NCHW
    params = init_params(kp, NC, NDF)

    fwd = jax.jit(discriminator1_forward)
    out = jax.block_until_ready(fwd(x, params))
    assert out.shape == (2, 1, 1, 1), out.shape

    ref = jax.block_until_ready(jax.jit(reference_forward)(x, params))
    err = float(jnp.max(jnp.abs(out - ref)))
    # bf16 MXU inputs (f32 accumulation) vs f32 reference -> loose tolerance.
    assert err < 5e-2, f"mismatch vs reference: {err}"

    print("KERNEL_OK")
</pallas_src>

<mosaic_0001>
module attributes {stable_mosaic.version = 11 : i64} {
  func.func @_conv_stats_kernel(%arg0: i32, %arg1: memref<64x256xbf16, #tpu.memory_space<vmem>>, %arg2: memref<256x128xbf16, #tpu.memory_space<vmem>>, %arg3: memref<64x128xbf16, #tpu.memory_space<vmem>>, %arg4: memref<1x1x128xf32, #tpu.memory_space<vmem>>, %arg5: memref<1x1x128xf32, #tpu.memory_space<vmem>>) attributes {dimension_semantics = [#tpu.dimension_semantics<parallel>], iteration_bounds = array<i64: 2>, scalar_prefetch = 0 : i64, scratch_operands = 0 : i64, tpu.core_type = #tpu.core_type<tc>, window_params = [{transform_indices = @transform_0, window_bounds = array<i64: 64, 256>}, {pipeline_mode = #tpu.pipeline_mode<synchronous>, transform_indices = @transform_1, window_bounds = array<i64: 256, 128>}, {transform_indices = @transform_2, window_bounds = array<i64: 64, 128>}, {transform_indices = @transform_3, window_bounds = array<i64: 1, 1, 128>}, {transform_indices = @transform_4, window_bounds = array<i64: 1, 1, 128>}]} {
    %c0 = arith.constant 0 : index
    %c0_0 = arith.constant 0 : index
    %0 = vector.load %arg1[%c0, %c0_0] : memref<64x256xbf16, #tpu.memory_space<vmem>>, vector<64x256xbf16>
    %c0_1 = arith.constant 0 : index
    %c0_2 = arith.constant 0 : index
    %1 = vector.load %arg2[%c0_1, %c0_2] : memref<256x128xbf16, #tpu.memory_space<vmem>>, vector<256x128xbf16>
    %cst = arith.constant dense<0.000000e+00> : vector<64x128xf32>
    %2 = tpu.matmul %0, %1, %cst {dimension_numbers = #tpu.dot_dimension_numbers<[1], [0], [0], [1], [0, 0, 1, 1], [], []>} : vector<64x256xbf16>, vector<256x128xbf16>, vector<64x128xf32> -> vector<64x128xf32>
    %3 = arith.truncf %2 : vector<64x128xf32> to vector<64x128xbf16>
    %c0_3 = arith.constant 0 : index
    %c0_4 = arith.constant 0 : index
    %4 = vector.load %arg3[%c0_3, %c0_4] : memref<64x128xbf16, #tpu.memory_space<vmem>>, vector<64x128xbf16>
    tpu.vector_store %arg3[%c0_3, %c0_4], %3 {strides = array<i32>} : memref<64x128xbf16, #tpu.memory_space<vmem>>, vector<64x128xbf16>,
    %cst_5 = arith.constant dense<0.000000e+00> : vector<128xf32>
    %5 = vector.multi_reduction <add>, %2, %cst_5 [0] : vector<64x128xf32> to vector<128xf32>
    %6 = vector.shape_cast %5 : vector<128xf32> to vector<1x128xf32>
    %c0_6 = arith.constant 0 : index
    %c0_7 = arith.constant 0 : index
    %c0_8 = arith.constant 0 : index
    %7 = vector.load %arg4[%c0_6, %c0_7, %c0_8] : memref<1x1x128xf32, #tpu.memory_space<vmem>>, vector<1x1x128xf32>
    %8 = vector.shape_cast %7 : vector<1x1x128xf32> to vector<1x128xf32>
    %9 = vector.shape_cast %6 : vector<1x128xf32> to vector<1x1x128xf32>
    tpu.vector_store %arg4[%c0_6, %c0_7, %c0_8], %9 {strides = array<i32>} : memref<1x1x128xf32, #tpu.memory_space<vmem>>, vector<1x1x128xf32>,
    %10 = arith.mulf %2, %2 : vector<64x128xf32>
    %cst_9 = arith.constant dense<0.000000e+00> : vector<128xf32>
    %11 = vector.multi_reduction <add>, %10, %cst_9 [0] : vector<64x128xf32> to vector<128xf32>
    %12 = vector.shape_cast %11 : vector<128xf32> to vector<1x128xf32>
    %c0_10 = arith.constant 0 : index
    %c0_11 = arith.constant 0 : index
    %c0_12 = arith.constant 0 : index
    %13 = vector.load %arg5[%c0_10, %c0_11, %c0_12] : memref<1x1x128xf32, #tpu.memory_space<vmem>>, vector<1x1x128xf32>
    %14 = vector.shape_cast %13 : vector<1x1x128xf32> to vector<1x128xf32>
    %15 = vector.shape_cast %12 : vector<1x128xf32> to vector<1x1x128xf32>
    tpu.vector_store %arg5[%c0_10, %c0_11, %c0_12], %15 {strides = array<i32>} : memref<1x1x128xf32, #tpu.memory_space<vmem>>, vector<1x1x128xf32>,
    return
  }
  func.func @transform_0(%arg0: i32) -> (i32, i32) {
    %c0_i32 = arith.constant 0 : i32
    %c0_i32_0 = arith.constant 0 : i32
    return %arg0, %c0_i32 : i32, i32
  }
  func.func @transform_1(%arg0: i32) -> (i32, i32) {
    %c0_i32 = arith.constant 0 : i32
    %c0_i32_0 = arith.constant 0 : i32
    %c0_i32_1 = arith.constant 0 : i32
    return %c0_i32, %c0_i32_0 : i32, i32
  }
  func.func @transform_2(%arg0: i32) -> (i32, i32) {
    %c0_i32 = arith.constant 0 : i32
    %c0_i32_0 = arith.constant 0 : i32
    return %arg0, %c0_i32 : i32, i32
  }
  func.func @transform_3(%arg0: i32) -> (i32, i32, i32) {
    %c0_i32 = arith.constant 0 : i32
    %c0_i32_0 = arith.constant 0 : i32
    %c0_i32_1 = arith.constant 0 : i32
    return %arg0, %c0_i32, %c0_i32_0 : i32, i32, i32
  }
  func.func @transform_4(%arg0: i32) -> (i32, i32, i32) {
    %c0_i32 = arith.constant 0 : i32
    %c0_i32_0 = arith.constant 0 : i32
    %c0_i32_1 = arith.constant 0 : i32
    return %arg0, %c0_i32, %c0_i32_0 : i32, i32, i32
  }
}

module attributes {stable_mosaic.version = 11 : i64} {
  func.func @_conv_stats_kernel(%arg0: i32, %arg1: memref<16x2048xbf16, #tpu.memory_space<vmem>>, %arg2: memref<2048x128xbf16, #tpu.memory_space<vmem>>, %arg3: memref<16x128xbf16, #tpu.memory_space<vmem>>, %arg4: memref<1x1x128xf32, #tpu.memory_space<vmem>>, %arg5: memref<1x1x128xf32, #tpu.memory_space<vmem>>) attributes {dimension_semantics = [#tpu.dimension_semantics<parallel>], iteration_bounds = array<i64: 2>, scalar_prefetch = 0 : i64, scratch_operands = 0 : i64, tpu.core_type = #tpu.core_type<tc>, window_params = [{transform_indices = @transform_0, window_bounds = array<i64: 16, 2048>}, {pipeline_mode = #tpu.pipeline_mode<synchronous>, transform_indices = @transform_1, window_bounds = array<i64: 2048, 128>}, {transform_indices = @transform_2, window_bounds = array<i64: 16, 128>}, {transform_indices = @transform_3, window_bounds = array<i64: 1, 1, 128>}, {transform_indices = @transform_4, window_bounds = array<i64: 1, 1, 128>}]} {
    %c0 = arith.constant 0 : index
    %c0_0 = arith.constant 0 : index
    %0 = vector.load %arg1[%c0, %c0_0] : memref<16x2048xbf16, #tpu.memory_space<vmem>>, vector<16x2048xbf16>
    %c0_1 = arith.constant 0 : index
    %c0_2 = arith.constant 0 : index
    %1 = vector.load %arg2[%c0_1, %c0_2] : memref<2048x128xbf16, #tpu.memory_space<vmem>>, vector<2048x128xbf16>
    %cst = arith.constant dense<0.000000e+00> : vector<16x128xf32>
    %2 = tpu.matmul %0, %1, %cst {dimension_numbers = #tpu.dot_dimension_numbers<[1], [0], [0], [1], [0, 0, 1, 1], [], []>} : vector<16x2048xbf16>, vector<2048x128xbf16>, vector<16x128xf32> -> vector<16x128xf32>
    %3 = arith.truncf %2 : vector<16x128xf32> to vector<16x128xbf16>
    %c0_3 = arith.constant 0 : index
    %c0_4 = arith.constant 0 : index
    %4 = vector.load %arg3[%c0_3, %c0_4] : memref<16x128xbf16, #tpu.memory_space<vmem>>, vector<16x128xbf16>
    tpu.vector_store %arg3[%c0_3, %c0_4], %3 {strides = array<i32>} : memref<16x128xbf16, #tpu.memory_space<vmem>>, vector<16x128xbf16>,
    %cst_5 = arith.constant dense<0.000000e+00> : vector<128xf32>
    %5 = vector.multi_reduction <add>, %2, %cst_5 [0] : vector<16x128xf32> to vector<128xf32>
    %6 = vector.shape_cast %5 : vector<128xf32> to vector<1x128xf32>
    %c0_6 = arith.constant 0 : index
    %c0_7 = arith.constant 0 : index
    %c0_8 = arith.constant 0 : index
    %7 = vector.load %arg4[%c0_6, %c0_7, %c0_8] : memref<1x1x128xf32, #tpu.memory_space<vmem>>, vector<1x1x128xf32>
    %8 = vector.shape_cast %7 : vector<1x1x128xf32> to vector<1x128xf32>
    %9 = vector.shape_cast %6 : vector<1x128xf32> to vector<1x1x128xf32>
    tpu.vector_store %arg4[%c0_6, %c0_7, %c0_8], %9 {strides = array<i32>} : memref<1x1x128xf32, #tpu.memory_space<vmem>>, vector<1x1x128xf32>,
    %10 = arith.mulf %2, %2 : vector<16x128xf32>
    %cst_9 = arith.constant dense<0.000000e+00> : vector<128xf32>
    %11 = vector.multi_reduction <add>, %10, %cst_9 [0] : vector<16x128xf32> to vector<128xf32>
    %12 = vector.shape_cast %11 : vector<128xf32> to vector<1x128xf32>
    %c0_10 = arith.constant 0 : index
    %c0_11 = arith.constant 0 : index
    %c0_12 = arith.constant 0 : index
    %13 = vector.load %arg5[%c0_10, %c0_11, %c0_12] : memref<1x1x128xf32, #tpu.memory_space<vmem>>, vector<1x1x128xf32>
    %14 = vector.shape_cast %13 : vector<1x1x128xf32> to vector<1x128xf32>
    %15 = vector.shape_cast %12 : vector<1x128xf32> to vector<1x1x128xf32>
    tpu.vector_store %arg5[%c0_10, %c0_11, %c0_12], %15 {strides = array<i32>} : memref<1x1x128xf32, #tpu.memory_space<vmem>>, vector<1x1x128xf32>,
    return
  }
  func.func @transform_0(%arg0: i32) -> (i32, i32) {
    %c0_i32 = arith.constant 0 : i32
    %c0_i32_0 = arith.constant 0 : i32
    return %arg0, %c0_i32 : i32, i32
  }
  func.func @transform_1(%arg0: i32) -> (i32, i32) {
    %c0_i32 = arith.constant 0 : i32
    %c0_i32_0 = arith.constant 0 : i32
    %c0_i32_1 = arith.constant 0 : i32
    return %c0_i32, %c0_i32_0 : i32, i32
  }
  func.func @transform_2(%arg0: i32) -> (i32, i32) {
    %c0_i32 = arith.constant 0 : i32
    %c0_i32_0 = arith.constant 0 : i32
    return %arg0, %c0_i32 : i32, i32
  }
  func.func @transform_3(%arg0: i32) -> (i32, i32, i32) {
    %c0_i32 = arith.constant 0 : i32
    %c0_i32_0 = arith.constant 0 : i32
    %c0_i32_1 = arith.constant 0 : i32
    return %arg0, %c0_i32, %c0_i32_0 : i32, i32, i32
  }
  func.func @transform_4(%arg0: i32) -> (i32, i32, i32) {
    %c0_i32 = arith.constant 0 : i32
    %c0_i32_0 = arith.constant 0 : i32
    %c0_i32_1 = arith.constant 0 : i32
    return %arg0, %c0_i32, %c0_i32_0 : i32, i32, i32
  }
}

module attributes {stable_mosaic.version = 11 : i64} {
  func.func @_conv_stats_kernel(%arg0: i32, %arg1: memref<8x2048xbf16, #tpu.memory_space<vmem>>, %arg2: memref<2048x128xbf16, #tpu.memory_space<vmem>>, %arg3: memref<8x128xbf16, #tpu.memory_space<vmem>>, %arg4: memref<1x1x128xf32, #tpu.memory_space<vmem>>, %arg5: memref<1x1x128xf32, #tpu.memory_space<vmem>>) attributes {dimension_semantics = [#tpu.dimension_semantics<parallel>], iteration_bounds = array<i64: 1>, scalar_prefetch = 0 : i64, scratch_operands = 0 : i64, tpu.core_type = #tpu.core_type<tc>, window_params = [{transform_indices = @transform_0, window_bounds = array<i64: 8, 2048>}, {pipeline_mode = #tpu.pipeline_mode<synchronous>, transform_indices = @transform_1, window_bounds = array<i64: 2048, 128>}, {transform_indices = @transform_2, window_bounds = array<i64: 8, 128>}, {transform_indices = @transform_3, window_bounds = array<i64: 1, 1, 128>}, {transform_indices = @transform_4, window_bounds = array<i64: 1, 1, 128>}]} {
    %c0 = arith.constant 0 : index
    %c0_0 = arith.constant 0 : index
    %0 = vector.load %arg1[%c0, %c0_0] : memref<8x2048xbf16, #tpu.memory_space<vmem>>, vector<8x2048xbf16>
    %c0_1 = arith.constant 0 : index
    %c0_2 = arith.constant 0 : index
    %1 = vector.load %arg2[%c0_1, %c0_2] : memref<2048x128xbf16, #tpu.memory_space<vmem>>, vector<2048x128xbf16>
    %cst = arith.constant dense<0.000000e+00> : vector<8x128xf32>
    %2 = tpu.matmul %0, %1, %cst {dimension_numbers = #tpu.dot_dimension_numbers<[1], [0], [0], [1], [0, 0, 1, 1], [], []>} : vector<8x2048xbf16>, vector<2048x128xbf16>, vector<8x128xf32> -> vector<8x128xf32>
    %3 = arith.truncf %2 : vector<8x128xf32> to vector<8x128xbf16>
    %c0_3 = arith.constant 0 : index
    %c0_4 = arith.constant 0 : index
    %4 = vector.load %arg3[%c0_3, %c0_4] : memref<8x128xbf16, #tpu.memory_space<vmem>>, vector<8x128xbf16>
    tpu.vector_store %arg3[%c0_3, %c0_4], %3 {strides = array<i32>} : memref<8x128xbf16, #tpu.memory_space<vmem>>, vector<8x128xbf16>,
    %cst_5 = arith.constant dense<0.000000e+00> : vector<128xf32>
    %5 = vector.multi_reduction <add>, %2, %cst_5 [0] : vector<8x128xf32> to vector<128xf32>
    %6 = vector.shape_cast %5 : vector<128xf32> to vector<1x128xf32>
    %c0_6 = arith.constant 0 : index
    %c0_7 = arith.constant 0 : index
    %c0_8 = arith.constant 0 : index
    %7 = vector.load %arg4[%c0_6, %c0_7, %c0_8] : memref<1x1x128xf32, #tpu.memory_space<vmem>>, vector<1x1x128xf32>
    %8 = vector.shape_cast %7 : vector<1x1x128xf32> to vector<1x128xf32>
    %9 = vector.shape_cast %6 : vector<1x128xf32> to vector<1x1x128xf32>
    tpu.vector_store %arg4[%c0_6, %c0_7, %c0_8], %9 {strides = array<i32>} : memref<1x1x128xf32, #tpu.memory_space<vmem>>, vector<1x1x128xf32>,
    %10 = arith.mulf %2, %2 : vector<8x128xf32>
    %cst_9 = arith.constant dense<0.000000e+00> : vector<128xf32>
    %11 = vector.multi_reduction <add>, %10, %cst_9 [0] : vector<8x128xf32> to vector<128xf32>
    %12 = vector.shape_cast %11 : vector<128xf32> to vector<1x128xf32>
    %c0_10 = arith.constant 0 : index
    %c0_11 = arith.constant 0 : index
    %c0_12 = arith.constant 0 : index
    %13 = vector.load %arg5[%c0_10, %c0_11, %c0_12] : memref<1x1x128xf32, #tpu.memory_space<vmem>>, vector<1x1x128xf32>
    %14 = vector.shape_cast %13 : vector<1x1x128xf32> to vector<1x128xf32>
    %15 = vector.shape_cast %12 : vector<1x128xf32> to vector<1x1x128xf32>
    tpu.vector_store %arg5[%c0_10, %c0_11, %c0_12], %15 {strides = array<i32>} : memref<1x1x128xf32, #tpu.memory_space<vmem>>, vector<1x1x128xf32>,
    return
  }
  func.func @transform_0(%arg0: i32) -> (i32, i32) {
    %c0_i32 = arith.constant 0 : i32
    %c0_i32_0 = arith.constant 0 : i32
    return %arg0, %c0_i32 : i32, i32
  }
  func.func @transform_1(%arg0: i32) -> (i32, i32) {
    %c0_i32 = arith.constant 0 : i32
    %c0_i32_0 = arith.constant 0 : i32
    %c0_i32_1 = arith.constant 0 : i32
    return %c0_i32, %c0_i32_0 : i32, i32
  }
  func.func @transform_2(%arg0: i32) -> (i32, i32) {
    %c0_i32 = arith.constant 0 : i32
    %c0_i32_0 = arith.constant 0 : i32
    return %arg0, %c0_i32 : i32, i32
  }
  func.func @transform_3(%arg0: i32) -> (i32, i32, i32) {
    %c0_i32 = arith.constant 0 : i32
    %c0_i32_0 = arith.constant 0 : i32
    %c0_i32_1 = arith.constant 0 : i32
    return %arg0, %c0_i32, %c0_i32_0 : i32, i32, i32
  }
  func.func @transform_4(%arg0: i32) -> (i32, i32, i32) {
    %c0_i32 = arith.constant 0 : i32
    %c0_i32_0 = arith.constant 0 : i32
    %c0_i32_1 = arith.constant 0 : i32
    return %arg0, %c0_i32, %c0_i32_0 : i32, i32, i32
  }
}

module attributes {stable_mosaic.version = 11 : i64} {
  func.func @_conv_kernel(%arg0: i32, %arg1: memref<8x2048xbf16, #tpu.memory_space<vmem>>, %arg2: memref<2048x128xbf16, #tpu.memory_space<vmem>>, %arg3: memref<8x128xf32, #tpu.memory_space<vmem>>) attributes {dimension_semantics = [#tpu.dimension_semantics<parallel>], iteration_bounds = array<i64: 1>, scalar_prefetch = 0 : i64, scratch_operands = 0 : i64, tpu.core_type = #tpu.core_type<tc>, window_params = [{transform_indices = @transform_0, window_bounds = array<i64: 8, 2048>}, {pipeline_mode = #tpu.pipeline_mode<synchronous>, transform_indices = @transform_1, window_bounds = array<i64: 2048, 128>}, {transform_indices = @transform_2, window_bounds = array<i64: 8, 128>}]} {
    %c0 = arith.constant 0 : index
    %c0_0 = arith.constant 0 : index
    %0 = vector.load %arg1[%c0, %c0_0] : memref<8x2048xbf16, #tpu.memory_space<vmem>>, vector<8x2048xbf16>
    %c0_1 = arith.constant 0 : index
    %c0_2 = arith.constant 0 : index
    %1 = vector.load %arg2[%c0_1, %c0_2] : memref<2048x128xbf16, #tpu.memory_space<vmem>>, vector<2048x128xbf16>
    %cst = arith.constant dense<0.000000e+00> : vector<8x128xf32>
    %2 = tpu.matmul %0, %1, %cst {dimension_numbers = #tpu.dot_dimension_numbers<[1], [0], [0], [1], [0, 0, 1, 1], [], []>} : vector<8x2048xbf16>, vector<2048x128xbf16>, vector<8x128xf32> -> vector<8x128xf32>
    %c0_3 = arith.constant 0 : index
    %c0_4 = arith.constant 0 : index
    %3 = vector.load %arg3[%c0_3, %c0_4] : memref<8x128xf32, #tpu.memory_space<vmem>>, vector<8x128xf32>
    tpu.vector_store %arg3[%c0_3, %c0_4], %2 {strides = array<i32>} : memref<8x128xf32, #tpu.memory_space<vmem>>, vector<8x128xf32>,
    return
  }
  func.func @transform_0(%arg0: i32) -> (i32, i32) {
    %c0_i32 = arith.constant 0 : i32
    %c0_i32_0 = arith.constant 0 : i32
    return %arg0, %c0_i32 : i32, i32
  }
  func.func @transform_1(%arg0: i32) -> (i32, i32) {
    %c0_i32 = arith.constant 0 : i32
    %c0_i32_0 = arith.constant 0 : i32
    %c0_i32_1 = arith.constant 0 : i32
    return %c0_i32, %c0_i32_0 : i32, i32
  }
  func.func @transform_2(%arg0: i32) -> (i32, i32) {
    %c0_i32 = arith.constant 0 : i32
    %c0_i32_0 = arith.constant 0 : i32
    return %arg0, %c0_i32 : i32, i32
  }
}

</mosaic_0001>

<llo_original>
// kernel: discriminator1_forward.4
$region0: #{discriminator1_forward.4}
  #allocation0 [shape = 'u32[]', space=smem, size = 0x4, offset = 0x4, fixed_abs, tag = 'smem constant byte address 0x4 - core index']
  #allocation1 [shape = 'u32[144,128]{1,0:T(1,128)}', space=vmem, size = 0x12000, scoped, tag = 'internal scratch']
  %s0 = inlined_call_operand.vmem [shape: bf16[128,256], index: 0, kind: input, shape index: {}]
  %s1 = inlined_call_operand.vmem [shape: bf16[256,128], index: 1, kind: input, shape index: {}]
  %s2 = inlined_call_operand.vmem [shape: bf16[128,128], index: 2, kind: output, shape index: {0}]
  %s3 = inlined_call_operand.vmem [shape: f32[2,1,128], index: 3, kind: output, shape index: {1}]
  %s4 = inlined_call_operand.vmem [shape: f32[2,1,128], index: 4, kind: output, shape index: {2}]
  %5 = xla_tuple %s2, %s3, %s4
  %s6 = sld [smem:[#allocation0]]
  $region57: #{discriminator1_forward.4} parent=0
    _
  %s8 = ssub.s32 1, %s6
  %s9 = scalar_select 0, %s8, %s6
  loop: start=0, step=1, limit=4
  $region2: #{discriminator1_forward.4} parent=0 // loop_pre_header
    _
  $region3: #{discriminator1_forward.4} parent=0 // loop_header
    %s11 = sphi 0, %s15
    %p12 = scmp.ge.s32.totalorder %s11, 4
    %s21 = sphi 0, %s23
    %s24 = sphi 0, %s21
    %s25 = sphi 0, %s24
    %s41 = sphi 0, %s25
    %s45 = sphi 0, %s45
    %s47 = sphi 0, %s45
    %s48 = sphi 0, %s47
    %s62 = sphi 0, %s48
    %s68 = sphi 0, %s70
    %s71 = sphi 0, %s68
    %s72 = sphi 0, %s71
    %s88 = sphi 0, %s72
    %s94 = sphi 0, %s96
    %s97 = sphi 0, %s94
    %s98 = sphi 0, %s97
    %s114 = sphi 0, %s98
    %s120 = sphi 0, %s122
    %s123 = sphi 0, %s120
    %s124 = sphi 0, %s123
    %s140 = sphi 0, %s124
  $region4: #{discriminator1_forward.4} parent=0 // loop_header_branch
    %14 = sbr.rel (%p12) target = $region8
  $region5: #{discriminator1_forward.4} parent=0 // loop_body
    %s16 = ssub.s32 %s11, 1
    %s17 = ssub.s32 %s11, 2
    %s18 = sadd.s32 %s11, 1
    %s19 = ssub.s32 %s11, %s18
    %p20 = scmp.eq.s32.totalorder %s19, 0
    %s22 = sadd.s32 %s21, 1
    %s23 = scalar_select %p20, %s21, %s22
    %p26 = pneg %p20
    %p27 = scmp.eq.s32.totalorder %s11, 1
    %p28 = por %p26, %p27
    %p29 = scmp.ne.s32.totalorder %s21, %s24
    %p30 = scmp.eq.s32.totalorder %s11, 0
    %p31 = por %p29, %p30
    %p32 = scmp.ne.s32.totalorder %s21, %s24
    %p33 = scmp.eq.s32.totalorder %s16, 1
    %p34 = por %p32, %p33
    %p35 = scmp.ne.s32.totalorder %s24, %s25
    %p36 = scmp.eq.s32.totalorder %s16, 0
    %p37 = por %p35, %p36
    %p38 = scmp.ne.s32.totalorder %s24, %s25
    %p39 = scmp.eq.s32.totalorder %s17, 1
    %p40 = por %p38, %p39
    %p42 = scmp.ne.s32.totalorder %s25, %s41
    %p43 = scmp.eq.s32.totalorder %s17, 0
    %p44 = por %p42, %p43
    %s46 = sadd.s32 %s45, 1
    %p49 = scmp.eq.s32.totalorder %s11, 1
    %p50 = scmp.ne.s32.totalorder %s45, %s47
    %p51 = scmp.eq.s32.totalorder %s11, 0
    %p52 = por %p50, %p51
    %p53 = scmp.ne.s32.totalorder %s45, %s47
    %p54 = scmp.eq.s32.totalorder %s16, 1
    %p55 = por %p53, %p54
    %p56 = scmp.ne.s32.totalorder %s47, %s48
    %p57 = scmp.eq.s32.totalorder %s16, 0
    %p58 = por %p56, %p57
    %p59 = scmp.ne.s32.totalorder %s47, %s48
    %p60 = scmp.eq.s32.totalorder %s17, 1
    %p61 = por %p59, %p60
    %p63 = scmp.ne.s32.totalorder %s48, %s62
    %p64 = scmp.eq.s32.totalorder %s17, 0
    %p65 = por %p63, %p64
    %s66 = ssub.s32 %s11, %s18
    %p67 = scmp.eq.s32.totalorder %s66, 0
    %s69 = sadd.s32 %s68, 1
    %s70 = scalar_select %p67, %s68, %s69
    %p73 = pneg %p67
    %p74 = scmp.eq.s32.totalorder %s11, 1
    %p75 = por %p73, %p74
    %p76 = scmp.ne.s32.totalorder %s68, %s71
    %p77 = scmp.eq.s32.totalorder %s11, 0
    %p78 = por %p76, %p77
    %p79 = scmp.ne.s32.totalorder %s68, %s71
    %p80 = scmp.eq.s32.totalorder %s16, 1
    %p81 = por %p79, %p80
    %p82 = scmp.ne.s32.totalorder %s71, %s72
    %p83 = scmp.eq.s32.totalorder %s16, 0
    %p84 = por %p82, %p83
    %p85 = scmp.ne.s32.totalorder %s71, %s72
    %p86 = scmp.eq.s32.totalorder %s17, 1
    %p87 = por %p85, %p86
    %p89 = scmp.ne.s32.totalorder %s72, %s88
    %p90 = scmp.eq.s32.totalorder %s17, 0
    %p91 = por %p89, %p90
    %s92 = ssub.s32 %s11, %s18
    %p93 = scmp.eq.s32.totalorder %s92, 0
    %s95 = sadd.s32 %s94, 1
    %s96 = scalar_select %p93, %s94, %s95
    %p99 = pneg %p93
    %p100 = scmp.eq.s32.totalorder %s11, 1
    %p101 = por %p99, %p100
    %p102 = scmp.ne.s32.totalorder %s94, %s97
    %p103 = scmp.eq.s32.totalorder %s11, 0
    %p104 = por %p102, %p103
    %p105 = scmp.ne.s32.totalorder %s94, %s97
    %p106 = scmp.eq.s32.totalorder %s16, 1
    %p107 = por %p105, %p106
    %p108 = scmp.ne.s32.totalorder %s97, %s98
    %p109 = scmp.eq.s32.totalorder %s16, 0
    %p110 = por %p108, %p109
    %p111 = scmp.ne.s32.totalorder %s97, %s98
    %p112 = scmp.eq.s32.totalorder %s17, 1
    %p113 = por %p111, %p112
    %p115 = scmp.ne.s32.totalorder %s98, %s114
    %p116 = scmp.eq.s32.totalorder %s17, 0
    %p117 = por %p115, %p116
    %s118 = ssub.s32 %s11, %s18
    %p119 = scmp.eq.s32.totalorder %s118, 0
    %s121 = sadd.s32 %s120, 1
    %s122 = scalar_select %p119, %s120, %s121
    %p125 = pneg %p119
    %p126 = scmp.eq.s32.totalorder %s11, 1
    %p127 = por %p125, %p126
    %p128 = scmp.ne.s32.totalorder %s120, %s123
    %p129 = scmp.eq.s32.totalorder %s11, 0
    %p130 = por %p128, %p129
    %p131 = scmp.ne.s32.totalorder %s120, %s123
    %p132 = scmp.eq.s32.totalorder %s16, 1
    %p133 = por %p131, %p132
    %p134 = scmp.ne.s32.totalorder %s123, %s124
    %p135 = scmp.eq.s32.totalorder %s16, 0
    %p136 = por %p134, %p135
    %p137 = scmp.ne.s32.totalorder %s123, %s124
    %p138 = scmp.eq.s32.totalorder %s17, 1
    %p139 = por %p137, %p138
    %p141 = scmp.ne.s32.totalorder %s124, %s140
    %p142 = scmp.eq.s32.totalorder %s17, 0
    %p143 = por %p141, %p142
    %p144 = scmp.le.s32.totalorder 1, %s11
    %p145 = scmp.lt.s32.totalorder %s11, 3
    %p146 = pnand %p144, %p145
    %p147 = pneg %p146
    // Predicated region
    $region9: #{discriminator1_forward.4} parent=5 // pred_check
      _
    $region10: #{discriminator1_forward.4} parent=5 // pred_check_branch
      %149 = sbr.rel (%p146) target = $region12
    $region11: #{discriminator1_forward.4} parent=5 // pred_region
      %s150 = ssub.s32 %s11, 1
      // Predicated region
      $region13: #{discriminator1_forward.4} parent=11 // pred_check
        %p151 = pneg %p58
      $region14: #{discriminator1_forward.4} parent=11 // pred_check_branch
        %153 = sbr.rel (%p151) target = $region16
      $region15: #{discriminator1_forward.4} parent=11 // pred_region
        _
      $region16: #{discriminator1_forward.4} parent=11 // pred_fallthru
        _
    $region12: #{discriminator1_forward.4} parent=5 // pred_fallthru
      _
    %p154 = scmp.lt.s32.totalorder %s11, 2
    // Predicated region
    $region17: #{discriminator1_forward.4} parent=5 // pred_check
      %p155 = pneg %p154
    $region18: #{discriminator1_forward.4} parent=5 // pred_check_branch
      %157 = sbr.rel (%p155) target = $region20
    $region19: #{discriminator1_forward.4} parent=5 // pred_region
      // Predicated region
      $region21: #{discriminator1_forward.4} parent=19 // pred_check
        %p158 = pneg %p31
      $region22: #{discriminator1_forward.4} parent=19 // pred_check_branch
        %160 = sbr.rel (%p158) target = $region24
      $region23: #{discriminator1_forward.4} parent=19 // pred_region
        %s161 = smul.u32 8, %s11
        %p162 = scmp.lt.s32.totalorder %s161, 15
        %s163 = scalar_select %p162, %s161, 15
        %s164 = smul.addr %s163, 2
        %s165 = smul.addr %s164, 4
        %s166 = scalar_lea.vmem %s0, %s165
        %s167 = smul.u32 8, %s11
      $region24: #{discriminator1_forward.4} parent=19 // pred_fallthru
        _
    $region20: #{discriminator1_forward.4} parent=5 // pred_fallthru
      _
    %p168 = scmp.le.s32.totalorder 1, %s11
    %p169 = scmp.lt.s32.totalorder %s11, 3
    %p170 = pnand %p168, %p169
    %p171 = pneg %p170
    // Predicated region
    $region25: #{discriminator1_forward.4} parent=5 // pred_check
      _
    $region26: #{discriminator1_forward.4} parent=5 // pred_check_branch
      %173 = sbr.rel (%p170) target = $region28
    $region27: #{discriminator1_forward.4} parent=5 // pred_region
      %s174 = ssub.s32 %s11, 1
      %s175 = smul.u32 8, %s16
      %p176 = scmp.lt.s32.totalorder %s175, 15
      %s177 = scalar_select %p176, %s175, 15
      %s178 = smul.addr %s177, 2
      %s179 = smul.addr %s178, 4
      %s180 = scalar_lea.vmem %s0, %s179
      %p181 = pneg %p37
      %p182 = pneg %p34
      %p183 = pneg %p58
      %p184 = pneg %p55
      %p185 = pneg %p84
      %p186 = pneg %p81
      %s187 = smul.u32 8, %s16
      %p188 = scmp.lt.s32.totalorder %s187, 15
      %s189 = scalar_select %p188, %s187, 15
      %s190 = smul.addr %s189, 4
      %s191 = scalar_lea.vmem %s2, %s190
      %p192 = pneg %p110
      %p193 = pneg %p107
      %p194 = scmp.lt.s32.totalorder %s16, 1
      %s195 = scalar_select %p194, %s16, 1
      %s196 = scalar_lea.vmem %s3, %s195
      %p197 = pneg %p136
      %p198 = pneg %p133
      %p199 = scmp.lt.s32.totalorder %s16, 1
      %s200 = scalar_select %p199, %s16, 1
      %s201 = scalar_lea.vmem %s4, %s200
      %s202 = smul.u32 8, %s16
      %p203 = scmp.lt.s32.totalorder %s202, 15
      %s204 = scalar_select %p203, %s202, 15
      %s205 = smul.addr %s204, 2
      %s206 = smul.addr %s205, 4
      %s207 = scalar_lea.vmem %s0, %s206
      %s208 = smul.u32 8, %s16
      %s209 = smul.u32 8, %s16
      %p210 = scmp.lt.s32.totalorder %s209, 15
      %s211 = scalar_select %p210, %s209, 15
      %s212 = smul.addr %s211, 4
      %s213 = scalar_lea.vmem %s2, %s212
      %s214 = smul.u32 8, %s16
      %p215 = scmp.lt.s32.totalorder %s16, 1
      %s216 = scalar_select %p215, %s16, 1
      %s217 = scalar_lea.vmem %s3, %s216
      %p218 = scmp.lt.s32.totalorder %s16, 1
      %s219 = scalar_select %p218, %s16, 1
      %s220 = scalar_lea.vmem %s4, %s219
      %v222 = vld [vmem:[%s207] sm:$0xff]
      %v223 = vld [vmem:[%s207 + $0x8] sm:$0xff]
      %v224 = vld [vmem:[%s207 + $0x10] sm:$0xff]
      %v225 = vld [vmem:[%s207 + $0x18] sm:$0xff]
      %v226 = vld [vmem:[%s207 + $0x20] sm:$0xff]
      %v227 = vld [vmem:[%s207 + $0x28] sm:$0xff]
      %v228 = vld [vmem:[%s207 + $0x30] sm:$0xff]
      %v229 = vld [vmem:[%s207 + $0x38] sm:$0xff]
      %v230 = vld [vmem:[%s1] sm:$0xf]
      %v231 = vld [vmem:[%s1 + $0x4] sm:$0xf]
      %v232 = vld [vmem:[%s1 + $0x8] sm:$0xf]
      %v233 = vld [vmem:[%s1 + $0xc] sm:$0xf]
      %v234 = vld [vmem:[%s1 + $0x10] sm:$0xf]
      %v235 = vld [vmem:[%s1 + $0x14] sm:$0xf]
      %v236 = vld [vmem:[%s1 + $0x18] sm:$0xf]
      %v237 = vld [vmem:[%s1 + $0x1c] sm:$0xf]
      %v238 = vld [vmem:[%s1 + $0x20] sm:$0xf]
      %v239 = vld [vmem:[%s1 + $0x24] sm:$0xf]
      %v240 = vld [vmem:[%s1 + $0x28] sm:$0xf]
      %v241 = vld [vmem:[%s1 + $0x2c] sm:$0xf]
      %v242 = vld [vmem:[%s1 + $0x30] sm:$0xf]
      %v243 = vld [vmem:[%s1 + $0x34] sm:$0xf]
      %v244 = vld [vmem:[%s1 + $0x38] sm:$0xf]
      %v245 = vld [vmem:[%s1 + $0x3c] sm:$0xf]
      %v246 = vld [vmem:[%s1 + $0x40] sm:$0xf]
      %v247 = vld [vmem:[%s1 + $0x44] sm:$0xf]
      %v248 = vld [vmem:[%s1 + $0x48] sm:$0xf]
      %v249 = vld [vmem:[%s1 + $0x4c] sm:$0xf]
      %v250 = vld [vmem:[%s1 + $0x50] sm:$0xf]
      %v251 = vld [vmem:[%s1 + $0x54] sm:$0xf]
      %v252 = vld [vmem:[%s1 + $0x58] sm:$0xf]
      %v253 = vld [vmem:[%s1 + $0x5c] sm:$0xf]
      %v254 = vld [vmem:[%s1 + $0x60] sm:$0xf]
      %v255 = vld [vmem:[%s1 + $0x64] sm:$0xf]
      %v256 = vld [vmem:[%s1 + $0x68] sm:$0xf]
      %v257 = vld [vmem:[%s1 + $0x6c] sm:$0xf]
      %v258 = vld [vmem:[%s1 + $0x70] sm:$0xf]
      %v259 = vld [vmem:[%s1 + $0x74] sm:$0xf]
      %v260 = vld [vmem:[%s1 + $0x78] sm:$0xf]
      %v261 = vld [vmem:[%s1 + $0x7c] sm:$0xf]
      %v270 = vunpack.c.l.b16 %v222
      %v271 = vunpack.c.h.b16 %v222
      %v272 = vunpack.c.l.b16 %v223
      %v273 = vunpack.c.h.b16 %v223
      %v274 = vunpack.c.l.b16 %v224
      %v275 = vunpack.c.h.b16 %v224
      %v276 = vunpack.c.l.b16 %v225
      %v277 = vunpack.c.h.b16 %v225
      %v278 = vunpack.c.l.b16 %v226
      %v279 = vunpack.c.h.b16 %v226
      %v280 = vunpack.c.l.b16 %v227
      %v281 = vunpack.c.h.b16 %v227
      %v282 = vunpack.c.l.b16 %v228
      %v283 = vunpack.c.h.b16 %v228
      %v284 = vunpack.c.l.b16 %v229
      %v285 = vunpack.c.h.b16 %v229
      %v286 = vpack.c.b16 %v272, %v270
      %v287 = vpack.c.b16 %v273, %v271
      %v288 = vpack.c.b16 %v276, %v274
      %v289 = vpack.c.b16 %v277, %v275
      %v290 = vpack.c.b16 %v280, %v278
      %v291 = vpack.c.b16 %v281, %v279
      %v292 = vpack.c.b16 %v284, %v282
      %v293 = vpack.c.b16 %v285, %v283
      %v334 = vunpack.c.l.b16 %v230
      %v335 = vunpack.c.l.b16 %v231
      %v336 = vunpack.c.l.b16 %v232
      %v337 = vunpack.c.l.b16 %v233
      %v338 = vunpack.c.l.b16 %v234
      %v339 = vunpack.c.l.b16 %v235
      %v340 = vunpack.c.l.b16 %v236
      %v341 = vunpack.c.l.b16 %v237
      %v342 = vunpack.c.l.b16 %v238
      %v343 = vunpack.c.l.b16 %v239
      %v344 = vunpack.c.l.b16 %v240
      %v345 = vunpack.c.l.b16 %v241
      %v346 = vunpack.c.l.b16 %v242
      %v347 = vunpack.c.l.b16 %v243
      %v348 = vunpack.c.l.b16 %v244
      %v349 = vunpack.c.l.b16 %v245
      %v350 = vunpack.c.l.b16 %v246
      %v351 = vunpack.c.l.b16 %v247
      %v352 = vunpack.c.l.b16 %v248
      %v353 = vunpack.c.l.b16 %v249
      %v354 = vunpack.c.l.b16 %v250
      %v355 = vunpack.c.l.b16 %v251
      %v356 = vunpack.c.l.b16 %v252
      %v357 = vunpack.c.l.b16 %v253
      %v358 = vunpack.c.l.b16 %v254
      %v359 = vunpack.c.l.b16 %v255
      %v360 = vunpack.c.l.b16 %v256
      %v361 = vunpack.c.l.b16 %v257
      %v362 = vunpack.c.l.b16 %v258
      %v363 = vunpack.c.l.b16 %v259
      %v364 = vunpack.c.l.b16 %v260
      %v365 = vunpack.c.l.b16 %v261
      %v366 = vpack.c.b16 %v335, %v334
      %v367 = vpack.c.b16 %v337, %v336
      %v368 = vpack.c.b16 %v339, %v338
      %v369 = vpack.c.b16 %v341, %v340
      %v370 = vpack.c.b16 %v343, %v342
      %v371 = vpack.c.b16 %v345, %v344
      %v372 = vpack.c.b16 %v347, %v346
      %v373 = vpack.c.b16 %v349, %v348
      %v374 = vpack.c.b16 %v351, %v350
      %v375 = vpack.c.b16 %v353, %v352
      %v376 = vpack.c.b16 %v355, %v354
      %v377 = vpack.c.b16 %v357, %v356
      %v378 = vpack.c.b16 %v359, %v358
      %v379 = vpack.c.b16 %v361, %v360
      %v380 = vpack.c.b16 %v363, %v362
      %v381 = vpack.c.b16 %v365, %v364
      %398 = vmatprep.subr.bf16.mxu0 0
      %399 = vmatpush1.bf16.msra.mxu0 %v373
      %400 = vmatprep.subr.bf16.mxu0 0
      %401 = vmatpush1.bf16.msra.mxu0 %v372
      %402 = vmatprep.subr.bf16.mxu0 0
      %403 = vmatpush1.bf16.msra.mxu0 %v371
      %404 = vmatprep.subr.bf16.mxu0 0
      %405 = vmatpush1.bf16.msra.mxu0 %v370
      %406 = vmatprep.subr.bf16.mxu0 0
      %407 = vmatpush1.bf16.msra.mxu0 %v369
      %408 = vmatprep.subr.bf16.mxu0 0
      %409 = vmatpush1.bf16.msra.mxu0 %v368
      %410 = vmatprep.subr.bf16.mxu0 0
      %411 = vmatpush1.bf16.msra.mxu0 %v367
      %412 = vmatprep.subr.bf16.mxu0 0
      %413 = vmatpush1.bf16.msra.mxu0 %v366
      %414 = vmatprep.subr.bf16.mxu0 0
      %415 = vmatpush2.bf16.msra.mxu0 %v381
      %416 = vmatprep.subr.bf16.mxu0 0
      %417 = vmatpush2.bf16.msra.mxu0 %v380
      %418 = vmatprep.subr.bf16.mxu0 0
      %419 = vmatpush2.bf16.msra.mxu0 %v379
      %420 = vmatprep.subr.bf16.mxu0 0
      %421 = vmatpush2.bf16.msra.mxu0 %v378
      %422 = vmatprep.subr.bf16.mxu0 0
      %423 = vmatpush2.bf16.msra.mxu0 %v377
      %424 = vmatprep.subr.bf16.mxu0 0
      %425 = vmatpush2.bf16.msra.mxu0 %v376
      %426 = vmatprep.subr.bf16.mxu0 0
      %427 = vmatpush2.bf16.msra.mxu0 %v375
      %428 = vmatprep.subr.bf16.mxu0 0
      %429 = vmatpush2.bf16.msra.mxu0 %v374
      %430 = vmatprep.mubr.bf16.mxu0 %v287
      %431 = vmatmul.mubr.bf16.gmra.mxu0 %v286
      %v432 = vpop.f32.mrf.mxu0
      %v433 = vadd.f32 0.0, %v432
      %v434 = vpop.f32.mrf.mxu0
      %v435 = vpop.f32.mrf.mxu0
      %v436 = vadd.f32 0.0, %v435
      %v437 = vpop.f32.mrf.mxu0
      %438 = vmatprep.mubr.bf16.mxu0 %v289
      %439 = vmatmul.mubr.bf16.gmra.mxu0 %v288
      %v440 = vpop.f32.mrf.mxu0
      %v441 = vadd.f32 0.0, %v440
      %v442 = vpop.f32.mrf.mxu0
      %v443 = vpop.f32.mrf.mxu0
      %v444 = vadd.f32 0.0, %v443
      %v445 = vpop.f32.mrf.mxu0
      %446 = vmatprep.mubr.bf16.mxu0 %v291
      %447 = vmatmul.mubr.bf16.gmra.mxu0 %v290
      %v448 = vpop.f32.mrf.mxu0
      %v449 = vadd.f32 0.0, %v448
      %v450 = vpop.f32.mrf.mxu0
      %v451 = vpop.f32.mrf.mxu0
      %v452 = vadd.f32 0.0, %v451
      %v453 = vpop.f32.mrf.mxu0
      %454 = vmatprep.mubr.bf16.mxu0 %v293
      %455 = vmatmul.mubr.bf16.gmra.mxu0 %v292
      %v456 = vpop.f32.mrf.mxu0
      %v457 = vadd.f32 0.0, %v456
      %v458 = vpop.f32.mrf.mxu0
      %v459 = vpop.f32.mrf.mxu0
      %v460 = vadd.f32 0.0, %v459
      %v461 = vpop.f32.mrf.mxu0
      %462 = vdwg.mxu0
      %v463 = vpack.c.bf16 %v436, %v433
      %v464 = vpack.c.bf16 %v444, %v441
      %v465 = vpack.c.bf16 %v452, %v449
      %v466 = vpack.c.bf16 %v460, %v457
      %v471 = vunpack.c.l.b16 %v463
      %v472 = vunpack.c.h.b16 %v463
      %v473 = vunpack.c.l.b16 %v464
      %v474 = vunpack.c.h.b16 %v464
      %v475 = vunpack.c.l.b16 %v465
      %v476 = vunpack.c.h.b16 %v465
      %v477 = vunpack.c.l.b16 %v466
      %v478 = vunpack.c.h.b16 %v466
      %v479 = vpack.c.b16 %v471, %v471
      %v480 = vpack.c.b16 %v472, %v472
      %v481 = vpack.c.b16 %v473, %v473
      %v482 = vpack.c.b16 %v474, %v474
      %v483 = vpack.c.b16 %v475, %v475
      %v484 = vpack.c.b16 %v476, %v476
      %v485 = vpack.c.b16 %v477, %v477
      %v486 = vpack.c.b16 %v478, %v478
      %495 = vst [vmem:[%s213] sm:$0xf] %v479
      %496 = vst [vmem:[%s213 + $0x4] sm:$0xf] %v480
      %497 = vst [vmem:[%s213 + $0x8] sm:$0xf] %v481
      %498 = vst [vmem:[%s213 + $0xc] sm:$0xf] %v482
      %499 = vst [vmem:[%s213 + $0x10] sm:$0xf] %v483
      %500 = vst [vmem:[%s213 + $0x14] sm:$0xf] %v484
      %501 = vst [vmem:[%s213 + $0x18] sm:$0xf] %v485
      %502 = vst [vmem:[%s213 + $0x1c] sm:$0xf] %v486
      %v503 = vadd.f32 %v433, %v436
      %v504 = vadd.f32 %v503, %v441
      %v505 = vadd.f32 %v504, %v444
      %v506 = vadd.f32 %v505, %v449
      %v507 = vadd.f32 %v506, %v452
      %v508 = vadd.f32 %v507, %v457
      %v509 = vadd.f32 %v508, %v460
      %v510 = vrot.slane %v509, 4
      %v511 = vadd.f32 %v509, %v510
      %v512 = vrot.slane %v511, 2
      %v513 = vadd.f32 %v511, %v512
      %v514 = vrot.slane %v513, 1
      %v515 = vadd.f32 %v513, %v514
      %516 = vst [vmem:[%s217] sm:$0x1] %v515
      %v517 = vmul.f32 %v433, %v433
      %v518 = vmul.f32 %v436, %v436
      %v519 = vmul.f32 %v441, %v441
      %v520 = vmul.f32 %v444, %v444
      %v521 = vmul.f32 %v449, %v449
      %v522 = vmul.f32 %v452, %v452
      %v523 = vmul.f32 %v457, %v457
      %v524 = vmul.f32 %v460, %v460
      %v525 = vadd.f32 %v517, %v518
      %v526 = vadd.f32 %v525, %v519
      %v527 = vadd.f32 %v526, %v520
      %v528 = vadd.f32 %v527, %v521
      %v529 = vadd.f32 %v528, %v522
      %v530 = vadd.f32 %v529, %v523
      %v531 = vadd.f32 %v530, %v524
      %v532 = vrot.slane %v531, 4
      %v533 = vadd.f32 %v531, %v532
      %v534 = vrot.slane %v533, 2
      %v535 = vadd.f32 %v533, %v534
      %v536 = vrot.slane %v535, 1
      %v537 = vadd.f32 %v535, %v536
      %538 = vst [vmem:[%s220] sm:$0x1] %v537
      %s539 = smul.u32 8, %s16
      %p540 = scmp.lt.s32.totalorder %s539, 15
      %s541 = scalar_select %p540, %s539, 15
      %s542 = smul.addr %s541, 4
      %s543 = scalar_lea.vmem %s2, %s542
      %p544 = scmp.lt.s32.totalorder %s16, 1
      %s545 = scalar_select %p544, %s16, 1
      %s546 = scalar_lea.vmem %s3, %s545
      %p547 = scmp.lt.s32.totalorder %s16, 1
      %s548 = scalar_select %p547, %s16, 1
      %s549 = scalar_lea.vmem %s4, %s548
      // Predicated region
      $region29: #{discriminator1_forward.4} parent=27 // pred_check
        %p550 = pneg %p81
      $region30: #{discriminator1_forward.4} parent=27 // pred_check_branch
        %552 = sbr.rel (%p550) target = $region32
      $region31: #{discriminator1_forward.4} parent=27 // pred_region
        %s553 = smul.u32 8, %s16
      $region32: #{discriminator1_forward.4} parent=27 // pred_fallthru
        _
      // Predicated region
      $region33: #{discriminator1_forward.4} parent=27 // pred_check
        %p554 = pneg %p107
      $region34: #{discriminator1_forward.4} parent=27 // pred_check_branch
        %556 = sbr.rel (%p554) target = $region36
      $region35: #{discriminator1_forward.4} parent=27 // pred_region
        _
      $region36: #{discriminator1_forward.4} parent=27 // pred_fallthru
        _
      // Predicated region
      $region37: #{discriminator1_forward.4} parent=27 // pred_check
        %p557 = pneg %p133
      $region38: #{discriminator1_forward.4} parent=27 // pred_check_branch
        %559 = sbr.rel (%p557) target = $region40
      $region39: #{discriminator1_forward.4} parent=27 // pred_region
        _
      $region40: #{discriminator1_forward.4} parent=27 // pred_fallthru
        _
    $region28: #{discriminator1_forward.4} parent=5 // pred_fallthru
      _
    %p560 = scmp.le.s32.totalorder 2, %s11
    // Predicated region
    $region41: #{discriminator1_forward.4} parent=5 // pred_check
      %p561 = pneg %p560
    $region42: #{discriminator1_forward.4} parent=5 // pred_check_branch
      %563 = sbr.rel (%p561) target = $region44
    $region43: #{discriminator1_forward.4} parent=5 // pred_region
      %s564 = ssub.s32 %s11, 2
      // Predicated region
      $region45: #{discriminator1_forward.4} parent=43 // pred_check
        %p565 = pneg %p87
      $region46: #{discriminator1_forward.4} parent=43 // pred_check_branch
        %567 = sbr.rel (%p565) target = $region48
      $region47: #{discriminator1_forward.4} parent=43 // pred_region
        %s568 = smul.u32 8, %s17
        %p569 = scmp.lt.s32.totalorder %s568, 15
        %s570 = scalar_select %p569, %s568, 15
        %s571 = smul.addr %s570, 4
        %s572 = scalar_lea.vmem %s2, %s571
      $region48: #{discriminator1_forward.4} parent=43 // pred_fallthru
        _
      // Predicated region
      $region49: #{discriminator1_forward.4} parent=43 // pred_check
        %p573 = pneg %p113
      $region50: #{discriminator1_forward.4} parent=43 // pred_check_branch
        %575 = sbr.rel (%p573) target = $region52
      $region51: #{discriminator1_forward.4} parent=43 // pred_region
        %p576 = scmp.lt.s32.totalorder %s17, 1
        %s577 = scalar_select %p576, %s17, 1
        %s578 = scalar_lea.vmem %s3, %s577
      $region52: #{discriminator1_forward.4} parent=43 // pred_fallthru
        _
      // Predicated region
      $region53: #{discriminator1_forward.4} parent=43 // pred_check
        %p579 = pneg %p139
      $region54: #{discriminator1_forward.4} parent=43 // pred_check_branch
        %581 = sbr.rel (%p579) target = $region56
      $region55: #{discriminator1_forward.4} parent=43 // pred_region
        %p582 = scmp.lt.s32.totalorder %s17, 1
        %s583 = scalar_select %p582, %s17, 1
        %s584 = scalar_lea.vmem %s4, %s583
      $region56: #{discriminator1_forward.4} parent=43 // pred_fallthru
        _
    $region44: #{discriminator1_forward.4} parent=5 // pred_fallthru
      _
  $region6: #{discriminator1_forward.4} parent=0 // loop_footer
    %s15 = sadd.s32 1, %s11
  $region7: #{discriminator1_forward.4} parent=0 // loop_footer_branch
    %10 = sbr.rel target = $region3
  $region8: #{discriminator1_forward.4} parent=0 // loop_exit
    _

// kernel: discriminator1_forward.5
$region0: #{discriminator1_forward.5}
  #allocation0 [shape = 'u32[]', space=smem, size = 0x4, offset = 0x4, fixed_abs, tag = 'smem constant byte address 0x4 - core index']
  #allocation1 [shape = 'u32[144,128]{1,0:T(1,128)}', space=vmem, size = 0x12000, scoped, tag = 'internal scratch']
  %s0 = inlined_call_operand.vmem [shape: bf16[32,2048], index: 0, kind: input, shape index: {}]
  %s1 = inlined_call_operand.vmem [shape: bf16[2048,128], index: 1, kind: input, shape index: {}]
  %s2 = inlined_call_operand.vmem [shape: bf16[32,128], index: 2, kind: output, shape index: {0}]
  %s3 = inlined_call_operand.vmem [shape: f32[2,1,128], index: 3, kind: output, shape index: {1}]
  %s4 = inlined_call_operand.vmem [shape: f32[2,1,128], index: 4, kind: output, shape index: {2}]
  %5 = xla_tuple %s2, %s3, %s4
  %s6 = sld [smem:[#allocation0]]
  $region57: #{discriminator1_forward.5} parent=0
    _
  %s8 = ssub.s32 1, %s6
  %s9 = scalar_select 0, %s8, %s6
  loop: start=0, step=1, limit=4
  $region2: #{discriminator1_forward.5} parent=0 // loop_pre_header
    _
  $region3: #{discriminator1_forward.5} parent=0 // loop_header
    %s11 = sphi 0, %s15
    %p12 = scmp.ge.s32.totalorder %s11, 4
    %s21 = sphi 0, %s23
    %s24 = sphi 0, %s21
    %s25 = sphi 0, %s24
    %s41 = sphi 0, %s25
    %s45 = sphi 0, %s45
    %s47 = sphi 0, %s45
    %s48 = sphi 0, %s47
    %s62 = sphi 0, %s48
    %s68 = sphi 0, %s70
    %s71 = sphi 0, %s68
    %s72 = sphi 0, %s71
    %s88 = sphi 0, %s72
    %s94 = sphi 0, %s96
    %s97 = sphi 0, %s94
    %s98 = sphi 0, %s97
    %s114 = sphi 0, %s98
    %s120 = sphi 0, %s122
    %s123 = sphi 0, %s120
    %s124 = sphi 0, %s123
    %s140 = sphi 0, %s124
  $region4: #{discriminator1_forward.5} parent=0 // loop_header_branch
    %14 = sbr.rel (%p12) target = $region8
  $region5: #{discriminator1_forward.5} parent=0 // loop_body
    %s16 = ssub.s32 %s11, 1
    %s17 = ssub.s32 %s11, 2
    %s18 = sadd.s32 %s11, 1
    %s19 = ssub.s32 %s11, %s18
    %p20 = scmp.eq.s32.totalorder %s19, 0
    %s22 = sadd.s32 %s21, 1
    %s23 = scalar_select %p20, %s21, %s22
    %p26 = pneg %p20
    %p27 = scmp.eq.s32.totalorder %s11, 1
    %p28 = por %p26, %p27
    %p29 = scmp.ne.s32.totalorder %s21, %s24
    %p30 = scmp.eq.s32.totalorder %s11, 0
    %p31 = por %p29, %p30
    %p32 = scmp.ne.s32.totalorder %s21, %s24
    %p33 = scmp.eq.s32.totalorder %s16, 1
    %p34 = por %p32, %p33
    %p35 = scmp.ne.s32.totalorder %s24, %s25
    %p36 = scmp.eq.s32.totalorder %s16, 0
    %p37 = por %p35, %p36
    %p38 = scmp.ne.s32.totalorder %s24, %s25
    %p39 = scmp.eq.s32.totalorder %s17, 1
    %p40 = por %p38, %p39
    %p42 = scmp.ne.s32.totalorder %s25, %s41
    %p43 = scmp.eq.s32.totalorder %s17, 0
    %p44 = por %p42, %p43
    %s46 = sadd.s32 %s45, 1
    %p49 = scmp.eq.s32.totalorder %s11, 1
    %p50 = scmp.ne.s32.totalorder %s45, %s47
    %p51 = scmp.eq.s32.totalorder %s11, 0
    %p52 = por %p50, %p51
    %p53 = scmp.ne.s32.totalorder %s45, %s47
    %p54 = scmp.eq.s32.totalorder %s16, 1
    %p55 = por %p53, %p54
    %p56 = scmp.ne.s32.totalorder %s47, %s48
    %p57 = scmp.eq.s32.totalorder %s16, 0
    %p58 = por %p56, %p57
    %p59 = scmp.ne.s32.totalorder %s47, %s48
    %p60 = scmp.eq.s32.totalorder %s17, 1
    %p61 = por %p59, %p60
    %p63 = scmp.ne.s32.totalorder %s48, %s62
    %p64 = scmp.eq.s32.totalorder %s17, 0
    %p65 = por %p63, %p64
    %s66 = ssub.s32 %s11, %s18
    %p67 = scmp.eq.s32.totalorder %s66, 0
    %s69 = sadd.s32 %s68, 1
    %s70 = scalar_select %p67, %s68, %s69
    %p73 = pneg %p67
    %p74 = scmp.eq.s32.totalorder %s11, 1
    %p75 = por %p73, %p74
    %p76 = scmp.ne.s32.totalorder %s68, %s71
    %p77 = scmp.eq.s32.totalorder %s11, 0
    %p78 = por %p76, %p77
    %p79 = scmp.ne.s32.totalorder %s68, %s71
    %p80 = scmp.eq.s32.totalorder %s16, 1
    %p81 = por %p79, %p80
    %p82 = scmp.ne.s32.totalorder %s71, %s72
    %p83 = scmp.eq.s32.totalorder %s16, 0
    %p84 = por %p82, %p83
    %p85 = scmp.ne.s32.totalorder %s71, %s72
    %p86 = scmp.eq.s32.totalorder %s17, 1
    %p87 = por %p85, %p86
    %p89 = scmp.ne.s32.totalorder %s72, %s88
    %p90 = scmp.eq.s32.totalorder %s17, 0
    %p91 = por %p89, %p90
    %s92 = ssub.s32 %s11, %s18
    %p93 = scmp.eq.s32.totalorder %s92, 0
    %s95 = sadd.s32 %s94, 1
    %s96 = scalar_select %p93, %s94, %s95
    %p99 = pneg %p93
    %p100 = scmp.eq.s32.totalorder %s11, 1
    %p101 = por %p99, %p100
    %p102 = scmp.ne.s32.totalorder %s94, %s97
    %p103 = scmp.eq.s32.totalorder %s11, 0
    %p104 = por %p102, %p103
    %p105 = scmp.ne.s32.totalorder %s94, %s97
    %p106 = scmp.eq.s32.totalorder %s16, 1
    %p107 = por %p105, %p106
    %p108 = scmp.ne.s32.totalorder %s97, %s98
    %p109 = scmp.eq.s32.totalorder %s16, 0
    %p110 = por %p108, %p109
    %p111 = scmp.ne.s32.totalorder %s97, %s98
    %p112 = scmp.eq.s32.totalorder %s17, 1
    %p113 = por %p111, %p112
    %p115 = scmp.ne.s32.totalorder %s98, %s114
    %p116 = scmp.eq.s32.totalorder %s17, 0
    %p117 = por %p115, %p116
    %s118 = ssub.s32 %s11, %s18
    %p119 = scmp.eq.s32.totalorder %s118, 0
    %s121 = sadd.s32 %s120, 1
    %s122 = scalar_select %p119, %s120, %s121
    %p125 = pneg %p119
    %p126 = scmp.eq.s32.totalorder %s11, 1
    %p127 = por %p125, %p126
    %p128 = scmp.ne.s32.totalorder %s120, %s123
    %p129 = scmp.eq.s32.totalorder %s11, 0
    %p130 = por %p128, %p129
    %p131 = scmp.ne.s32.totalorder %s120, %s123
    %p132 = scmp.eq.s32.totalorder %s16, 1
    %p133 = por %p131, %p132
    %p134 = scmp.ne.s32.totalorder %s123, %s124
    %p135 = scmp.eq.s32.totalorder %s16, 0
    %p136 = por %p134, %p135
    %p137 = scmp.ne.s32.totalorder %s123, %s124
    %p138 = scmp.eq.s32.totalorder %s17, 1
    %p139 = por %p137, %p138
    %p141 = scmp.ne.s32.totalorder %s124, %s140
    %p142 = scmp.eq.s32.totalorder %s17, 0
    %p143 = por %p141, %p142
    %p144 = scmp.le.s32.totalorder 1, %s11
    %p145 = scmp.lt.s32.totalorder %s11, 3
    %p146 = pnand %p144, %p145
    %p147 = pneg %p146
    // Predicated region
    $region9: #{discriminator1_forward.5} parent=5 // pred_check
      _
    $region10: #{discriminator1_forward.5} parent=5 // pred_check_branch
      %149 = sbr.rel (%p146) target = $region12
    $region11: #{discriminator1_forward.5} parent=5 // pred_region
      %s150 = ssub.s32 %s11, 1
      // Predicated region
      $region13: #{discriminator1_forward.5} parent=11 // pred_check
        %p151 = pneg %p58
      $region14: #{discriminator1_forward.5} parent=11 // pred_check_branch
        %153 = sbr.rel (%p151) target = $region16
      $region15: #{discriminator1_forward.5} parent=11 // pred_region
        _
      $region16: #{discriminator1_forward.5} parent=11 // pred_fallthru
        _
    $region12: #{discriminator1_forward.5} parent=5 // pred_fallthru
      _
    %p154 = scmp.lt.s32.totalorder %s11, 2
    // Predicated region
    $region17: #{discriminator1_forward.5} parent=5 // pred_check
      %p155 = pneg %p154
    $region18: #{discriminator1_forward.5} parent=5 // pred_check_branch
      %157 = sbr.rel (%p155) target = $region20
    $region19: #{discriminator1_forward.5} parent=5 // pred_region
      // Predicated region
      $region21: #{discriminator1_forward.5} parent=19 // pred_check
        %p158 = pneg %p31
      $region22: #{discriminator1_forward.5} parent=19 // pred_check_branch
        %160 = sbr.rel (%p158) target = $region24
      $region23: #{discriminator1_forward.5} parent=19 // pred_region
        %s161 = smul.u32 2, %s11
        %p162 = scmp.lt.s32.totalorder %s161, 3
        %s163 = scalar_select %p162, %s161, 3
        %s164 = smul.addr %s163, 16
        %s165 = smul.addr %s164, 4
        %s166 = scalar_lea.vmem %s0, %s165
        %s167 = smul.u32 2, %s11
      $region24: #{discriminator1_forward.5} parent=19 // pred_fallthru
        _
    $region20: #{discriminator1_forward.5} parent=5 // pred_fallthru
      _
    %p168 = scmp.le.s32.totalorder 1, %s11
    %p169 = scmp.lt.s32.totalorder %s11, 3
    %p170 = pnand %p168, %p169
    %p171 = pneg %p170
    // Predicated region
    $region25: #{discriminator1_forward.5} parent=5 // pred_check
      _
    $region26: #{discriminator1_forward.5} parent=5 // pred_check_branch
      %173 = sbr.rel (%p170) target = $region28
    $region27: #{discriminator1_forward.5} parent=5 // pred_region
      %s174 = ssub.s32 %s11, 1
      %s175 = smul.u32 2, %s16
      %p176 = scmp.lt.s32.totalorder %s175, 3
      %s177 = scalar_select %p176, %s175, 3
      %s178 = smul.addr %s177, 16
      %s179 = smul.addr %s178, 4
      %s180 = scalar_lea.vmem %s0, %s179
      %p181 = pneg %p37
      %p182 = pneg %p34
      %p183 = pneg %p58
      %p184 = pneg %p55
      %p185 = pneg %p84
      %p186 = pneg %p81
      %s187 = smul.u32 2, %s16
      %p188 = scmp.lt.s32.totalorder %s187, 3
      %s189 = scalar_select %p188, %s187, 3
      %s190 = smul.addr %s189, 4
      %s191 = scalar_lea.vmem %s2, %s190
      %p192 = pneg %p110
      %p193 = pneg %p107
      %p194 = scmp.lt.s32.totalorder %s16, 1
      %s195 = scalar_select %p194, %s16, 1
      %s196 = scalar_lea.vmem %s3, %s195
      %p197 = pneg %p136
      %p198 = pneg %p133
      %p199 = scmp.lt.s32.totalorder %s16, 1
      %s200 = scalar_select %p199, %s16, 1
      %s201 = scalar_lea.vmem %s4, %s200
      %s202 = smul.u32 2, %s16
      %p203 = scmp.lt.s32.totalorder %s202, 3
      %s204 = scalar_select %p203, %s202, 3
      %s205 = smul.addr %s204, 16
      %s206 = smul.addr %s205, 4
      %s207 = scalar_lea.vmem %s0, %s206
      %s208 = smul.u32 2, %s16
      %s209 = smul.u32 2, %s16
      %p210 = scmp.lt.s32.totalorder %s209, 3
      %s211 = scalar_select %p210, %s209, 3
      %s212 = smul.addr %s211, 4
      %s213 = scalar_lea.vmem %s2, %s212
      %s214 = smul.u32 2, %s16
      %p215 = scmp.lt.s32.totalorder %s16, 1
      %s216 = scalar_select %p215, %s16, 1
      %s217 = scalar_lea.vmem %s3, %s216
      %p218 = scmp.lt.s32.totalorder %s16, 1
      %s219 = scalar_select %p218, %s16, 1
      %s220 = scalar_lea.vmem %s4, %s219
      %v222 = vld [vmem:[%s207] sm:$0xff]
      %v223 = vld [vmem:[%s207 + $0x8] sm:$0xff]
      %v224 = vld [vmem:[%s207 + $0x10] sm:$0xff]
      %v225 = vld [vmem:[%s207 + $0x18] sm:$0xff]
      %v226 = vld [vmem:[%s207 + $0x20] sm:$0xff]
      %v227 = vld [vmem:[%s207 + $0x28] sm:$0xff]
      %v228 = vld [vmem:[%s207 + $0x30] sm:$0xff]
      %v229 = vld [vmem:[%s207 + $0x38] sm:$0xff]
      %v230 = vld [vmem:[%s207 + $0x40] sm:$0xff]
      %v231 = vld [vmem:[%s207 + $0x48] sm:$0xff]
      %v232 = vld [vmem:[%s207 + $0x50] sm:$0xff]
      %v233 = vld [vmem:[%s207 + $0x58] sm:$0xff]
      %v234 = vld [vmem:[%s207 + $0x60] sm:$0xff]
      %v235 = vld [vmem:[%s207 + $0x68] sm:$0xff]
      %v236 = vld [vmem:[%s207 + $0x70] sm:$0xff]
      %v237 = vld [vmem:[%s207 + $0x78] sm:$0xff]
      %v238 = vld [vmem:[%s1] sm:$0xf]
      %v239 = vld [vmem:[%s1 + $0x4] sm:$0xf]
      %v240 = vld [vmem:[%s1 + $0x8] sm:$0xf]
      %v241 = vld [vmem:[%s1 + $0xc] sm:$0xf]
      %v242 = vld [vmem:[%s1 + $0x10] sm:$0xf]
      %v243 = vld [vmem:[%s1 + $0x14] sm:$0xf]
      %v244 = vld [vmem:[%s1 + $0x18] sm:$0xf]
      %v245 = vld [vmem:[%s1 + $0x1c] sm:$0xf]
      %v246 = vld [vmem:[%s1 + $0x20] sm:$0xf]
      %v247 = vld [vmem:[%s1 + $0x24] sm:$0xf]
      %v248 = vld [vmem:[%s1 + $0x28] sm:$0xf]
      %v249 = vld [vmem:[%s1 + $0x2c] sm:$0xf]
      %v250 = vld [vmem:[%s1 + $0x30] sm:$0xf]
      %v251 = vld [vmem:[%s1 + $0x34] sm:$0xf]
      %v252 = vld [vmem:[%s1 + $0x38] sm:$0xf]
      %v253 = vld [vmem:[%s1 + $0x3c] sm:$0xf]
      %v254 = vld [vmem:[%s1 + $0x40] sm:$0xf]
      %v255 = vld [vmem:[%s1 + $0x44] sm:$0xf]
      %v256 = vld [vmem:[%s1 + $0x48] sm:$0xf]
      %v257 = vld [vmem:[%s1 + $0x4c] sm:$0xf]
      %v258 = vld [vmem:[%s1 + $0x50] sm:$0xf]
      %v259 = vld [vmem:[%s1 + $0x54] sm:$0xf]
      %v260 = vld [vmem:[%s1 + $0x58] sm:$0xf]
      %v261 = vld [vmem:[%s1 + $0x5c] sm:$0xf]
      %v262 = vld [vmem:[%s1 + $0x60] sm:$0xf]
      %v263 = vld [vmem:[%s1 + $0x64] sm:$0xf]
      %v264 = vld [vmem:[%s1 + $0x68] sm:$0xf]
      %v265 = vld [vmem:[%s1 + $0x6c] sm:$0xf]
      %v266 = vld [vmem:[%s1 + $0x70] sm:$0xf]
      %v267 = vld [vmem:[%s1 + $0x74] sm:$0xf]
      %v268 = vld [vmem:[%s1 + $0x78] sm:$0xf]
      %v269 = vld [vmem:[%s1 + $0x7c] sm:$0xf]
      %v270 = vld [vmem:[%s1 + $0x80] sm:$0xf]
      %v271 = vld [vmem:[%s1 + $0x84] sm:$0xf]
      %v272 = vld [vmem:[%s1 + $0x88] sm:$0xf]
      %v273 = vld [vmem:[%s1 + $0x8c] sm:$0xf]
      %v274 = vld [vmem:[%s1 + $0x90] sm:$0xf]
      %v275 = vld [vmem:[%s1 + $0x94] sm:$0xf]
      %v276 = vld [vmem:[%s1 + $0x98] sm:$0xf]
      %v277 = vld [vmem:[%s1 + $0x9c] sm:$0xf]
      %v278 = vld [vmem:[%s1 + $0xa0] sm:$0xf]
      %v279 = vld [vmem:[%s1 + $0xa4] sm:$0xf]
      %v280 = vld [vmem:[%s1 + $0xa8] sm:$0xf]
      %v281 = vld [vmem:[%s1 + $0xac] sm:$0xf]
      %v282 = vld [vmem:[%s1 + $0xb0] sm:$0xf]
      %v283 = vld [vmem:[%s1 + $0xb4] sm:$0xf]
      %v284 = vld [vmem:[%s1 + $0xb8] sm:$0xf]
      %v285 = vld [vmem:[%s1 + $0xbc] sm:$0xf]
      %v286 = vld [vmem:[%s1 + $0xc0] sm:$0xf]
      %v287 = vld [vmem:[%s1 + $0xc4] sm:$0xf]
      %v288 = vld [vmem:[%s1 + $0xc8] sm:$0xf]
      %v289 = vld [vmem:[%s1 + $0xcc] sm:$0xf]
      %v290 = vld [vmem:[%s1 + $0xd0] sm:$0xf]
      %v291 = vld [vmem:[%s1 + $0xd4] sm:$0xf]
      %v292 = vld [vmem:[%s1 + $0xd8] sm:$0xf]
      %v293 = vld [vmem:[%s1 + $0xdc] sm:$0xf]
      %v294 = vld [vmem:[%s1 + $0xe0] sm:$0xf]
      %v295 = vld [vmem:[%s1 + $0xe4] sm:$0xf]
      %v296 = vld [vmem:[%s1 + $0xe8] sm:$0xf]
      %v297 = vld [vmem:[%s1 + $0xec] sm:$0xf]
      %v298 = vld [vmem:[%s1 + $0xf0] sm:$0xf]
      %v299 = vld [vmem:[%s1 + $0xf4] sm:$0xf]
      %v300 = vld [vmem:[%s1 + $0xf8] sm:$0xf]
      %v301 = vld [vmem:[%s1 + $0xfc] sm:$0xf]
      %v302 = vld [vmem:[%s1 + $0x100] sm:$0xf]
      %v303 = vld [vmem:[%s1 + $0x104] sm:$0xf]
      %v304 = vld [vmem:[%s1 + $0x108] sm:$0xf]
      %v305 = vld [vmem:[%s1 + $0x10c] sm:$0xf]
      %v306 = vld [vmem:[%s1 + $0x110] sm:$0xf]
      %v307 = vld [vmem:[%s1 + $0x114] sm:$0xf]
      %v308 = vld [vmem:[%s1 + $0x118] sm:$0xf]
      %v309 = vld [vmem:[%s1 + $0x11c] sm:$0xf]
      %v310 = vld [vmem:[%s1 + $0x120] sm:$0xf]
      %v311 = vld [vmem:[%s1 + $0x124] sm:$0xf]
      %v312 = vld [vmem:[%s1 + $0x128] sm:$0xf]
      %v313 = vld [vmem:[%s1 + $0x12c] sm:$0xf]
      %v314 = vld [vmem:[%s1 + $0x130] sm:$0xf]
      %v315 = vld [vmem:[%s1 + $0x134] sm:$0xf]
      %v316 = vld [vmem:[%s1 + $0x138] sm:$0xf]
      %v317 = vld [vmem:[%s1 + $0x13c] sm:$0xf]
      %v318 = vld [vmem:[%s1 + $0x140] sm:$0xf]
      %v319 = vld [vmem:[%s1 + $0x144] sm:$0xf]
      %v320 = vld [vmem:[%s1 + $0x148] sm:$0xf]
      %v321 = vld [vmem:[%s1 + $0x14c] sm:$0xf]
      %v322 = vld [vmem:[%s1 + $0x150] sm:$0xf]
      %v323 = vld [vmem:[%s1 + $0x154] sm:$0xf]
      %v324 = vld [vmem:[%s1 + $0x158] sm:$0xf]
      %v325 = vld [vmem:[%s1 + $0x15c] sm:$0xf]
      %v326 = vld [vmem:[%s1 + $0x160] sm:$0xf]
      %v327 = vld [vmem:[%s1 + $0x164] sm:$0xf]
      %v328 = vld [vmem:[%s1 + $0x168] sm:$0xf]
      %v329 = vld [vmem:[%s1 + $0x16c] sm:$0xf]
      %v330 = vld [vmem:[%s1 + $0x170] sm:$0xf]
      %v331 = vld [vmem:[%s1 + $0x174] sm:$0xf]
      %v332 = vld [vmem:[%s1 + $0x178] sm:$0xf]
      %v333 = vld [vmem:[%s1 + $0x17c] sm:$0xf]
      %v334 = vld [vmem:[%s1 + $0x180] sm:$0xf]
      %v335 = vld [vmem:[%s1 + $0x184] sm:$0xf]
      %v336 = vld [vmem:[%s1 + $0x188] sm:$0xf]
      %v337 = vld [vmem:[%s1 + $0x18c] sm:$0xf]
      %v338 = vld [vmem:[%s1 + $0x190] sm:$0xf]
      %v339 = vld [vmem:[%s1 + $0x194] sm:$0xf]
      %v340 = vld [vmem:[%s1 + $0x198] sm:$0xf]
      %v341 = vld [vmem:[%s1 + $0x19c] sm:$0xf]
      %v342 = vld [vmem:[%s1 + $0x1a0] sm:$0xf]
      %v343 = vld [vmem:[%s1 + $0x1a4] sm:$0xf]
      %v344 = vld [vmem:[%s1 + $0x1a8] sm:$0xf]
      %v345 = vld [vmem:[%s1 + $0x1ac] sm:$0xf]
      %v346 = vld [vmem:[%s1 + $0x1b0] sm:$0xf]
      %v347 = vld [vmem:[%s1 + $0x1b4] sm:$0xf]
      %v348 = vld [vmem:[%s1 + $0x1b8] sm:$0xf]
      %v349 = vld [vmem:[%s1 + $0x1bc] sm:$0xf]
      %v350 = vld [vmem:[%s1 + $0x1c0] sm:$0xf]
      %v351 = vld [vmem:[%s1 + $0x1c4] sm:$0xf]
      %v352 = vld [vmem:[%s1 + $0x1c8] sm:$0xf]
      %v353 = vld [vmem:[%s1 + $0x1cc] sm:$0xf]
      %v354 = vld [vmem:[%s1 + $0x1d0] sm:$0xf]
      %v355 = vld [vmem:[%s1 + $0x1d4] sm:$0xf]
      %v356 = vld [vmem:[%s1 + $0x1d8] sm:$0xf]
      %v357 = vld [vmem:[%s1 + $0x1dc] sm:$0xf]
      %v358 = vld [vmem:[%s1 + $0x1e0] sm:$0xf]
      %v359 = vld [vmem:[%s1 + $0x1e4] sm:$0xf]
      %v360 = vld [vmem:[%s1 + $0x1e8] sm:$0xf]
      %v361 = vld [vmem:[%s1 + $0x1ec] sm:$0xf]
      %v362 = vld [vmem:[%s1 + $0x1f0] sm:$0xf]
      %v363 = vld [vmem:[%s1 + $0x1f4] sm:$0xf]
      %v364 = vld [vmem:[%s1 + $0x1f8] sm:$0xf]
      %v365 = vld [vmem:[%s1 + $0x1fc] sm:$0xf]
      %v366 = vld [vmem:[%s1 + $0x200] sm:$0xf]
      %v367 = vld [vmem:[%s1 + $0x204] sm:$0xf]
      %v368 = vld [vmem:[%s1 + $0x208] sm:$0xf]
      %v369 = vld [vmem:[%s1 + $0x20c] sm:$0xf]
      %v370 = vld [vmem:[%s1 + $0x210] sm:$0xf]
      %v371 = vld [vmem:[%s1 + $0x214] sm:$0xf]
      %v372 = vld [vmem:[%s1 + $0x218] sm:$0xf]
      %v373 = vld [vmem:[%s1 + $0x21c] sm:$0xf]
      %v374 = vld [vmem:[%s1 + $0x220] sm:$0xf]
      %v375 = vld [vmem:[%s1 + $0x224] sm:$0xf]
      %v376 = vld [vmem:[%s1 + $0x228] sm:$0xf]
      %v377 = vld [vmem:[%s1 + $0x22c] sm:$0xf]
      %v378 = vld [vmem:[%s1 + $0x230] sm:$0xf]
      %v379 = vld [vmem:[%s1 + $0x234] sm:$0xf]
      %v380 = vld [vmem:[%s1 + $0x238] sm:$0xf]
      %v381 = vld [vmem:[%s1 + $0x23c] sm:$0xf]
      %v382 = vld [vmem:[%s1 + $0x240] sm:$0xf]
      %v383 = vld [vmem:[%s1 + $0x244] sm:$0xf]
      %v384 = vld [vmem:[%s1 + $0x248] sm:$0xf]
      %v385 = vld [vmem:[%s1 + $0x24c] sm:$0xf]
      %v386 = vld [vmem:[%s1 + $0x250] sm:$0xf]
      %v387 = vld [vmem:[%s1 + $0x254] sm:$0xf]
      %v388 = vld [vmem:[%s1 + $0x258] sm:$0xf]
      %v389 = vld [vmem:[%s1 + $0x25c] sm:$0xf]
      %v390 = vld [vmem:[%s1 + $0x260] sm:$0xf]
      %v391 = vld [vmem:[%s1 + $0x264] sm:$0xf]
      %v392 = vld [vmem:[%s1 + $0x268] sm:$0xf]
      %v393 = vld [vmem:[%s1 + $0x26c] sm:$0xf]
      %v394 = vld [vmem:[%s1 + $0x270] sm:$0xf]
      %v395 = vld [vmem:[%s1 + $0x274] sm:$0xf]
      %v396 = vld [vmem:[%s1 + $0x278] sm:$0xf]
      %v397 = vld [vmem:[%s1 + $0x27c] sm:$0xf]
      %v398 = vld [vmem:[%s1 + $0x280] sm:$0xf]
      %v399 = vld [vmem:[%s1 + $0x284] sm:$0xf]
      %v400 = vld [vmem:[%s1 + $0x288] sm:$0xf]
      %v401 = vld [vmem:[%s1 + $0x28c] sm:$0xf]
      %v402 = vld [vmem:[%s1 + $0x290] sm:$0xf]
      %v403 = vld [vmem:[%s1 + $0x294] sm:$0xf]
      %v404 = vld [vmem:[%s1 + $0x298] sm:$0xf]
      %v405 = vld [vmem:[%s1 + $0x29c] sm:$0xf]
      %v406 = vld [vmem:[%s1 + $0x2a0] sm:$0xf]
      %v407 = vld [vmem:[%s1 + $0x2a4] sm:$0xf]
      %v408 = vld [vmem:[%s1 + $0x2a8] sm:$0xf]
      %v409 = vld [vmem:[%s1 + $0x2ac] sm:$0xf]
      %v410 = vld [vmem:[%s1 + $0x2b0] sm:$0xf]
      %v411 = vld [vmem:[%s1 + $0x2b4] sm:$0xf]
      %v412 = vld [vmem:[%s1 + $0x2b8] sm:$0xf]
      %v413 = vld [vmem:[%s1 + $0x2bc] sm:$0xf]
      %v414 = vld [vmem:[%s1 + $0x2c0] sm:$0xf]
      %v415 = vld [vmem:[%s1 + $0x2c4] sm:$0xf]
      %v416 = vld [vmem:[%s1 + $0x2c8] sm:$0xf]
      %v417 = vld [vmem:[%s1 + $0x2cc] sm:$0xf]
      %v418 = vld [vmem:[%s1 + $0x2d0] sm:$0xf]
      %v419 = vld [vmem:[%s1 + $0x2d4] sm:$0xf]
      %v420 = vld [vmem:[%s1 + $0x2d8] sm:$0xf]
      %v421 = vld [vmem:[%s1 + $0x2dc] sm:$0xf]
      %v422 = vld [vmem:[%s1 + $0x2e0] sm:$0xf]
      %v423 = vld [vmem:[%s1 + $0x2e4] sm:$0xf]
      %v424 = vld [vmem:[%s1 + $0x2e8] sm:$0xf]
      %v425 = vld [vmem:[%s1 + $0x2ec] sm:$0xf]
      %v426 = vld [vmem:[%s1 + $0x2f0] sm:$0xf]
      %v427 = vld [vmem:[%s1 + $0x2f4] sm:$0xf]
      %v428 = vld [vmem:[%s1 + $0x2f8] sm:$0xf]
      %v429 = vld [vmem:[%s1 + $0x2fc] sm:$0xf]
      %v430 = vld [vmem:[%s1 + $0x300] sm:$0xf]
      %v431 = vld [vmem:[%s1 + $0x304] sm:$0xf]
      %v432 = vld [vmem:[%s1 + $0x308] sm:$0xf]
      %v433 = vld [vmem:[%s1 + $0x30c] sm:$0xf]
      %v434 = vld [vmem:[%s1 + $0x310] sm:$0xf]
      %v435 = vld [vmem:[%s1 + $0x314] sm:$0xf]
      %v436 = vld [vmem:[%s1 + $0x318] sm:$0xf]
      %v437 = vld [vmem:[%s1 + $0x31c] sm:$0xf]
      %v438 = vld [vmem:[%s1 + $0x320] sm:$0xf]
      %v439 = vld [vmem:[%s1 + $0x324] sm:$0xf]
      %v440 = vld [vmem:[%s1 + $0x328] sm:$0xf]
      %v441 = vld [vmem:[%s1 + $0x32c] sm:$0xf]
      %v442 = vld [vmem:[%s1 + $0x330] sm:$0xf]
      %v443 = vld [vmem:[%s1 + $0x334] sm:$0xf]
      %v444 = vld [vmem:[%s1 + $0x338] sm:$0xf]
      %v445 = vld [vmem:[%s1 + $0x33c] sm:$0xf]
      %v446 = vld [vmem:[%s1 + $0x340] sm:$0xf]
      %v447 = vld [vmem:[%s1 + $0x344] sm:$0xf]
      %v448 = vld [vmem:[%s1 + $0x348] sm:$0xf]
      %v449 = vld [vmem:[%s1 + $0x34c] sm:$0xf]
      %v450 = vld [vmem:[%s1 + $0x350] sm:$0xf]
      %v451 = vld [vmem:[%s1 + $0x354] sm:$0xf]
      %v452 = vld [vmem:[%s1 + $0x358] sm:$0xf]
      %v453 = vld [vmem:[%s1 + $0x35c] sm:$0xf]
      %v454 = vld [vmem:[%s1 + $0x360] sm:$0xf]
      %v455 = vld [vmem:[%s1 + $0x364] sm:$0xf]
      %v456 = vld [vmem:[%s1 + $0x368] sm:$0xf]
      %v457 = vld [vmem:[%s1 + $0x36c] sm:$0xf]
      %v458 = vld [vmem:[%s1 + $0x370] sm:$0xf]
      %v459 = vld [vmem:[%s1 + $0x374] sm:$0xf]
      %v460 = vld [vmem:[%s1 + $0x378] sm:$0xf]
      %v461 = vld [vmem:[%s1 + $0x37c] sm:$0xf]
      %v462 = vld [vmem:[%s1 + $0x380] sm:$0xf]
      %v463 = vld [vmem:[%s1 + $0x384] sm:$0xf]
      %v464 = vld [vmem:[%s1 + $0x388] sm:$0xf]
      %v465 = vld [vmem:[%s1 + $0x38c] sm:$0xf]
      %v466 = vld [vmem:[%s1 + $0x390] sm:$0xf]
      %v467 = vld [vmem:[%s1 + $0x394] sm:$0xf]
      %v468 = vld [vmem:[%s1 + $0x398] sm:$0xf]
      %v469 = vld [vmem:[%s1 + $0x39c] sm:$0xf]
      %v470 = vld [vmem:[%s1 + $0x3a0] sm:$0xf]
      %v471 = vld [vmem:[%s1 + $0x3a4] sm:$0xf]
      %v472 = vld [vmem:[%s1 + $0x3a8] sm:$0xf]
      %v473 = vld [vmem:[%s1 + $0x3ac] sm:$0xf]
      %v474 = vld [vmem:[%s1 + $0x3b0] sm:$0xf]
      %v475 = vld [vmem:[%s1 + $0x3b4] sm:$0xf]
      %v476 = vld [vmem:[%s1 + $0x3b8] sm:$0xf]
      %v477 = vld [vmem:[%s1 + $0x3bc] sm:$0xf]
      %v478 = vld [vmem:[%s1 + $0x3c0] sm:$0xf]
      %v479 = vld [vmem:[%s1 + $0x3c4] sm:$0xf]
      %v480 = vld [vmem:[%s1 + $0x3c8] sm:$0xf]
      %v481 = vld [vmem:[%s1 + $0x3cc] sm:$0xf]
      %v482 = vld [vmem:[%s1 + $0x3d0] sm:$0xf]
      %v483 = vld [vmem:[%s1 + $0x3d4] sm:$0xf]
      %v484 = vld [vmem:[%s1 + $0x3d8] sm:$0xf]
      %v485 = vld [vmem:[%s1 + $0x3dc] sm:$0xf]
      %v486 = vld [vmem:[%s1 + $0x3e0] sm:$0xf]
      %v487 = vld [vmem:[%s1 + $0x3e4] sm:$0xf]
      %v488 = vld [vmem:[%s1 + $0x3e8] sm:$0xf]
      %v489 = vld [vmem:[%s1 + $0x3ec] sm:$0xf]
      %v490 = vld [vmem:[%s1 + $0x3f0] sm:$0xf]
      %v491 = vld [vmem:[%s1 + $0x3f4] sm:$0xf]
      %v492 = vld [vmem:[%s1 + $0x3f8] sm:$0xf]
      %v493 = vld [vmem:[%s1 + $0x3fc] sm:$0xf]
      %v510 = vunpack.c.l.b16 %v222
      %v511 = vunpack.c.h.b16 %v222
      %v512 = vunpack.c.l.b16 %v223
      %v513 = vunpack.c.h.b16 %v223
      %v514 = vunpack.c.l.b16 %v224
      %v515 = vunpack.c.h.b16 %v224
      %v516 = vunpack.c.l.b16 %v225
      %v517 = vunpack.c.h.b16 %v225
      %v518 = vunpack.c.l.b16 %v226
      %v519 = vunpack.c.h.b16 %v226
      %v520 = vunpack.c.l.b16 %v227
      %v521 = vunpack.c.h.b16 %v227
      %v522 = vunpack.c.l.b16 %v228
      %v523 = vunpack.c.h.b16 %v228
      %v524 = vunpack.c.l.b16 %v229
      %v525 = vunpack.c.h.b16 %v229
      %v526 = vunpack.c.l.b16 %v230
      %v527 = vunpack.c.h.b16 %v230
      %v528 = vunpack.c.l.b16 %v231
      %v529 = vunpack.c.h.b16 %v231
      %v530 = vunpack.c.l.b16 %v232
      %v531 = vunpack.c.h.b16 %v232
      %v532 = vunpack.c.l.b16 %v233
      %v533 = vunpack.c.h.b16 %v233
      %v534 = vunpack.c.l.b16 %v234
      %v535 = vunpack.c.h.b16 %v234
      %v536 = vunpack.c.l.b16 %v235
      %v537 = vunpack.c.h.b16 %v235
      %v538 = vunpack.c.l.b16 %v236
      %v539 = vunpack.c.h.b16 %v236
      %v540 = vunpack.c.l.b16 %v237
      %v541 = vunpack.c.h.b16 %v237
      %v542 = vpack.c.b16 %v526, %v510
      %v543 = vpack.c.b16 %v527, %v511
      %v544 = vpack.c.b16 %v528, %v512
      %v545 = vpack.c.b16 %v529, %v513
      %v546 = vpack.c.b16 %v530, %v514
      %v547 = vpack.c.b16 %v531, %v515
      %v548 = vpack.c.b16 %v532, %v516
      %v549 = vpack.c.b16 %v533, %v517
      %v550 = vpack.c.b16 %v534, %v518
      %v551 = vpack.c.b16 %v535, %v519
      %v552 = vpack.c.b16 %v536, %v520
      %v553 = vpack.c.b16 %v537, %v521
      %v554 = vpack.c.b16 %v538, %v522
      %v555 = vpack.c.b16 %v539, %v523
      %v556 = vpack.c.b16 %v540, %v524
      %v557 = vpack.c.b16 %v541, %v525
      %v830 = vunpack.c.l.b16 %v238
      %v831 = vunpack.c.l.b16 %v239
      %v832 = vunpack.c.l.b16 %v240
      %v833 = vunpack.c.l.b16 %v241
      %v834 = vunpack.c.l.b16 %v242
      %v835 = vunpack.c.l.b16 %v243
      %v836 = vunpack.c.l.b16 %v244
      %v837 = vunpack.c.l.b16 %v245
      %v838 = vunpack.c.l.b16 %v246
      %v839 = vunpack.c.l.b16 %v247
      %v840 = vunpack.c.l.b16 %v248
      %v841 = vunpack.c.l.b16 %v249
      %v842 = vunpack.c.l.b16 %v250
      %v843 = vunpack.c.l.b16 %v251
      %v844 = vunpack.c.l.b16 %v252
      %v845 = vunpack.c.l.b16 %v253
      %v846 = vunpack.c.l.b16 %v254
      %v847 = vunpack.c.l.b16 %v255
      %v848 = vunpack.c.l.b16 %v256
      %v849 = vunpack.c.l.b16 %v257
      %v850 = vunpack.c.l.b16 %v258
      %v851 = vunpack.c.l.b16 %v259
      %v852 = vunpack.c.l.b16 %v260
      %v853 = vunpack.c.l.b16 %v261
      %v854 = vunpack.c.l.b16 %v262
      %v855 = vunpack.c.l.b16 %v263
      %v856 = vunpack.c.l.b16 %v264
      %v857 = vunpack.c.l.b16 %v265
      %v858 = vunpack.c.l.b16 %v266
      %v859 = vunpack.c.l.b16 %v267
      %v860 = vunpack.c.l.b16 %v268
      %v861 = vunpack.c.l.b16 %v269
      %v862 = vunpack.c.l.b16 %v270
      %v863 = vunpack.c.l.b16 %v271
      %v864 = vunpack.c.l.b16 %v272
      %v865 = vunpack.c.l.b16 %v273
      %v866 = vunpack.c.l.b16 %v274
      %v867 = vunpack.c.l.b16 %v275
      %v868 = vunpack.c.l.b16 %v276
      %v869 = vunpack.c.l.b16 %v277
      %v870 = vunpack.c.l.b16 %v278
      %v871 = vunpack.c.l.b16 %v279
      %v872 = vunpack.c.l.b16 %v280
      %v873 = vunpack.c.l.b16 %v281
      %v874 = vunpack.c.l.b16 %v282
      %v875 = vunpack.c.l.b16 %v283
      %v876 = vunpack.c.l.b16 %v284
      %v877 = vunpack.c.l.b16 %v285
      %v878 = vunpack.c.l.b16 %v286
      %v879 = vunpack.c.l.b16 %v287
      %v880 = vunpack.c.l.b16 %v288
      %v881 = vunpack.c.l.b16 %v289
      %v882 = vunpack.c.l.b16 %v290
      %v883 = vunpack.c.l.b16 %v291
      %v884 = vunpack.c.l.b16 %v292
      %v885 = vunpack.c.l.b16 %v293
      %v886 = vunpack.c.l.b16 %v294
      %v887 = vunpack.c.l.b16 %v295
      %v888 = vunpack.c.l.b16 %v296
      %v889 = vunpack.c.l.b16 %v297
      %v890 = vunpack.c.l.b16 %v298
      %v891 = vunpack.c.l.b16 %v299
      %v892 = vunpack.c.l.b16 %v300
      %v893 = vunpack.c.l.b16 %v301
      %v894 = vunpack.c.l.b16 %v302
      %v895 = vunpack.c.l.b16 %v303
      %v896 = vunpack.c.l.b16 %v304
      %v897 = vunpack.c.l.b16 %v305
      %v898 = vunpack.c.l.b16 %v306
      %v899 = vunpack.c.l.b16 %v307
      %v900 = vunpack.c.l.b16 %v308
      %v901 = vunpack.c.l.b16 %v309
      %v902 = vunpack.c.l.b16 %v310
      %v903 = vunpack.c.l.b16 %v311
      %v904 = vunpack.c.l.b16 %v312
      %v905 = vunpack.c.l.b16 %v313
      %v906 = vunpack.c.l.b16 %v314
      %v907 = vunpack.c.l.b16 %v315
      %v908 = vunpack.c.l.b16 %v316
      %v909 = vunpack.c.l.b16 %v317
      %v910 = vunpack.c.l.b16 %v318
      %v911 = vunpack.c.l.b16 %v319
      %v912 = vunpack.c.l.b16 %v320
      %v913 = vunpack.c.l.b16 %v321
      %v914 = vunpack.c.l.b16 %v322
      %v915 = vunpack.c.l.b16 %v323
      %v916 = vunpack.c.l.b16 %v324
      %v917 = vunpack.c.l.b16 %v325
      %v918 = vunpack.c.l.b16 %v326
      %v919 = vunpack.c.l.b16 %v327
      %v920 = vunpack.c.l.b16 %v328
      %v921 = vunpack.c.l.b16 %v329
      %v922 = vunpack.c.l.b16 %v330
      %v923 = vunpack.c.l.b16 %v331
      %v924 = vunpack.c.l.b16 %v332
      %v925 = vunpack.c.l.b16 %v333
      %v926 = vunpack.c.l.b16 %v334
      %v927 = vunpack.c.l.b16 %v335
      %v928 = vunpack.c.l.b16 %v336
      %v929 = vunpack.c.l.b16 %v337
      %v930 = vunpack.c.l.b16 %v338
      %v931 = vunpack.c.l.b16 %v339
      %v932 = vunpack.c.l.b16 %v340
      %v933 = vunpack.c.l.b16 %v341
      %v934 = vunpack.c.l.b16 %v342
      %v935 = vunpack.c.l.b16 %v343
      %v936 = vunpack.c.l.b16 %v344
      %v937 = vunpack.c.l.b16 %v345
      %v938 = vunpack.c.l.b16 %v346
      %v939 = vunpack.c.l.b16 %v347
      %v940 = vunpack.c.l.b16 %v348
      %v941 = vunpack.c.l.b16 %v349
      %v942 = vunpack.c.l.b16 %v350
      %v943 = vunpack.c.l.b16 %v351
      %v944 = vunpack.c.l.b16 %v352
      %v945 = vunpack.c.l.b16 %v353
      %v946 = vunpack.c.l.b16 %v354
      %v947 = vunpack.c.l.b16 %v355
      %v948 = vunpack.c.l.b16 %v356
      %v949 = vunpack.c.l.b16 %v357
      %v950 = vunpack.c.l.b16 %v358
      %v951 = vunpack.c.l.b16 %v359
      %v952 = vunpack.c.l.b16 %v360
      %v953 = vunpack.c.l.b16 %v361
      %v954 = vunpack.c.l.b16 %v362
      %v955 = vunpack.c.l.b16 %v363
      %v956 = vunpack.c.l.b16 %v364
      %v957 = vunpack.c.l.b16 %v365
      %v958 = vunpack.c.l.b16 %v366
      %v959 = vunpack.c.l.b16 %v367
      %v960 = vunpack.c.l.b16 %v368
      %v961 = vunpack.c.l.b16 %v369
      %v962 = vunpack.c.l.b16 %v370
      %v963 = vunpack.c.l.b16 %v371
      %v964 = vunpack.c.l.b16 %v372
      %v965 = vunpack.c.l.b16 %v373
      %v966 = vunpack.c.l.b16 %v374
      %v967 = vunpack.c.l.b16 %v375
      %v968 = vunpack.c.l.b16 %v376
      %v969 = vunpack.c.l.b16 %v377
      %v970 = vunpack.c.l.b16 %v378
      %v971 = vunpack.c.l.b16 %v379
      %v972 = vunpack.c.l.b16 %v380
      %v973 = vunpack.c.l.b16 %v381
      %v974 = vunpack.c.l.b16 %v382
      %v975 = vunpack.c.l.b16 %v383
      %v976 = vunpack.c.l.b16 %v384
      %v977 = vunpack.c.l.b16 %v385
      %v978 = vunpack.c.l.b16 %v386
      %v979 = vunpack.c.l.b16 %v387
      %v980 = vunpack.c.l.b16 %v388
      %v981 = vunpack.c.l.b16 %v389
      %v982 = vunpack.c.l.b16 %v390
      %v983 = vunpack.c.l.b16 %v391
      %v984 = vunpack.c.l.b16 %v392
      %v985 = vunpack.c.l.b16 %v393
      %v986 = vunpack.c.l.b16 %v394
      %v987 = vunpack.c.l.b16 %v395
      %v988 = vunpack.c.l.b16 %v396
      %v989 = vunpack.c.l.b16 %v397
      %v990 = vunpack.c.l.b16 %v398
      %v991 = vunpack.c.l.b16 %v399
      %v992 = vunpack.c.l.b16 %v400
      %v993 = vunpack.c.l.b16 %v401
      %v994 = vunpack.c.l.b16 %v402
      %v995 = vunpack.c.l.b16 %v403
      %v996 = vunpack.c.l.b16 %v404
      %v997 = vunpack.c.l.b16 %v405
      %v998 = vunpack.c.l.b16 %v406
      %v999 = vunpack.c.l.b16 %v407
      %v1000 = vunpack.c.l.b16 %v408
      %v1001 = vunpack.c.l.b16 %v409
      %v1002 = vunpack.c.l.b16 %v410
      %v1003 = vunpack.c.l.b16 %v411
      %v1004 = vunpack.c.l.b16 %v412
      %v1005 = vunpack.c.l.b16 %v413
      %v1006 = vunpack.c.l.b16 %v414
      %v1007 = vunpack.c.l.b16 %v415
      %v1008 = vunpack.c.l.b16 %v416
      %v1009 = vunpack.c.l.b16 %v417
      %v1010 = vunpack.c.l.b16 %v418
      %v1011 = vunpack.c.l.b16 %v419
      %v1012 = vunpack.c.l.b16 %v420
      %v1013 = vunpack.c.l.b16 %v421
      %v1014 = vunpack.c.l.b16 %v422
      %v1015 = vunpack.c.l.b16 %v423
      %v1016 = vunpack.c.l.b16 %v424
      %v1017 = vunpack.c.l.b16 %v425
      %v1018 = vunpack.c.l.b16 %v426
      %v1019 = vunpack.c.l.b16 %v427
      %v1020 = vunpack.c.l.b16 %v428
      %v1021 = vunpack.c.l.b16 %v429
      %v1022 = vunpack.c.l.b16 %v430
      %v1023 = vunpack.c.l.b16 %v431
      %v1024 = vunpack.c.l.b16 %v432
      %v1025 = vunpack.c.l.b16 %v433
      %v1026 = vunpack.c.l.b16 %v434
      %v1027 = vunpack.c.l.b16 %v435
      %v1028 = vunpack.c.l.b16 %v436
      %v1029 = vunpack.c.l.b16 %v437
      %v1030 = vunpack.c.l.b16 %v438
      %v1031 = vunpack.c.l.b16 %v439
      %v1032 = vunpack.c.l.b16 %v440
      %v1033 = vunpack.c.l.b16 %v441
      %v1034 = vunpack.c.l.b16 %v442
      %v1035 = vunpack.c.l.b16 %v443
      %v1036 = vunpack.c.l.b16 %v444
      %v1037 = vunpack.c.l.b16 %v445
      %v1038 = vunpack.c.l.b16 %v446
      %v1039 = vunpack.c.l.b16 %v447
      %v1040 = vunpack.c.l.b16 %v448
      %v1041 = vunpack.c.l.b16 %v449
      %v1042 = vunpack.c.l.b16 %v450
      %v1043 = vunpack.c.l.b16 %v451
      %v1044 = vunpack.c.l.b16 %v452
      %v1045 = vunpack.c.l.b16 %v453
      %v1046 = vunpack.c.l.b16 %v454
      %v1047 = vunpack.c.l.b16 %v455
      %v1048 = vunpack.c.l.b16 %v456
      %v1049 = vunpack.c.l.b16 %v457
      %v1050 = vunpack.c.l.b16 %v458
      %v1051 = vunpack.c.l.b16 %v459
      %v1052 = vunpack.c.l.b16 %v460
      %v1053 = vunpack.c.l.b16 %v461
      %v1054 = vunpack.c.l.b16 %v462
      %v1055 = vunpack.c.l.b16 %v463
      %v1056 = vunpack.c.l.b16 %v464
      %v1057 = vunpack.c.l.b16 %v465
      %v1058 = vunpack.c.l.b16 %v466
      %v1059 = vunpack.c.l.b16 %v467
      %v1060 = vunpack.c.l.b16 %v468
      %v1061 = vunpack.c.l.b16 %v469
      %v1062 = vunpack.c.l.b16 %v470
      %v1063 = vunpack.c.l.b16 %v471
      %v1064 = vunpack.c.l.b16 %v472
      %v1065 = vunpack.c.l.b16 %v473
      %v1066 = vunpack.c.l.b16 %v474
      %v1067 = vunpack.c.l.b16 %v475
      %v1068 = vunpack.c.l.b16 %v476
      %v1069 = vunpack.c.l.b16 %v477
      %v1070 = vunpack.c.l.b16 %v478
      %v1071 = vunpack.c.l.b16 %v479
      %v1072 = vunpack.c.l.b16 %v480
      %v1073 = vunpack.c.l.b16 %v481
      %v1074 = vunpack.c.l.b16 %v482
      %v1075 = vunpack.c.l.b16 %v483
      %v1076 = vunpack.c.l.b16 %v484
      %v1077 = vunpack.c.l.b16 %v485
      %v1078 = vunpack.c.l.b16 %v486
      %v1079 = vunpack.c.l.b16 %v487
      %v1080 = vunpack.c.l.b16 %v488
      %v1081 = vunpack.c.l.b16 %v489
      %v1082 = vunpack.c.l.b16 %v490
      %v1083 = vunpack.c.l.b16 %v491
      %v1084 = vunpack.c.l.b16 %v492
      %v1085 = vunpack.c.l.b16 %v493
      %v1086 = vpack.c.b16 %v831, %v830
      %v1087 = vpack.c.b16 %v833, %v832
      %v1088 = vpack.c.b16 %v835, %v834
      %v1089 = vpack.c.b16 %v837, %v836
      %v1090 = vpack.c.b16 %v839, %v838
      %v1091 = vpack.c.b16 %v841, %v840
      %v1092 = vpack.c.b16 %v843, %v842
      %v1093 = vpack.c.b16 %v845, %v844
      %v1094 = vpack.c.b16 %v847, %v846
      %v1095 = vpack.c.b16 %v849, %v848
      %v1096 = vpack.c.b16 %v851, %v850
      %v1097 = vpack.c.b16 %v853, %v852
      %v1098 = vpack.c.b16 %v855, %v854
      %v1099 = vpack.c.b16 %v857, %v856
      %v1100 = vpack.c.b16 %v859, %v858
      %v1101 = vpack.c.b16 %v861, %v860
      %v1102 = vpack.c.b16 %v863, %v862
      %v1103 = vpack.c.b16 %v865, %v864
      %v1104 = vpack.c.b16 %v867, %v866
      %v1105 = vpack.c.b16 %v869, %v868
      %v1106 = vpack.c.b16 %v871, %v870
      %v1107 = vpack.c.b16 %v873, %v872
      %v1108 = vpack.c.b16 %v875, %v874
      %v1109 = vpack.c.b16 %v877, %v876
      %v1110 = vpack.c.b16 %v879, %v878
      %v1111 = vpack.c.b16 %v881, %v880
      %v1112 = vpack.c.b16 %v883, %v882
      %v1113 = vpack.c.b16 %v885, %v884
      %v1114 = vpack.c.b16 %v887, %v886
      %v1115 = vpack.c.b16 %v889, %v888
      %v1116 = vpack.c.b16 %v891, %v890
      %v1117 = vpack.c.b16 %v893, %v892
      %v1118 = vpack.c.b16 %v895, %v894
      %v1119 = vpack.c.b16 %v897, %v896
      %v1120 = vpack.c.b16 %v899, %v898
      %v1121 = vpack.c.b16 %v901, %v900
      %v1122 = vpack.c.b16 %v903, %v902
      %v1123 = vpack.c.b16 %v905, %v904
      %v1124 = vpack.c.b16 %v907, %v906
      %v1125 = vpack.c.b16 %v909, %v908
      %v1126 = vpack.c.b16 %v911, %v910
      %v1127 = vpack.c.b16 %v913, %v912
      %v1128 = vpack.c.b16 %v915, %v914
      %v1129 = vpack.c.b16 %v917, %v916
      %v1130 = vpack.c.b16 %v919, %v918
      %v1131 = vpack.c.b16 %v921, %v920
      %v1132 = vpack.c.b16 %v923, %v922
      %v1133 = vpack.c.b16 %v925, %v924
      %v1134 = vpack.c.b16 %v927, %v926
      %v1135 = vpack.c.b16 %v929, %v928
      %v1136 = vpack.c.b16 %v931, %v930
      %v1137 = vpack.c.b16 %v933, %v932
      %v1138 = vpack.c.b16 %v935, %v934
      %v1139 = vpack.c.b16 %v937, %v936
      %v1140 = vpack.c.b16 %v939, %v938
      %v1141 = vpack.c.b16 %v941, %v940
      %v1142 = vpack.c.b16 %v943, %v942
      %v1143 = vpack.c.b16 %v945, %v944
      %v1144 = vpack.c.b16 %v947, %v946
      %v1145 = vpack.c.b16 %v949, %v948
      %v1146 = vpack.c.b16 %v951, %v950
      %v1147 = vpack.c.b16 %v953, %v952
      %v1148 = vpack.c.b16 %v955, %v954
      %v1149 = vpack.c.b16 %v957, %v956
      %v1150 = vpack.c.b16 %v959, %v958
      %v1151 = vpack.c.b16 %v961, %v960
      %v1152 = vpack.c.b16 %v963, %v962
      %v1153 = vpack.c.b16 %v965, %v964
      %v1154 = vpack.c.b16 %v967, %v966
      %v1155 = vpack.c.b16 %v969, %v968
      %v1156 = vpack.c.b16 %v971, %v970
      %v1157 = vpack.c.b16 %v973, %v972
      %v1158 = vpack.c.b16 %v975, %v974
      %v1159 = vpack.c.b16 %v977, %v976
      %v1160 = vpack.c.b16 %v979, %v978
      %v1161 = vpack.c.b16 %v981, %v980
      %v1162 = vpack.c.b16 %v983, %v982
      %v1163 = vpack.c.b16 %v985, %v984
      %v1164 = vpack.c.b16 %v987, %v986
      %v1165 = vpack.c.b16 %v989, %v988
      %v1166 = vpack.c.b16 %v991, %v990
      %v1167 = vpack.c.b16 %v993, %v992
      %v1168 = vpack.c.b16 %v995, %v994
      %v1169 = vpack.c.b16 %v997, %v996
      %v1170 = vpack.c.b16 %v999, %v998
      %v1171 = vpack.c.b16 %v1001, %v1000
      %v1172 = vpack.c.b16 %v1003, %v1002
      %v1173 = vpack.c.b16 %v1005, %v1004
      %v1174 = vpack.c.b16 %v1007, %v1006
      %v1175 = vpack.c.b16 %v1009, %v1008
      %v1176 = vpack.c.b16 %v1011, %v1010
      %v1177 = vpack.c.b16 %v1013, %v1012
      %v1178 = vpack.c.b16 %v1015, %v1014
      %v1179 = vpack.c.b16 %v1017, %v1016
      %v1180 = vpack.c.b16 %v1019, %v1018
      %v1181 = vpack.c.b16 %v1021, %v1020
      %v1182 = vpack.c.b16 %v1023, %v1022
      %v1183 = vpack.c.b16 %v1025, %v1024
      %v1184 = vpack.c.b16 %v1027, %v1026
      %v1185 = vpack.c.b16 %v1029, %v1028
      %v1186 = vpack.c.b16 %v1031, %v1030
      %v1187 = vpack.c.b16 %v1033, %v1032
      %v1188 = vpack.c.b16 %v1035, %v1034
      %v1189 = vpack.c.b16 %v1037, %v1036
      %v1190 = vpack.c.b16 %v1039, %v1038
      %v1191 = vpack.c.b16 %v1041, %v1040
      %v1192 = vpack.c.b16 %v1043, %v1042
      %v1193 = vpack.c.b16 %v1045, %v1044
      %v1194 = vpack.c.b16 %v1047, %v1046
      %v1195 = vpack.c.b16 %v1049, %v1048
      %v1196 = vpack.c.b16 %v1051, %v1050
      %v1197 = vpack.c.b16 %v1053, %v1052
      %v1198 = vpack.c.b16 %v1055, %v1054
      %v1199 = vpack.c.b16 %v1057, %v1056
      %v1200 = vpack.c.b16 %v1059, %v1058
      %v1201 = vpack.c.b16 %v1061, %v1060
      %v1202 = vpack.c.b16 %v1063, %v1062
      %v1203 = vpack.c.b16 %v1065, %v1064
      %v1204 = vpack.c.b16 %v1067, %v1066
      %v1205 = vpack.c.b16 %v1069, %v1068
      %v1206 = vpack.c.b16 %v1071, %v1070
      %v1207 = vpack.c.b16 %v1073, %v1072
      %v1208 = vpack.c.b16 %v1075, %v1074
      %v1209 = vpack.c.b16 %v1077, %v1076
      %v1210 = vpack.c.b16 %v1079, %v1078
      %v1211 = vpack.c.b16 %v1081, %v1080
      %v1212 = vpack.c.b16 %v1083, %v1082
      %v1213 = vpack.c.b16 %v1085, %v1084
      %1342 = vmatprep.subr.bf16.mxu0 0
      %1343 = vmatpush1.bf16.msra.mxu0 %v1093
      %1344 = vmatprep.subr.bf16.mxu0 0
      %1345 = vmatpush1.bf16.msra.mxu0 %v1092
      %1346 = vmatprep.subr.bf16.mxu0 0
      %1347 = vmatpush1.bf16.msra.mxu0 %v1091
      %1348 = vmatprep.subr.bf16.mxu0 0
      %1349 = vmatpush1.bf16.msra.mxu0 %v1090
      %1350 = vmatprep.subr.bf16.mxu0 0
      %1351 = vmatpush1.bf16.msra.mxu0 %v1089
      %1352 = vmatprep.subr.bf16.mxu0 0
      %1353 = vmatpush1.bf16.msra.mxu0 %v1088
      %1354 = vmatprep.subr.bf16.mxu0 0
      %1355 = vmatpush1.bf16.msra.mxu0 %v1087
      %1356 = vmatprep.subr.bf16.mxu0 0
      %1357 = vmatpush1.bf16.msra.mxu0 %v1086
      %1358 = vmatprep.subr.bf16.mxu0 0
      %1359 = vmatpush2.bf16.msra.mxu0 %v1101
      %1360 = vmatprep.subr.bf16.mxu0 0
      %1361 = vmatpush2.bf16.msra.mxu0 %v1100
      %1362 = vmatprep.subr.bf16.mxu0 0
      %1363 = vmatpush2.bf16.msra.mxu0 %v1099
      %1364 = vmatprep.subr.bf16.mxu0 0
      %1365 = vmatpush2.bf16.msra.mxu0 %v1098
      %1366 = vmatprep.subr.bf16.mxu0 0
      %1367 = vmatpush2.bf16.msra.mxu0 %v1097
      %1368 = vmatprep.subr.bf16.mxu0 0
      %1369 = vmatpush2.bf16.msra.mxu0 %v1096
      %1370 = vmatprep.subr.bf16.mxu0 0
      %1371 = vmatpush2.bf16.msra.mxu0 %v1095
      %1372 = vmatprep.subr.bf16.mxu0 0
      %1373 = vmatpush2.bf16.msra.mxu0 %v1094
      %1374 = vmatprep.mubr.bf16.mxu0 %v543
      %1375 = vmatmul.mubr.bf16.gmra.mxu0 %v542
      %v1376 = vpop.f32.mrf.mxu0
      %v1377 = vadd.f32 0.0, %v1376
      %v1378 = vpop.f32.mrf.mxu0
      %v1379 = vpop.f32.mrf.mxu0
      %v1380 = vadd.f32 0.0, %v1379
      %v1381 = vpop.f32.mrf.mxu0
      %1382 = vdwg.mxu0
      %1383 = vmatprep.subr.bf16.mxu0 0
      %1384 = vmatpush1.bf16.msra.mxu0 %v1109
      %1385 = vmatprep.subr.bf16.mxu0 0
      %1386 = vmatpush1.bf16.msra.mxu0 %v1108
      %1387 = vmatprep.subr.bf16.mxu0 0
      %1388 = vmatpush1.bf16.msra.mxu0 %v1107
      %1389 = vmatprep.subr.bf16.mxu0 0
      %1390 = vmatpush1.bf16.msra.mxu0 %v1106
      %1391 = vmatprep.subr.bf16.mxu0 0
      %1392 = vmatpush1.bf16.msra.mxu0 %v1105
      %1393 = vmatprep.subr.bf16.mxu0 0
      %1394 = vmatpush1.bf16.msra.mxu0 %v1104
      %1395 = vmatprep.subr.bf16.mxu0 0
      %1396 = vmatpush1.bf16.msra.mxu0 %v1103
      %1397 = vmatprep.subr.bf16.mxu0 0
      %1398 = vmatpush1.bf16.msra.mxu0 %v1102
      %1399 = vmatprep.subr.bf16.mxu0 0
      %1400 = vmatpush2.bf16.msra.mxu0 %v1117
      %1401 = vmatprep.subr.bf16.mxu0 0
      %1402 = vmatpush2.bf16.msra.mxu0 %v1116
      %1403 = vmatprep.subr.bf16.mxu0 0
      %1404 = vmatpush2.bf16.msra.mxu0 %v1115
      %1405 = vmatprep.subr.bf16.mxu0 0
      %1406 = vmatpush2.bf16.msra.mxu0 %v1114
      %1407 = vmatprep.subr.bf16.mxu0 0
      %1408 = vmatpush2.bf16.msra.mxu0 %v1113
      %1409 = vmatprep.subr.bf16.mxu0 0
      %1410 = vmatpush2.bf16.msra.mxu0 %v1112
      %1411 = vmatprep.subr.bf16.mxu0 0
      %1412 = vmatpush2.bf16.msra.mxu0 %v1111
      %1413 = vmatprep.subr.bf16.mxu0 0
      %1414 = vmatpush2.bf16.msra.mxu0 %v1110
      %1415 = vmatprep.mubr.bf16.mxu0 %v545
      %1416 = vmatmul.mubr.bf16.gmra.mxu0 %v544
      %v1417 = vpop.f32.mrf.mxu0
      %v1418 = vadd.f32 %v1377, %v1417
      %v1419 = vpop.f32.mrf.mxu0
      %v1420 = vpop.f32.mrf.mxu0
      %v1421 = vadd.f32 %v1380, %v1420
      %v1422 = vpop.f32.mrf.mxu0
      %1423 = vdwg.mxu0
      %1424 = vmatprep.subr.bf16.mxu0 0
      %1425 = vmatpush1.bf16.msra.mxu0 %v1125
      %1426 = vmatprep.subr.bf16.mxu0 0
      %1427 = vmatpush1.bf16.msra.mxu0 %v1124
      %1428 = vmatprep.subr.bf16.mxu0 0
      %1429 = vmatpush1.bf16.msra.mxu0 %v1123
      %1430 = vmatprep.subr.bf16.mxu0 0
      %1431 = vmatpush1.bf16.msra.mxu0 %v1122
      %1432 = vmatprep.subr.bf16.mxu0 0
      %1433 = vmatpush1.bf16.msra.mxu0 %v1121
      %1434 = vmatprep.subr.bf16.mxu0 0
      %1435 = vmatpush1.bf16.msra.mxu0 %v1120
      %1436 = vmatprep.subr.bf16.mxu0 0
      %1437 = vmatpush1.bf16.msra.mxu0 %v1119
      %1438 = vmatprep.subr.bf16.mxu0 0
      %1439 = vmatpush1.bf16.msra.mxu0 %v1118
      %1440 = vmatprep.subr.bf16.mxu0 0
      %1441 = vmatpush2.bf16.msra.mxu0 %v1133
      %1442 = vmatprep.subr.bf16.mxu0 0
      %1443 = vmatpush2.bf16.msra.mxu0 %v1132
      %1444 = vmatprep.subr.bf16.mxu0 0
      %1445 = vmatpush2.bf16.msra.mxu0 %v1131
      %1446 = vmatprep.subr.bf16.mxu0 0
      %1447 = vmatpush2.bf16.msra.mxu0 %v1130
      %1448 = vmatprep.subr.bf16.mxu0 0
      %1449 = vmatpush2.bf16.msra.mxu0 %v1129
      %1450 = vmatprep.subr.bf16.mxu0 0
      %1451 = vmatpush2.bf16.msra.mxu0 %v1128
      %1452 = vmatprep.subr.bf16.mxu0 0
      %1453 = vmatpush2.bf16.msra.mxu0 %v1127
      %1454 = vmatprep.subr.bf16.mxu0 0
      %1455 = vmatpush2.bf16.msra.mxu0 %v1126
      %1456 = vmatprep.mubr.bf16.mxu0 %v547
      %1457 = vmatmul.mubr.bf16.gmra.mxu0 %v546
      %v1458 = vpop.f32.mrf.mxu0
      %v1459 = vadd.f32 %v1418, %v1458
      %v1460 = vpop.f32.mrf.mxu0
      %v1461 = vpop.f32.mrf.mxu0
      %v1462 = vadd.f32 %v1421, %v1461
      %v1463 = vpop.f32.mrf.mxu0
      %1464 = vdwg.mxu0
      %1465 = vmatprep.subr.bf16.mxu0 0
      %1466 = vmatpush1.bf16.msra.mxu0 %v1141
      %1467 = vmatprep.subr.bf16.mxu0 0
      %1468 = vmatpush1.bf16.msra.mxu0 %v1140
      %1469 = vmatprep.subr.bf16.mxu0 0
      %1470 = vmatpush1.bf16.msra.mxu0 %v1139
      %1471 = vmatprep.subr.bf16.mxu0 0
      %1472 = vmatpush1.bf16.msra.mxu0 %v1138
      %1473 = vmatprep.subr.bf16.mxu0 0
      %1474 = vmatpush1.bf16.msra.mxu0 %v1137
      %1475 = vmatprep.subr.bf16.mxu0 0
      %1476 = vmatpush1.bf16.msra.mxu0 %v1136
      %1477 = vmatprep.subr.bf16.mxu0 0
      %1478 = vmatpush1.bf16.msra.mxu0 %v1135
      %1479 = vmatprep.subr.bf16.mxu0 0
      %1480 = vmatpush1.bf16.msra.mxu0 %v1134
      %1481 = vmatprep.subr.bf16.mxu0 0
      %1482 = vmatpush2.bf16.msra.mxu0 %v1149
      %1483 = vmatprep.subr.bf16.mxu0 0
      %1484 = vmatpush2.bf16.msra.mxu0 %v1148
      %1485 = vmatprep.subr.bf16.mxu0 0
      %1486 = vmatpush2.bf16.msra.mxu0 %v1147
      %1487 = vmatprep.subr.bf16.mxu0 0
      %1488 = vmatpush2.bf16.msra.mxu0 %v1146
      %1489 = vmatprep.subr.bf16.mxu0 0
      %1490 = vmatpush2.bf16.msra.mxu0 %v1145
      %1491 = vmatprep.subr.bf16.mxu0 0
      %1492 = vmatpush2.bf16.msra.mxu0 %v1144
      %1493 = vmatprep.subr.bf16.mxu0 0
      %1494 = vmatpush2.bf16.msra.mxu0 %v1143
      %1495 = vmatprep.subr.bf16.mxu0 0
      %1496 = vmatpush2.bf16.msra.mxu0 %v1142
      %1497 = vmatprep.mubr.bf16.mxu0 %v549
      %1498 = vmatmul.mubr.bf16.gmra.mxu0 %v548
      %v1499 = vpop.f32.mrf.mxu0
      %v1500 = vadd.f32 %v1459, %v1499
      %v1501 = vpop.f32.mrf.mxu0
      %v1502 = vpop.f32.mrf.mxu0
      %v1503 = vadd.f32 %v1462, %v1502
      %v1504 = vpop.f32.mrf.mxu0
      %1505 = vdwg.mxu0
      %1506 = vmatprep.subr.bf16.mxu0 0
      %1507 = vmatpush1.bf16.msra.mxu0 %v1157
      %1508 = vmatprep.subr.bf16.mxu0 0
      %1509 = vmatpush1.bf16.msra.mxu0 %v1156
      %1510 = vmatprep.subr.bf16.mxu0 0
      %1511 = vmatpush1.bf16.msra.mxu0 %v1155
      %1512 = vmatprep.subr.bf16.mxu0 0
      %1513 = vmatpush1.bf16.msra.mxu0 %v1154
      %1514 = vmatprep.subr.bf16.mxu0 0
      %1515 = vmatpush1.bf16.msra.mxu0 %v1153
      %1516 = vmatprep.subr.bf16.mxu0 0
      %1517 = vmatpush1.bf16.msra.mxu0 %v1152
      %1518 = vmatprep.subr.bf16.mxu0 0
      %1519 = vmatpush1.bf16.msra.mxu0 %v1151
      %1520 = vmatprep.subr.bf16.mxu0 0
      %1521 = vmatpush1.bf16.msra.mxu0 %v1150
      %1522 = vmatprep.subr.bf16.mxu0 0
      %1523 = vmatpush2.bf16.msra.mxu0 %v1165
      %1524 = vmatprep.subr.bf16.mxu0 0
      %1525 = vmatpush2.bf16.msra.mxu0 %v1164
      %1526 = vmatprep.subr.bf16.mxu0 0
      %1527 = vmatpush2.bf16.msra.mxu0 %v1163
      %1528 = vmatprep.subr.bf16.mxu0 0
      %1529 = vmatpush2.bf16.msra.mxu0 %v1162
      %1530 = vmatprep.subr.bf16.mxu0 0
      %1531 = vmatpush2.bf16.msra.mxu0 %v1161
      %1532 = vmatprep.subr.bf16.mxu0 0
      %1533 = vmatpush2.bf16.msra.mxu0 %v1160
      %1534 = vmatprep.subr.bf16.mxu0 0
      %1535 = vmatpush2.bf16.msra.mxu0 %v1159
      %1536 = vmatprep.subr.bf16.mxu0 0
      %1537 = vmatpush2.bf16.msra.mxu0 %v1158
      %1538 = vmatprep.mubr.bf16.mxu0 %v551
      %1539 = vmatmul.mubr.bf16.gmra.mxu0 %v550
      %v1540 = vpop.f32.mrf.mxu0
      %v1541 = vadd.f32 %v1500, %v1540
      %v1542 = vpop.f32.mrf.mxu0
      %v1543 = vpop.f32.mrf.mxu0
      %v1544 = vadd.f32 %v1503, %v1543
      %v1545 = vpop.f32.mrf.mxu0
      %1546 = vdwg.mxu0
      %1547 = vmatprep.subr.bf16.mxu0 0
      %1548 = vmatpush1.bf16.msra.mxu0 %v1173
      %1549 = vmatprep.subr.bf16.mxu0 0
      %1550 = vmatpush1.bf16.msra.mxu0 %v1172
      %1551 = vmatprep.subr.bf16.mxu0 0
      %1552 = vmatpush1.bf16.msra.mxu0 %v1171
      %1553 = vmatprep.subr.bf16.mxu0 0
      %1554 = vmatpush1.bf16.msra.mxu0 %v1170
      %1555 = vmatprep.subr.bf16.mxu0 0
      %1556 = vmatpush1.bf16.msra.mxu0 %v1169
      %1557 = vmatprep.subr.bf16.mxu0 0
      %1558 = vmatpush1.bf16.msra.mxu0 %v1168
      %1559 = vmatprep.subr.bf16.mxu0 0
      %1560 = vmatpush1.bf16.msra.mxu0 %v1167
      %1561 = vmatprep.subr.bf16.mxu0 0
      %1562 = vmatpush1.bf16.msra.mxu0 %v1166
      %1563 = vmatprep.subr.bf16.mxu0 0
      %1564 = vmatpush2.bf16.msra.mxu0 %v1181
      %1565 = vmatprep.subr.bf16.mxu0 0
      %1566 = vmatpush2.bf16.msra.mxu0 %v1180
      %1567 = vmatprep.subr.bf16.mxu0 0
      %1568 = vmatpush2.bf16.msra.mxu0 %v1179
      %1569 = vmatprep.subr.bf16.mxu0 0
      %1570 = vmatpush2.bf16.msra.mxu0 %v1178
      %1571 = vmatprep.subr.bf16.mxu0 0
      %1572 = vmatpush2.bf16.msra.mxu0 %v1177
      %1573 = vmatprep.subr.bf16.mxu0 0
      %1574 = vmatpush2.bf16.msra.mxu0 %v1176
      %1575 = vmatprep.subr.bf16.mxu0 0
      %1576 = vmatpush2.bf16.msra.mxu0 %v1175
      %1577 = vmatprep.subr.bf16.mxu0 0
      %1578 = vmatpush2.bf16.msra.mxu0 %v1174
      %1579 = vmatprep.mubr.bf16.mxu0 %v553
      %1580 = vmatmul.mubr.bf16.gmra.mxu0 %v552
      %v1581 = vpop.f32.mrf.mxu0
      %v1582 = vadd.f32 %v1541, %v1581
      %v1583 = vpop.f32.mrf.mxu0
      %v1584 = vpop.f32.mrf.mxu0
      %v1585 = vadd.f32 %v1544, %v1584
      %v1586 = vpop.f32.mrf.mxu0
      %1587 = vdwg.mxu0
      %1588 = vmatprep.subr.bf16.mxu0 0
      %1589 = vmatpush1.bf16.msra.mxu0 %v1189
      %1590 = vmatprep.subr.bf16.mxu0 0
      %1591 = vmatpush1.bf16.msra.mxu0 %v1188
      %1592 = vmatprep.subr.bf16.mxu0 0
      %1593 = vmatpush1.bf16.msra.mxu0 %v1187
      %1594 = vmatprep.subr.bf16.mxu0 0
      %1595 = vmatpush1.bf16.msra.mxu0 %v1186
      %1596 = vmatprep.subr.bf16.mxu0 0
      %1597 = vmatpush1.bf16.msra.mxu0 %v1185
      %1598 = vmatprep.subr.bf16.mxu0 0
      %1599 = vmatpush1.bf16.msra.mxu0 %v1184
      %1600 = vmatprep.subr.bf16.mxu0 0
      %1601 = vmatpush1.bf16.msra.mxu0 %v1183
      %1602 = vmatprep.subr.bf16.mxu0 0
      %1603 = vmatpush1.bf16.msra.mxu0 %v1182
      %1604 = vmatprep.subr.bf16.mxu0 0
      %1605 = vmatpush2.bf16.msra.mxu0 %v1197
      %1606 = vmatprep.subr.bf16.mxu0 0
      %1607 = vmatpush2.bf16.msra.mxu0 %v1196
      %1608 = vmatprep.subr.bf16.mxu0 0
      %1609 = vmatpush2.bf16.msra.mxu0 %v1195
      %1610 = vmatprep.subr.bf16.mxu0 0
      %1611 = vmatpush2.bf16.msra.mxu0 %v1194
      %1612 = vmatprep.subr.bf16.mxu0 0
      %1613 = vmatpush2.bf16.msra.mxu0 %v1193
      %1614 = vmatprep.subr.bf16.mxu0 0
      %1615 = vmatpush2.bf16.msra.mxu0 %v1192
      %1616 = vmatprep.subr.bf16.mxu0 0
      %1617 = vmatpush2.bf16.msra.mxu0 %v1191
      %1618 = vmatprep.subr.bf16.mxu0 0
      %1619 = vmatpush2.bf16.msra.mxu0 %v1190
      %1620 = vmatprep.mubr.bf16.mxu0 %v555
      %1621 = vmatmul.mubr.bf16.gmra.mxu0 %v554
      %v1622 = vpop.f32.mrf.mxu0
      %v1623 = vadd.f32 %v1582, %v1622
      %v1624 = vpop.f32.mrf.mxu0
      %v1625 = vpop.f32.mrf.mxu0
      %v1626 = vadd.f32 %v1585, %v1625
      %v1627 = vpop.f32.mrf.mxu0
      %1628 = vdwg.mxu0
      %1629 = vmatprep.subr.bf16.mxu0 0
      %1630 = vmatpush1.bf16.msra.mxu0 %v1205
      %1631 = vmatprep.subr.bf16.mxu0 0
      %1632 = vmatpush1.bf16.msra.mxu0 %v1204
      %1633 = vmatprep.subr.bf16.mxu0 0
      %1634 = vmatpush1.bf16.msra.mxu0 %v1203
      %1635 = vmatprep.subr.bf16.mxu0 0
      %1636 = vmatpush1.bf16.msra.mxu0 %v1202
      %1637 = vmatprep.subr.bf16.mxu0 0
      %1638 = vmatpush1.bf16.msra.mxu0 %v1201
      %1639 = vmatprep.subr.bf16.mxu0 0
      %1640 = vmatpush1.bf16.msra.mxu0 %v1200
      %1641 = vmatprep.subr.bf16.mxu0 0
      %1642 = vmatpush1.bf16.msra.mxu0 %v1199
      %1643 = vmatprep.subr.bf16.mxu0 0
      %1644 = vmatpush1.bf16.msra.mxu0 %v1198
      %1645 = vmatprep.subr.bf16.mxu0 0
      %1646 = vmatpush2.bf16.msra.mxu0 %v1213
      %1647 = vmatprep.subr.bf16.mxu0 0
      %1648 = vmatpush2.bf16.msra.mxu0 %v1212
      %1649 = vmatprep.subr.bf16.mxu0 0
      %1650 = vmatpush2.bf16.msra.mxu0 %v1211
      %1651 = vmatprep.subr.bf16.mxu0 0
      %1652 = vmatpush2.bf16.msra.mxu0 %v1210
      %1653 = vmatprep.subr.bf16.mxu0 0
      %1654 = vmatpush2.bf16.msra.mxu0 %v1209
      %1655 = vmatprep.subr.bf16.mxu0 0
      %1656 = vmatpush2.bf16.msra.mxu0 %v1208
      %1657 = vmatprep.subr.bf16.mxu0 0
      %1658 = vmatpush2.bf16.msra.mxu0 %v1207
      %1659 = vmatprep.subr.bf16.mxu0 0
      %1660 = vmatpush2.bf16.msra.mxu0 %v1206
      %1661 = vmatprep.mubr.bf16.mxu0 %v557
      %1662 = vmatmul.mubr.bf16.gmra.mxu0 %v556
      %v1663 = vpop.f32.mrf.mxu0
      %v1664 = vadd.f32 %v1623, %v1663
      %v1665 = vpop.f32.mrf.mxu0
      %v1666 = vpop.f32.mrf.mxu0
      %v1667 = vadd.f32 %v1626, %v1666
      %v1668 = vpop.f32.mrf.mxu0
      %1669 = vdwg.mxu0
      %v1670 = vpack.c.bf16 %v1667, %v1664
      %v1672 = vunpack.c.l.b16 %v1670
      %v1673 = vunpack.c.h.b16 %v1670
      %v1674 = vpack.c.b16 %v1672, %v1672
      %v1675 = vpack.c.b16 %v1673, %v1673
      %1678 = vst [vmem:[%s213] sm:$0xf] %v1674
      %1679 = vst [vmem:[%s213 + $0x4] sm:$0xf] %v1675
      %v1680 = vadd.f32 %v1664, %v1667
      %v1681 = vrot.slane %v1680, 4
      %v1682 = vadd.f32 %v1680, %v1681
      %v1683 = vrot.slane %v1682, 2
      %v1684 = vadd.f32 %v1682, %v1683
      %v1685 = vrot.slane %v1684, 1
      %v1686 = vadd.f32 %v1684, %v1685
      %1687 = vst [vmem:[%s217] sm:$0x1] %v1686
      %v1688 = vmul.f32 %v1664, %v1664
      %v1689 = vmul.f32 %v1667, %v1667
      %v1690 = vadd.f32 %v1688, %v1689
      %v1691 = vrot.slane %v1690, 4
      %v1692 = vadd.f32 %v1690, %v1691
      %v1693 = vrot.slane %v1692, 2
      %v1694 = vadd.f32 %v1692, %v1693
      %v1695 = vrot.slane %v1694, 1
      %v1696 = vadd.f32 %v1694, %v1695
      %1697 = vst [vmem:[%s220] sm:$0x1] %v1696
      %s1698 = smul.u32 2, %s16
      %p1699 = scmp.lt.s32.totalorder %s1698, 3
      %s1700 = scalar_select %p1699, %s1698, 3
      %s1701 = smul.addr %s1700, 4
      %s1702 = scalar_lea.vmem %s2, %s1701
      %p1703 = scmp.lt.s32.totalorder %s16, 1
      %s1704 = scalar_select %p1703, %s16, 1
      %s1705 = scalar_lea.vmem %s3, %s1704
      %p1706 = scmp.lt.s32.totalorder %s16, 1
      %s1707 = scalar_select %p1706, %s16, 1
      %s1708 = scalar_lea.vmem %s4, %s1707
      // Predicated region
      $region29: #{discriminator1_forward.5} parent=27 // pred_check
        %p1709 = pneg %p81
      $region30: #{discriminator1_forward.5} parent=27 // pred_check_branch
        %1711 = sbr.rel (%p1709) target = $region32
      $region31: #{discriminator1_forward.5} parent=27 // pred_region
        %s1712 = smul.u32 2, %s16
      $region32: #{discriminator1_forward.5} parent=27 // pred_fallthru
        _
      // Predicated region
      $region33: #{discriminator1_forward.5} parent=27 // pred_check
        %p1713 = pneg %p107
      $region34: #{discriminator1_forward.5} parent=27 // pred_check_branch
        %1715 = sbr.rel (%p1713) target = $region36
      $region35: #{discriminator1_forward.5} parent=27 // pred_region
        _
      $region36: #{discriminator1_forward.5} parent=27 // pred_fallthru
        _
      // Predicated region
      $region37: #{discriminator1_forward.5} parent=27 // pred_check
        %p1716 = pneg %p133
      $region38: #{discriminator1_forward.5} parent=27 // pred_check_branch
        %1718 = sbr.rel (%p1716) target = $region40
      $region39: #{discriminator1_forward.5} parent=27 // pred_region
        _
      $region40: #{discriminator1_forward.5} parent=27 // pred_fallthru
        _
    $region28: #{discriminator1_forward.5} parent=5 // pred_fallthru
      _
    %p1719 = scmp.le.s32.totalorder 2, %s11
    // Predicated region
    $region41: #{discriminator1_forward.5} parent=5 // pred_check
      %p1720 = pneg %p1719
    $region42: #{discriminator1_forward.5} parent=5 // pred_check_branch
      %1722 = sbr.rel (%p1720) target = $region44
    $region43: #{discriminator1_forward.5} parent=5 // pred_region
      %s1723 = ssub.s32 %s11, 2
      // Predicated region
      $region45: #{discriminator1_forward.5} parent=43 // pred_check
        %p1724 = pneg %p87
      $region46: #{discriminator1_forward.5} parent=43 // pred_check_branch
        %1726 = sbr.rel (%p1724) target = $region48
      $region47: #{discriminator1_forward.5} parent=43 // pred_region
        %s1727 = smul.u32 2, %s17
        %p1728 = scmp.lt.s32.totalorder %s1727, 3
        %s1729 = scalar_select %p1728, %s1727, 3
        %s1730 = smul.addr %s1729, 4
        %s1731 = scalar_lea.vmem %s2, %s1730
      $region48: #{discriminator1_forward.5} parent=43 // pred_fallthru
        _
      // Predicated region
      $region49: #{discriminator1_forward.5} parent=43 // pred_check
        %p1732 = pneg %p113
      $region50: #{discriminator1_forward.5} parent=43 // pred_check_branch
        %1734 = sbr.rel (%p1732) target = $region52
      $region51: #{discriminator1_forward.5} parent=43 // pred_region
        %p1735 = scmp.lt.s32.totalorder %s17, 1
        %s1736 = scalar_select %p1735, %s17, 1
        %s1737 = scalar_lea.vmem %s3, %s1736
      $region52: #{discriminator1_forward.5} parent=43 // pred_fallthru
        _
      // Predicated region
      $region53: #{discriminator1_forward.5} parent=43 // pred_check
        %p1738 = pneg %p139
      $region54: #{discriminator1_forward.5} parent=43 // pred_check_branch
        %1740 = sbr.rel (%p1738) target = $region56
      $region55: #{discriminator1_forward.5} parent=43 // pred_region
        %p1741 = scmp.lt.s32.totalorder %s17, 1
        %s1742 = scalar_select %p1741, %s17, 1
        %s1743 = scalar_lea.vmem %s4, %s1742
      $region56: #{discriminator1_forward.5} parent=43 // pred_fallthru
        _
    $region44: #{discriminator1_forward.5} parent=5 // pred_fallthru
      _
  $region6: #{discriminator1_forward.5} parent=0 // loop_footer
    %s15 = sadd.s32 1, %s11
  $region7: #{discriminator1_forward.5} parent=0 // loop_footer_branch
    %10 = sbr.rel target = $region3
  $region8: #{discriminator1_forward.5} parent=0 // loop_exit
    _

// kernel: discriminator1_forward.6
$region0: #{discriminator1_forward.6}
  #allocation0 [shape = 'u32[]', space=smem, size = 0x4, offset = 0x4, fixed_abs, tag = 'smem constant byte address 0x4 - core index']
  #allocation1 [shape = 'u32[144,128]{1,0:T(1,128)}', space=vmem, size = 0x12000, scoped, tag = 'internal scratch']
  %s0 = inlined_call_operand.vmem [shape: bf16[8,2048], index: 0, kind: input, shape index: {}]
  %s1 = inlined_call_operand.vmem [shape: bf16[2048,128], index: 1, kind: input, shape index: {}]
  %s2 = inlined_call_operand.vmem [shape: bf16[8,128], index: 2, kind: output, shape index: {0}]
  %s3 = inlined_call_operand.vmem [shape: f32[1,1,128], index: 3, kind: output, shape index: {1}]
  %s4 = inlined_call_operand.vmem [shape: f32[1,1,128], index: 4, kind: output, shape index: {2}]
  %5 = xla_tuple %s2, %s3, %s4
  %s6 = sld [smem:[#allocation0]]
  $region34: #{discriminator1_forward.6} parent=0
    _
  %s8 = ssub.s32 1, %s6
  %s9 = scalar_select 0, %s8, %s6
  // Predicated region
  $region2: #{discriminator1_forward.6} parent=0 // pred_check
    _
  $region3: #{discriminator1_forward.6} parent=0 // pred_check_branch
    %11 = sbr.rel (0) target = $region5
  $region4: #{discriminator1_forward.6} parent=0 // pred_region
    _
  $region5: #{discriminator1_forward.6} parent=0 // pred_fallthru
    _
  // Predicated region
  $region6: #{discriminator1_forward.6} parent=0 // pred_check
    _
  $region7: #{discriminator1_forward.6} parent=0 // pred_check_branch
    %13 = sbr.rel (0) target = $region9
  $region8: #{discriminator1_forward.6} parent=0 // pred_region
    _
  $region9: #{discriminator1_forward.6} parent=0 // pred_fallthru
    _
  %v15 = vld [vmem:[%s0] sm:$0xff]
  %v16 = vld [vmem:[%s0 + $0x8] sm:$0xff]
  %v17 = vld [vmem:[%s0 + $0x10] sm:$0xff]
  %v18 = vld [vmem:[%s0 + $0x18] sm:$0xff]
  %v19 = vld [vmem:[%s0 + $0x20] sm:$0xff]
  %v20 = vld [vmem:[%s0 + $0x28] sm:$0xff]
  %v21 = vld [vmem:[%s0 + $0x30] sm:$0xff]
  %v22 = vld [vmem:[%s0 + $0x38] sm:$0xff]
  %v23 = vld [vmem:[%s1] sm:$0xf]
  %v24 = vld [vmem:[%s1 + $0x4] sm:$0xf]
  %v25 = vld [vmem:[%s1 + $0x8] sm:$0xf]
  %v26 = vld [vmem:[%s1 + $0xc] sm:$0xf]
  %v27 = vld [vmem:[%s1 + $0x10] sm:$0xf]
  %v28 = vld [vmem:[%s1 + $0x14] sm:$0xf]
  %v29 = vld [vmem:[%s1 + $0x18] sm:$0xf]
  %v30 = vld [vmem:[%s1 + $0x1c] sm:$0xf]
  %v31 = vld [vmem:[%s1 + $0x20] sm:$0xf]
  %v32 = vld [vmem:[%s1 + $0x24] sm:$0xf]
  %v33 = vld [vmem:[%s1 + $0x28] sm:$0xf]
  %v34 = vld [vmem:[%s1 + $0x2c] sm:$0xf]
  %v35 = vld [vmem:[%s1 + $0x30] sm:$0xf]
  %v36 = vld [vmem:[%s1 + $0x34] sm:$0xf]
  %v37 = vld [vmem:[%s1 + $0x38] sm:$0xf]
  %v38 = vld [vmem:[%s1 + $0x3c] sm:$0xf]
  %v39 = vld [vmem:[%s1 + $0x40] sm:$0xf]
  %v40 = vld [vmem:[%s1 + $0x44] sm:$0xf]
  %v41 = vld [vmem:[%s1 + $0x48] sm:$0xf]
  %v42 = vld [vmem:[%s1 + $0x4c] sm:$0xf]
  %v43 = vld [vmem:[%s1 + $0x50] sm:$0xf]
  %v44 = vld [vmem:[%s1 + $0x54] sm:$0xf]
  %v45 = vld [vmem:[%s1 + $0x58] sm:$0xf]
  %v46 = vld [vmem:[%s1 + $0x5c] sm:$0xf]
  %v47 = vld [vmem:[%s1 + $0x60] sm:$0xf]
  %v48 = vld [vmem:[%s1 + $0x64] sm:$0xf]
  %v49 = vld [vmem:[%s1 + $0x68] sm:$0xf]
  %v50 = vld [vmem:[%s1 + $0x6c] sm:$0xf]
  %v51 = vld [vmem:[%s1 + $0x70] sm:$0xf]
  %v52 = vld [vmem:[%s1 + $0x74] sm:$0xf]
  %v53 = vld [vmem:[%s1 + $0x78] sm:$0xf]
  %v54 = vld [vmem:[%s1 + $0x7c] sm:$0xf]
  %v55 = vld [vmem:[%s1 + $0x80] sm:$0xf]
  %v56 = vld [vmem:[%s1 + $0x84] sm:$0xf]
  %v57 = vld [vmem:[%s1 + $0x88] sm:$0xf]
  %v58 = vld [vmem:[%s1 + $0x8c] sm:$0xf]
  %v59 = vld [vmem:[%s1 + $0x90] sm:$0xf]
  %v60 = vld [vmem:[%s1 + $0x94] sm:$0xf]
  %v61 = vld [vmem:[%s1 + $0x98] sm:$0xf]
  %v62 = vld [vmem:[%s1 + $0x9c] sm:$0xf]
  %v63 = vld [vmem:[%s1 + $0xa0] sm:$0xf]
  %v64 = vld [vmem:[%s1 + $0xa4] sm:$0xf]
  %v65 = vld [vmem:[%s1 + $0xa8] sm:$0xf]
  %v66 = vld [vmem:[%s1 + $0xac] sm:$0xf]
  %v67 = vld [vmem:[%s1 + $0xb0] sm:$0xf]
  %v68 = vld [vmem:[%s1 + $0xb4] sm:$0xf]
  %v69 = vld [vmem:[%s1 + $0xb8] sm:$0xf]
  %v70 = vld [vmem:[%s1 + $0xbc] sm:$0xf]
  %v71 = vld [vmem:[%s1 + $0xc0] sm:$0xf]
  %v72 = vld [vmem:[%s1 + $0xc4] sm:$0xf]
  %v73 = vld [vmem:[%s1 + $0xc8] sm:$0xf]
  %v74 = vld [vmem:[%s1 + $0xcc] sm:$0xf]
  %v75 = vld [vmem:[%s1 + $0xd0] sm:$0xf]
  %v76 = vld [vmem:[%s1 + $0xd4] sm:$0xf]
  %v77 = vld [vmem:[%s1 + $0xd8] sm:$0xf]
  %v78 = vld [vmem:[%s1 + $0xdc] sm:$0xf]
  %v79 = vld [vmem:[%s1 + $0xe0] sm:$0xf]
  %v80 = vld [vmem:[%s1 + $0xe4] sm:$0xf]
  %v81 = vld [vmem:[%s1 + $0xe8] sm:$0xf]
  %v82 = vld [vmem:[%s1 + $0xec] sm:$0xf]
  %v83 = vld [vmem:[%s1 + $0xf0] sm:$0xf]
  %v84 = vld [vmem:[%s1 + $0xf4] sm:$0xf]
  %v85 = vld [vmem:[%s1 + $0xf8] sm:$0xf]
  %v86 = vld [vmem:[%s1 + $0xfc] sm:$0xf]
  %v87 = vld [vmem:[%s1 + $0x100] sm:$0xf]
  %v88 = vld [vmem:[%s1 + $0x104] sm:$0xf]
  %v89 = vld [vmem:[%s1 + $0x108] sm:$0xf]
  %v90 = vld [vmem:[%s1 + $0x10c] sm:$0xf]
  %v91 = vld [vmem:[%s1 + $0x110] sm:$0xf]
  %v92 = vld [vmem:[%s1 + $0x114] sm:$0xf]
  %v93 = vld [vmem:[%s1 + $0x118] sm:$0xf]
  %v94 = vld [vmem:[%s1 + $0x11c] sm:$0xf]
  %v95 = vld [vmem:[%s1 + $0x120] sm:$0xf]
  %v96 = vld [vmem:[%s1 + $0x124] sm:$0xf]
  %v97 = vld [vmem:[%s1 + $0x128] sm:$0xf]
  %v98 = vld [vmem:[%s1 + $0x12c] sm:$0xf]
  %v99 = vld [vmem:[%s1 + $0x130] sm:$0xf]
  %v100 = vld [vmem:[%s1 + $0x134] sm:$0xf]
  %v101 = vld [vmem:[%s1 + $0x138] sm:$0xf]
  %v102 = vld [vmem:[%s1 + $0x13c] sm:$0xf]
  %v103 = vld [vmem:[%s1 + $0x140] sm:$0xf]
  %v104 = vld [vmem:[%s1 + $0x144] sm:$0xf]
  %v105 = vld [vmem:[%s1 + $0x148] sm:$0xf]
  %v106 = vld [vmem:[%s1 + $0x14c] sm:$0xf]
  %v107 = vld [vmem:[%s1 + $0x150] sm:$0xf]
  %v108 = vld [vmem:[%s1 + $0x154] sm:$0xf]
  %v109 = vld [vmem:[%s1 + $0x158] sm:$0xf]
  %v110 = vld [vmem:[%s1 + $0x15c] sm:$0xf]
  %v111 = vld [vmem:[%s1 + $0x160] sm:$0xf]
  %v112 = vld [vmem:[%s1 + $0x164] sm:$0xf]
  %v113 = vld [vmem:[%s1 + $0x168] sm:$0xf]
  %v114 = vld [vmem:[%s1 + $0x16c] sm:$0xf]
  %v115 = vld [vmem:[%s1 + $0x170] sm:$0xf]
  %v116 = vld [vmem:[%s1 + $0x174] sm:$0xf]
  %v117 = vld [vmem:[%s1 + $0x178] sm:$0xf]
  %v118 = vld [vmem:[%s1 + $0x17c] sm:$0xf]
  %v119 = vld [vmem:[%s1 + $0x180] sm:$0xf]
  %v120 = vld [vmem:[%s1 + $0x184] sm:$0xf]
  %v121 = vld [vmem:[%s1 + $0x188] sm:$0xf]
  %v122 = vld [vmem:[%s1 + $0x18c] sm:$0xf]
  %v123 = vld [vmem:[%s1 + $0x190] sm:$0xf]
  %v124 = vld [vmem:[%s1 + $0x194] sm:$0xf]
  %v125 = vld [vmem:[%s1 + $0x198] sm:$0xf]
  %v126 = vld [vmem:[%s1 + $0x19c] sm:$0xf]
  %v127 = vld [vmem:[%s1 + $0x1a0] sm:$0xf]
  %v128 = vld [vmem:[%s1 + $0x1a4] sm:$0xf]
  %v129 = vld [vmem:[%s1 + $0x1a8] sm:$0xf]
  %v130 = vld [vmem:[%s1 + $0x1ac] sm:$0xf]
  %v131 = vld [vmem:[%s1 + $0x1b0] sm:$0xf]
  %v132 = vld [vmem:[%s1 + $0x1b4] sm:$0xf]
  %v133 = vld [vmem:[%s1 + $0x1b8] sm:$0xf]
  %v134 = vld [vmem:[%s1 + $0x1bc] sm:$0xf]
  %v135 = vld [vmem:[%s1 + $0x1c0] sm:$0xf]
  %v136 = vld [vmem:[%s1 + $0x1c4] sm:$0xf]
  %v137 = vld [vmem:[%s1 + $0x1c8] sm:$0xf]
  %v138 = vld [vmem:[%s1 + $0x1cc] sm:$0xf]
  %v139 = vld [vmem:[%s1 + $0x1d0] sm:$0xf]
  %v140 = vld [vmem:[%s1 + $0x1d4] sm:$0xf]
  %v141 = vld [vmem:[%s1 + $0x1d8] sm:$0xf]
  %v142 = vld [vmem:[%s1 + $0x1dc] sm:$0xf]
  %v143 = vld [vmem:[%s1 + $0x1e0] sm:$0xf]
  %v144 = vld [vmem:[%s1 + $0x1e4] sm:$0xf]
  %v145 = vld [vmem:[%s1 + $0x1e8] sm:$0xf]
  %v146 = vld [vmem:[%s1 + $0x1ec] sm:$0xf]
  %v147 = vld [vmem:[%s1 + $0x1f0] sm:$0xf]
  %v148 = vld [vmem:[%s1 + $0x1f4] sm:$0xf]
  %v149 = vld [vmem:[%s1 + $0x1f8] sm:$0xf]
  %v150 = vld [vmem:[%s1 + $0x1fc] sm:$0xf]
  %v151 = vld [vmem:[%s1 + $0x200] sm:$0xf]
  %v152 = vld [vmem:[%s1 + $0x204] sm:$0xf]
  %v153 = vld [vmem:[%s1 + $0x208] sm:$0xf]
  %v154 = vld [vmem:[%s1 + $0x20c] sm:$0xf]
  %v155 = vld [vmem:[%s1 + $0x210] sm:$0xf]
  %v156 = vld [vmem:[%s1 + $0x214] sm:$0xf]
  %v157 = vld [vmem:[%s1 + $0x218] sm:$0xf]
  %v158 = vld [vmem:[%s1 + $0x21c] sm:$0xf]
  %v159 = vld [vmem:[%s1 + $0x220] sm:$0xf]
  %v160 = vld [vmem:[%s1 + $0x224] sm:$0xf]
  %v161 = vld [vmem:[%s1 + $0x228] sm:$0xf]
  %v162 = vld [vmem:[%s1 + $0x22c] sm:$0xf]
  %v163 = vld [vmem:[%s1 + $0x230] sm:$0xf]
  %v164 = vld [vmem:[%s1 + $0x234] sm:$0xf]
  %v165 = vld [vmem:[%s1 + $0x238] sm:$0xf]
  %v166 = vld [vmem:[%s1 + $0x23c] sm:$0xf]
  %v167 = vld [vmem:[%s1 + $0x240] sm:$0xf]
  %v168 = vld [vmem:[%s1 + $0x244] sm:$0xf]
  %v169 = vld [vmem:[%s1 + $0x248] sm:$0xf]
  %v170 = vld [vmem:[%s1 + $0x24c] sm:$0xf]
  %v171 = vld [vmem:[%s1 + $0x250] sm:$0xf]
  %v172 = vld [vmem:[%s1 + $0x254] sm:$0xf]
  %v173 = vld [vmem:[%s1 + $0x258] sm:$0xf]
  %v174 = vld [vmem:[%s1 + $0x25c] sm:$0xf]
  %v175 = vld [vmem:[%s1 + $0x260] sm:$0xf]
  %v176 = vld [vmem:[%s1 + $0x264] sm:$0xf]
  %v177 = vld [vmem:[%s1 + $0x268] sm:$0xf]
  %v178 = vld [vmem:[%s1 + $0x26c] sm:$0xf]
  %v179 = vld [vmem:[%s1 + $0x270] sm:$0xf]
  %v180 = vld [vmem:[%s1 + $0x274] sm:$0xf]
  %v181 = vld [vmem:[%s1 + $0x278] sm:$0xf]
  %v182 = vld [vmem:[%s1 + $0x27c] sm:$0xf]
  %v183 = vld [vmem:[%s1 + $0x280] sm:$0xf]
  %v184 = vld [vmem:[%s1 + $0x284] sm:$0xf]
  %v185 = vld [vmem:[%s1 + $0x288] sm:$0xf]
  %v186 = vld [vmem:[%s1 + $0x28c] sm:$0xf]
  %v187 = vld [vmem:[%s1 + $0x290] sm:$0xf]
  %v188 = vld [vmem:[%s1 + $0x294] sm:$0xf]
  %v189 = vld [vmem:[%s1 + $0x298] sm:$0xf]
  %v190 = vld [vmem:[%s1 + $0x29c] sm:$0xf]
  %v191 = vld [vmem:[%s1 + $0x2a0] sm:$0xf]
  %v192 = vld [vmem:[%s1 + $0x2a4] sm:$0xf]
  %v193 = vld [vmem:[%s1 + $0x2a8] sm:$0xf]
  %v194 = vld [vmem:[%s1 + $0x2ac] sm:$0xf]
  %v195 = vld [vmem:[%s1 + $0x2b0] sm:$0xf]
  %v196 = vld [vmem:[%s1 + $0x2b4] sm:$0xf]
  %v197 = vld [vmem:[%s1 + $0x2b8] sm:$0xf]
  %v198 = vld [vmem:[%s1 + $0x2bc] sm:$0xf]
  %v199 = vld [vmem:[%s1 + $0x2c0] sm:$0xf]
  %v200 = vld [vmem:[%s1 + $0x2c4] sm:$0xf]
  %v201 = vld [vmem:[%s1 + $0x2c8] sm:$0xf]
  %v202 = vld [vmem:[%s1 + $0x2cc] sm:$0xf]
  %v203 = vld [vmem:[%s1 + $0x2d0] sm:$0xf]
  %v204 = vld [vmem:[%s1 + $0x2d4] sm:$0xf]
  %v205 = vld [vmem:[%s1 + $0x2d8] sm:$0xf]
  %v206 = vld [vmem:[%s1 + $0x2dc] sm:$0xf]
  %v207 = vld [vmem:[%s1 + $0x2e0] sm:$0xf]
  %v208 = vld [vmem:[%s1 + $0x2e4] sm:$0xf]
  %v209 = vld [vmem:[%s1 + $0x2e8] sm:$0xf]
  %v210 = vld [vmem:[%s1 + $0x2ec] sm:$0xf]
  %v211 = vld [vmem:[%s1 + $0x2f0] sm:$0xf]
  %v212 = vld [vmem:[%s1 + $0x2f4] sm:$0xf]
  %v213 = vld [vmem:[%s1 + $0x2f8] sm:$0xf]
  %v214 = vld [vmem:[%s1 + $0x2fc] sm:$0xf]
  %v215 = vld [vmem:[%s1 + $0x300] sm:$0xf]
  %v216 = vld [vmem:[%s1 + $0x304] sm:$0xf]
  %v217 = vld [vmem:[%s1 + $0x308] sm:$0xf]
  %v218 = vld [vmem:[%s1 + $0x30c] sm:$0xf]
  %v219 = vld [vmem:[%s1 + $0x310] sm:$0xf]
  %v220 = vld [vmem:[%s1 + $0x314] sm:$0xf]
  %v221 = vld [vmem:[%s1 + $0x318] sm:$0xf]
  %v222 = vld [vmem:[%s1 + $0x31c] sm:$0xf]
  %v223 = vld [vmem:[%s1 + $0x320] sm:$0xf]
  %v224 = vld [vmem:[%s1 + $0x324] sm:$0xf]
  %v225 = vld [vmem:[%s1 + $0x328] sm:$0xf]
  %v226 = vld [vmem:[%s1 + $0x32c] sm:$0xf]
  %v227 = vld [vmem:[%s1 + $0x330] sm:$0xf]
  %v228 = vld [vmem:[%s1 + $0x334] sm:$0xf]
  %v229 = vld [vmem:[%s1 + $0x338] sm:$0xf]
  %v230 = vld [vmem:[%s1 + $0x33c] sm:$0xf]
  %v231 = vld [vmem:[%s1 + $0x340] sm:$0xf]
  %v232 = vld [vmem:[%s1 + $0x344] sm:$0xf]
  %v233 = vld [vmem:[%s1 + $0x348] sm:$0xf]
  %v234 = vld [vmem:[%s1 + $0x34c] sm:$0xf]
  %v235 = vld [vmem:[%s1 + $0x350] sm:$0xf]
  %v236 = vld [vmem:[%s1 + $0x354] sm:$0xf]
  %v237 = vld [vmem:[%s1 + $0x358] sm:$0xf]
  %v238 = vld [vmem:[%s1 + $0x35c] sm:$0xf]
  %v239 = vld [vmem:[%s1 + $0x360] sm:$0xf]
  %v240 = vld [vmem:[%s1 + $0x364] sm:$0xf]
  %v241 = vld [vmem:[%s1 + $0x368] sm:$0xf]
  %v242 = vld [vmem:[%s1 + $0x36c] sm:$0xf]
  %v243 = vld [vmem:[%s1 + $0x370] sm:$0xf]
  %v244 = vld [vmem:[%s1 + $0x374] sm:$0xf]
  %v245 = vld [vmem:[%s1 + $0x378] sm:$0xf]
  %v246 = vld [vmem:[%s1 + $0x37c] sm:$0xf]
  %v247 = vld [vmem:[%s1 + $0x380] sm:$0xf]
  %v248 = vld [vmem:[%s1 + $0x384] sm:$0xf]
  %v249 = vld [vmem:[%s1 + $0x388] sm:$0xf]
  %v250 = vld [vmem:[%s1 + $0x38c] sm:$0xf]
  %v251 = vld [vmem:[%s1 + $0x390] sm:$0xf]
  %v252 = vld [vmem:[%s1 + $0x394] sm:$0xf]
  %v253 = vld [vmem:[%s1 + $0x398] sm:$0xf]
  %v254 = vld [vmem:[%s1 + $0x39c] sm:$0xf]
  %v255 = vld [vmem:[%s1 + $0x3a0] sm:$0xf]
  %v256 = vld [vmem:[%s1 + $0x3a4] sm:$0xf]
  %v257 = vld [vmem:[%s1 + $0x3a8] sm:$0xf]
  %v258 = vld [vmem:[%s1 + $0x3ac] sm:$0xf]
  %v259 = vld [vmem:[%s1 + $0x3b0] sm:$0xf]
  %v260 = vld [vmem:[%s1 + $0x3b4] sm:$0xf]
  %v261 = vld [vmem:[%s1 + $0x3b8] sm:$0xf]
  %v262 = vld [vmem:[%s1 + $0x3bc] sm:$0xf]
  %v263 = vld [vmem:[%s1 + $0x3c0] sm:$0xf]
  %v264 = vld [vmem:[%s1 + $0x3c4] sm:$0xf]
  %v265 = vld [vmem:[%s1 + $0x3c8] sm:$0xf]
  %v266 = vld [vmem:[%s1 + $0x3cc] sm:$0xf]
  %v267 = vld [vmem:[%s1 + $0x3d0] sm:$0xf]
  %v268 = vld [vmem:[%s1 + $0x3d4] sm:$0xf]
  %v269 = vld [vmem:[%s1 + $0x3d8] sm:$0xf]
  %v270 = vld [vmem:[%s1 + $0x3dc] sm:$0xf]
  %v271 = vld [vmem:[%s1 + $0x3e0] sm:$0xf]
  %v272 = vld [vmem:[%s1 + $0x3e4] sm:$0xf]
  %v273 = vld [vmem:[%s1 + $0x3e8] sm:$0xf]
  %v274 = vld [vmem:[%s1 + $0x3ec] sm:$0xf]
  %v275 = vld [vmem:[%s1 + $0x3f0] sm:$0xf]
  %v276 = vld [vmem:[%s1 + $0x3f4] sm:$0xf]
  %v277 = vld [vmem:[%s1 + $0x3f8] sm:$0xf]
  %v278 = vld [vmem:[%s1 + $0x3fc] sm:$0xf]
  %v287 = vunpack.c.l.b16 %v15
  %v288 = vunpack.c.h.b16 %v15
  %v289 = vunpack.c.l.b16 %v16
  %v290 = vunpack.c.h.b16 %v16
  %v291 = vunpack.c.l.b16 %v17
  %v292 = vunpack.c.h.b16 %v17
  %v293 = vunpack.c.l.b16 %v18
  %v294 = vunpack.c.h.b16 %v18
  %v295 = vunpack.c.l.b16 %v19
  %v296 = vunpack.c.h.b16 %v19
  %v297 = vunpack.c.l.b16 %v20
  %v298 = vunpack.c.h.b16 %v20
  %v299 = vunpack.c.l.b16 %v21
  %v300 = vunpack.c.h.b16 %v21
  %v301 = vunpack.c.l.b16 %v22
  %v302 = vunpack.c.h.b16 %v22
  %v303 = vpack.c.b16 %v287, %v287
  %v304 = vpack.c.b16 %v288, %v288
  %v305 = vpack.c.b16 %v289, %v289
  %v306 = vpack.c.b16 %v290, %v290
  %v307 = vpack.c.b16 %v291, %v291
  %v308 = vpack.c.b16 %v292, %v292
  %v309 = vpack.c.b16 %v293, %v293
  %v310 = vpack.c.b16 %v294, %v294
  %v311 = vpack.c.b16 %v295, %v295
  %v312 = vpack.c.b16 %v296, %v296
  %v313 = vpack.c.b16 %v297, %v297
  %v314 = vpack.c.b16 %v298, %v298
  %v315 = vpack.c.b16 %v299, %v299
  %v316 = vpack.c.b16 %v300, %v300
  %v317 = vpack.c.b16 %v301, %v301
  %v318 = vpack.c.b16 %v302, %v302
  %v591 = vunpack.c.l.b16 %v23
  %v592 = vunpack.c.l.b16 %v24
  %v593 = vunpack.c.l.b16 %v25
  %v594 = vunpack.c.l.b16 %v26
  %v595 = vunpack.c.l.b16 %v27
  %v596 = vunpack.c.l.b16 %v28
  %v597 = vunpack.c.l.b16 %v29
  %v598 = vunpack.c.l.b16 %v30
  %v599 = vunpack.c.l.b16 %v31
  %v600 = vunpack.c.l.b16 %v32
  %v601 = vunpack.c.l.b16 %v33
  %v602 = vunpack.c.l.b16 %v34
  %v603 = vunpack.c.l.b16 %v35
  %v604 = vunpack.c.l.b16 %v36
  %v605 = vunpack.c.l.b16 %v37
  %v606 = vunpack.c.l.b16 %v38
  %v607 = vunpack.c.l.b16 %v39
  %v608 = vunpack.c.l.b16 %v40
  %v609 = vunpack.c.l.b16 %v41
  %v610 = vunpack.c.l.b16 %v42
  %v611 = vunpack.c.l.b16 %v43
  %v612 = vunpack.c.l.b16 %v44
  %v613 = vunpack.c.l.b16 %v45
  %v614 = vunpack.c.l.b16 %v46
  %v615 = vunpack.c.l.b16 %v47
  %v616 = vunpack.c.l.b16 %v48
  %v617 = vunpack.c.l.b16 %v49
  %v618 = vunpack.c.l.b16 %v50
  %v619 = vunpack.c.l.b16 %v51
  %v620 = vunpack.c.l.b16 %v52
  %v621 = vunpack.c.l.b16 %v53
  %v622 = vunpack.c.l.b16 %v54
  %v623 = vunpack.c.l.b16 %v55
  %v624 = vunpack.c.l.b16 %v56
  %v625 = vunpack.c.l.b16 %v57
  %v626 = vunpack.c.l.b16 %v58
  %v627 = vunpack.c.l.b16 %v59
  %v628 = vunpack.c.l.b16 %v60
  %v629 = vunpack.c.l.b16 %v61
  %v630 = vunpack.c.l.b16 %v62
  %v631 = vunpack.c.l.b16 %v63
  %v632 = vunpack.c.l.b16 %v64
  %v633 = vunpack.c.l.b16 %v65
  %v634 = vunpack.c.l.b16 %v66
  %v635 = vunpack.c.l.b16 %v67
  %v636 = vunpack.c.l.b16 %v68
  %v637 = vunpack.c.l.b16 %v69
  %v638 = vunpack.c.l.b16 %v70
  %v639 = vunpack.c.l.b16 %v71
  %v640 = vunpack.c.l.b16 %v72
  %v641 = vunpack.c.l.b16 %v73
  %v642 = vunpack.c.l.b16 %v74
  %v643 = vunpack.c.l.b16 %v75
  %v644 = vunpack.c.l.b16 %v76
  %v645 = vunpack.c.l.b16 %v77
  %v646 = vunpack.c.l.b16 %v78
  %v647 = vunpack.c.l.b16 %v79
  %v648 = vunpack.c.l.b16 %v80
  %v649 = vunpack.c.l.b16 %v81
  %v650 = vunpack.c.l.b16 %v82
  %v651 = vunpack.c.l.b16 %v83
  %v652 = vunpack.c.l.b16 %v84
  %v653 = vunpack.c.l.b16 %v85
  %v654 = vunpack.c.l.b16 %v86
  %v655 = vunpack.c.l.b16 %v87
  %v656 = vunpack.c.l.b16 %v88
  %v657 = vunpack.c.l.b16 %v89
  %v658 = vunpack.c.l.b16 %v90
  %v659 = vunpack.c.l.b16 %v91
  %v660 = vunpack.c.l.b16 %v92
  %v661 = vunpack.c.l.b16 %v93
  %v662 = vunpack.c.l.b16 %v94
  %v663 = vunpack.c.l.b16 %v95
  %v664 = vunpack.c.l.b16 %v96
  %v665 = vunpack.c.l.b16 %v97
  %v666 = vunpack.c.l.b16 %v98
  %v667 = vunpack.c.l.b16 %v99
  %v668 = vunpack.c.l.b16 %v100
  %v669 = vunpack.c.l.b16 %v101
  %v670 = vunpack.c.l.b16 %v102
  %v671 = vunpack.c.l.b16 %v103
  %v672 = vunpack.c.l.b16 %v104
  %v673 = vunpack.c.l.b16 %v105
  %v674 = vunpack.c.l.b16 %v106
  %v675 = vunpack.c.l.b16 %v107
  %v676 = vunpack.c.l.b16 %v108
  %v677 = vunpack.c.l.b16 %v109
  %v678 = vunpack.c.l.b16 %v110
  %v679 = vunpack.c.l.b16 %v111
  %v680 = vunpack.c.l.b16 %v112
  %v681 = vunpack.c.l.b16 %v113
  %v682 = vunpack.c.l.b16 %v114
  %v683 = vunpack.c.l.b16 %v115
  %v684 = vunpack.c.l.b16 %v116
  %v685 = vunpack.c.l.b16 %v117
  %v686 = vunpack.c.l.b16 %v118
  %v687 = vunpack.c.l.b16 %v119
  %v688 = vunpack.c.l.b16 %v120
  %v689 = vunpack.c.l.b16 %v121
  %v690 = vunpack.c.l.b16 %v122
  %v691 = vunpack.c.l.b16 %v123
  %v692 = vunpack.c.l.b16 %v124
  %v693 = vunpack.c.l.b16 %v125
  %v694 = vunpack.c.l.b16 %v126
  %v695 = vunpack.c.l.b16 %v127
  %v696 = vunpack.c.l.b16 %v128
  %v697 = vunpack.c.l.b16 %v129
  %v698 = vunpack.c.l.b16 %v130
  %v699 = vunpack.c.l.b16 %v131
  %v700 = vunpack.c.l.b16 %v132
  %v701 = vunpack.c.l.b16 %v133
  %v702 = vunpack.c.l.b16 %v134
  %v703 = vunpack.c.l.b16 %v135
  %v704 = vunpack.c.l.b16 %v136
  %v705 = vunpack.c.l.b16 %v137
  %v706 = vunpack.c.l.b16 %v138
  %v707 = vunpack.c.l.b16 %v139
  %v708 = vunpack.c.l.b16 %v140
  %v709 = vunpack.c.l.b16 %v141
  %v710 = vunpack.c.l.b16 %v142
  %v711 = vunpack.c.l.b16 %v143
  %v712 = vunpack.c.l.b16 %v144
  %v713 = vunpack.c.l.b16 %v145
  %v714 = vunpack.c.l.b16 %v146
  %v715 = vunpack.c.l.b16 %v147
  %v716 = vunpack.c.l.b16 %v148
  %v717 = vunpack.c.l.b16 %v149
  %v718 = vunpack.c.l.b16 %v150
  %v719 = vunpack.c.l.b16 %v151
  %v720 = vunpack.c.l.b16 %v152
  %v721 = vunpack.c.l.b16 %v153
  %v722 = vunpack.c.l.b16 %v154
  %v723 = vunpack.c.l.b16 %v155
  %v724 = vunpack.c.l.b16 %v156
  %v725 = vunpack.c.l.b16 %v157
  %v726 = vunpack.c.l.b16 %v158
  %v727 = vunpack.c.l.b16 %v159
  %v728 = vunpack.c.l.b16 %v160
  %v729 = vunpack.c.l.b16 %v161
  %v730 = vunpack.c.l.b16 %v162
  %v731 = vunpack.c.l.b16 %v163
  %v732 = vunpack.c.l.b16 %v164
  %v733 = vunpack.c.l.b16 %v165
  %v734 = vunpack.c.l.b16 %v166
  %v735 = vunpack.c.l.b16 %v167
  %v736 = vunpack.c.l.b16 %v168
  %v737 = vunpack.c.l.b16 %v169
  %v738 = vunpack.c.l.b16 %v170
  %v739 = vunpack.c.l.b16 %v171
  %v740 = vunpack.c.l.b16 %v172
  %v741 = vunpack.c.l.b16 %v173
  %v742 = vunpack.c.l.b16 %v174
  %v743 = vunpack.c.l.b16 %v175
  %v744 = vunpack.c.l.b16 %v176
  %v745 = vunpack.c.l.b16 %v177
  %v746 = vunpack.c.l.b16 %v178
  %v747 = vunpack.c.l.b16 %v179
  %v748 = vunpack.c.l.b16 %v180
  %v749 = vunpack.c.l.b16 %v181
  %v750 = vunpack.c.l.b16 %v182
  %v751 = vunpack.c.l.b16 %v183
  %v752 = vunpack.c.l.b16 %v184
  %v753 = vunpack.c.l.b16 %v185
  %v754 = vunpack.c.l.b16 %v186
  %v755 = vunpack.c.l.b16 %v187
  %v756 = vunpack.c.l.b16 %v188
  %v757 = vunpack.c.l.b16 %v189
  %v758 = vunpack.c.l.b16 %v190
  %v759 = vunpack.c.l.b16 %v191
  %v760 = vunpack.c.l.b16 %v192
  %v761 = vunpack.c.l.b16 %v193
  %v762 = vunpack.c.l.b16 %v194
  %v763 = vunpack.c.l.b16 %v195
  %v764 = vunpack.c.l.b16 %v196
  %v765 = vunpack.c.l.b16 %v197
  %v766 = vunpack.c.l.b16 %v198
  %v767 = vunpack.c.l.b16 %v199
  %v768 = vunpack.c.l.b16 %v200
  %v769 = vunpack.c.l.b16 %v201
  %v770 = vunpack.c.l.b16 %v202
  %v771 = vunpack.c.l.b16 %v203
  %v772 = vunpack.c.l.b16 %v204
  %v773 = vunpack.c.l.b16 %v205
  %v774 = vunpack.c.l.b16 %v206
  %v775 = vunpack.c.l.b16 %v207
  %v776 = vunpack.c.l.b16 %v208
  %v777 = vunpack.c.l.b16 %v209
  %v778 = vunpack.c.l.b16 %v210
  %v779 = vunpack.c.l.b16 %v211
  %v780 = vunpack.c.l.b16 %v212
  %v781 = vunpack.c.l.b16 %v213
  %v782 = vunpack.c.l.b16 %v214
  %v783 = vunpack.c.l.b16 %v215
  %v784 = vunpack.c.l.b16 %v216
  %v785 = vunpack.c.l.b16 %v217
  %v786 = vunpack.c.l.b16 %v218
  %v787 = vunpack.c.l.b16 %v219
  %v788 = vunpack.c.l.b16 %v220
  %v789 = vunpack.c.l.b16 %v221
  %v790 = vunpack.c.l.b16 %v222
  %v791 = vunpack.c.l.b16 %v223
  %v792 = vunpack.c.l.b16 %v224
  %v793 = vunpack.c.l.b16 %v225
  %v794 = vunpack.c.l.b16 %v226
  %v795 = vunpack.c.l.b16 %v227
  %v796 = vunpack.c.l.b16 %v228
  %v797 = vunpack.c.l.b16 %v229
  %v798 = vunpack.c.l.b16 %v230
  %v799 = vunpack.c.l.b16 %v231
  %v800 = vunpack.c.l.b16 %v232
  %v801 = vunpack.c.l.b16 %v233
  %v802 = vunpack.c.l.b16 %v234
  %v803 = vunpack.c.l.b16 %v235
  %v804 = vunpack.c.l.b16 %v236
  %v805 = vunpack.c.l.b16 %v237
  %v806 = vunpack.c.l.b16 %v238
  %v807 = vunpack.c.l.b16 %v239
  %v808 = vunpack.c.l.b16 %v240
  %v809 = vunpack.c.l.b16 %v241
  %v810 = vunpack.c.l.b16 %v242
  %v811 = vunpack.c.l.b16 %v243
  %v812 = vunpack.c.l.b16 %v244
  %v813 = vunpack.c.l.b16 %v245
  %v814 = vunpack.c.l.b16 %v246
  %v815 = vunpack.c.l.b16 %v247
  %v816 = vunpack.c.l.b16 %v248
  %v817 = vunpack.c.l.b16 %v249
  %v818 = vunpack.c.l.b16 %v250
  %v819 = vunpack.c.l.b16 %v251
  %v820 = vunpack.c.l.b16 %v252
  %v821 = vunpack.c.l.b16 %v253
  %v822 = vunpack.c.l.b16 %v254
  %v823 = vunpack.c.l.b16 %v255
  %v824 = vunpack.c.l.b16 %v256
  %v825 = vunpack.c.l.b16 %v257
  %v826 = vunpack.c.l.b16 %v258
  %v827 = vunpack.c.l.b16 %v259
  %v828 = vunpack.c.l.b16 %v260
  %v829 = vunpack.c.l.b16 %v261
  %v830 = vunpack.c.l.b16 %v262
  %v831 = vunpack.c.l.b16 %v263
  %v832 = vunpack.c.l.b16 %v264
  %v833 = vunpack.c.l.b16 %v265
  %v834 = vunpack.c.l.b16 %v266
  %v835 = vunpack.c.l.b16 %v267
  %v836 = vunpack.c.l.b16 %v268
  %v837 = vunpack.c.l.b16 %v269
  %v838 = vunpack.c.l.b16 %v270
  %v839 = vunpack.c.l.b16 %v271
  %v840 = vunpack.c.l.b16 %v272
  %v841 = vunpack.c.l.b16 %v273
  %v842 = vunpack.c.l.b16 %v274
  %v843 = vunpack.c.l.b16 %v275
  %v844 = vunpack.c.l.b16 %v276
  %v845 = vunpack.c.l.b16 %v277
  %v846 = vunpack.c.l.b16 %v278
  %v847 = vpack.c.b16 %v592, %v591
  %v848 = vpack.c.b16 %v594, %v593
  %v849 = vpack.c.b16 %v596, %v595
  %v850 = vpack.c.b16 %v598, %v597
  %v851 = vpack.c.b16 %v600, %v599
  %v852 = vpack.c.b16 %v602, %v601
  %v853 = vpack.c.b16 %v604, %v603
  %v854 = vpack.c.b16 %v606, %v605
  %v855 = vpack.c.b16 %v608, %v607
  %v856 = vpack.c.b16 %v610, %v609
  %v857 = vpack.c.b16 %v612, %v611
  %v858 = vpack.c.b16 %v614, %v613
  %v859 = vpack.c.b16 %v616, %v615
  %v860 = vpack.c.b16 %v618, %v617
  %v861 = vpack.c.b16 %v620, %v619
  %v862 = vpack.c.b16 %v622, %v621
  %v863 = vpack.c.b16 %v624, %v623
  %v864 = vpack.c.b16 %v626, %v625
  %v865 = vpack.c.b16 %v628, %v627
  %v866 = vpack.c.b16 %v630, %v629
  %v867 = vpack.c.b16 %v632, %v631
  %v868 = vpack.c.b16 %v634, %v633
  %v869 = vpack.c.b16 %v636, %v635
  %v870 = vpack.c.b16 %v638, %v637
  %v871 = vpack.c.b16 %v640, %v639
  %v872 = vpack.c.b16 %v642, %v641
  %v873 = vpack.c.b16 %v644, %v643
  %v874 = vpack.c.b16 %v646, %v645
  %v875 = vpack.c.b16 %v648, %v647
  %v876 = vpack.c.b16 %v650, %v649
  %v877 = vpack.c.b16 %v652, %v651
  %v878 = vpack.c.b16 %v654, %v653
  %v879 = vpack.c.b16 %v656, %v655
  %v880 = vpack.c.b16 %v658, %v657
  %v881 = vpack.c.b16 %v660, %v659
  %v882 = vpack.c.b16 %v662, %v661
  %v883 = vpack.c.b16 %v664, %v663
  %v884 = vpack.c.b16 %v666, %v665
  %v885 = vpack.c.b16 %v668, %v667
  %v886 = vpack.c.b16 %v670, %v669
  %v887 = vpack.c.b16 %v672, %v671
  %v888 = vpack.c.b16 %v674, %v673
  %v889 = vpack.c.b16 %v676, %v675
  %v890 = vpack.c.b16 %v678, %v677
  %v891 = vpack.c.b16 %v680, %v679
  %v892 = vpack.c.b16 %v682, %v681
  %v893 = vpack.c.b16 %v684, %v683
  %v894 = vpack.c.b16 %v686, %v685
  %v895 = vpack.c.b16 %v688, %v687
  %v896 = vpack.c.b16 %v690, %v689
  %v897 = vpack.c.b16 %v692, %v691
  %v898 = vpack.c.b16 %v694, %v693
  %v899 = vpack.c.b16 %v696, %v695
  %v900 = vpack.c.b16 %v698, %v697
  %v901 = vpack.c.b16 %v700, %v699
  %v902 = vpack.c.b16 %v702, %v701
  %v903 = vpack.c.b16 %v704, %v703
  %v904 = vpack.c.b16 %v706, %v705
  %v905 = vpack.c.b16 %v708, %v707
  %v906 = vpack.c.b16 %v710, %v709
  %v907 = vpack.c.b16 %v712, %v711
  %v908 = vpack.c.b16 %v714, %v713
  %v909 = vpack.c.b16 %v716, %v715
  %v910 = vpack.c.b16 %v718, %v717
  %v911 = vpack.c.b16 %v720, %v719
  %v912 = vpack.c.b16 %v722, %v721
  %v913 = vpack.c.b16 %v724, %v723
  %v914 = vpack.c.b16 %v726, %v725
  %v915 = vpack.c.b16 %v728, %v727
  %v916 = vpack.c.b16 %v730, %v729
  %v917 = vpack.c.b16 %v732, %v731
  %v918 = vpack.c.b16 %v734, %v733
  %v919 = vpack.c.b16 %v736, %v735
  %v920 = vpack.c.b16 %v738, %v737
  %v921 = vpack.c.b16 %v740, %v739
  %v922 = vpack.c.b16 %v742, %v741
  %v923 = vpack.c.b16 %v744, %v743
  %v924 = vpack.c.b16 %v746, %v745
  %v925 = vpack.c.b16 %v748, %v747
  %v926 = vpack.c.b16 %v750, %v749
  %v927 = vpack.c.b16 %v752, %v751
  %v928 = vpack.c.b16 %v754, %v753
  %v929 = vpack.c.b16 %v756, %v755
  %v930 = vpack.c.b16 %v758, %v757
  %v931 = vpack.c.b16 %v760, %v759
  %v932 = vpack.c.b16 %v762, %v761
  %v933 = vpack.c.b16 %v764, %v763
  %v934 = vpack.c.b16 %v766, %v765
  %v935 = vpack.c.b16 %v768, %v767
  %v936 = vpack.c.b16 %v770, %v769
  %v937 = vpack.c.b16 %v772, %v771
  %v938 = vpack.c.b16 %v774, %v773
  %v939 = vpack.c.b16 %v776, %v775
  %v940 = vpack.c.b16 %v778, %v777
  %v941 = vpack.c.b16 %v780, %v779
  %v942 = vpack.c.b16 %v782, %v781
  %v943 = vpack.c.b16 %v784, %v783
  %v944 = vpack.c.b16 %v786, %v785
  %v945 = vpack.c.b16 %v788, %v787
  %v946 = vpack.c.b16 %v790, %v789
  %v947 = vpack.c.b16 %v792, %v791
  %v948 = vpack.c.b16 %v794, %v793
  %v949 = vpack.c.b16 %v796, %v795
  %v950 = vpack.c.b16 %v798, %v797
  %v951 = vpack.c.b16 %v800, %v799
  %v952 = vpack.c.b16 %v802, %v801
  %v953 = vpack.c.b16 %v804, %v803
  %v954 = vpack.c.b16 %v806, %v805
  %v955 = vpack.c.b16 %v808, %v807
  %v956 = vpack.c.b16 %v810, %v809
  %v957 = vpack.c.b16 %v812, %v811
  %v958 = vpack.c.b16 %v814, %v813
  %v959 = vpack.c.b16 %v816, %v815
  %v960 = vpack.c.b16 %v818, %v817
  %v961 = vpack.c.b16 %v820, %v819
  %v962 = vpack.c.b16 %v822, %v821
  %v963 = vpack.c.b16 %v824, %v823
  %v964 = vpack.c.b16 %v826, %v825
  %v965 = vpack.c.b16 %v828, %v827
  %v966 = vpack.c.b16 %v830, %v829
  %v967 = vpack.c.b16 %v832, %v831
  %v968 = vpack.c.b16 %v834, %v833
  %v969 = vpack.c.b16 %v836, %v835
  %v970 = vpack.c.b16 %v838, %v837
  %v971 = vpack.c.b16 %v840, %v839
  %v972 = vpack.c.b16 %v842, %v841
  %v973 = vpack.c.b16 %v844, %v843
  %v974 = vpack.c.b16 %v846, %v845
  %1103 = vmatprep.subr.bf16.mxu0 0
  %1104 = vmatpush1.bf16.msra.mxu0 %v854
  %1105 = vmatprep.subr.bf16.mxu0 0
  %1106 = vmatpush1.bf16.msra.mxu0 %v853
  %1107 = vmatprep.subr.bf16.mxu0 0
  %1108 = vmatpush1.bf16.msra.mxu0 %v852
  %1109 = vmatprep.subr.bf16.mxu0 0
  %1110 = vmatpush1.bf16.msra.mxu0 %v851
  %1111 = vmatprep.subr.bf16.mxu0 0
  %1112 = vmatpush1.bf16.msra.mxu0 %v850
  %1113 = vmatprep.subr.bf16.mxu0 0
  %1114 = vmatpush1.bf16.msra.mxu0 %v849
  %1115 = vmatprep.subr.bf16.mxu0 0
  %1116 = vmatpush1.bf16.msra.mxu0 %v848
  %1117 = vmatprep.subr.bf16.mxu0 0
  %1118 = vmatpush1.bf16.msra.mxu0 %v847
  %1119 = vmatprep.subr.bf16.mxu0 0
  %1120 = vmatpush2.bf16.msra.mxu0 %v862
  %1121 = vmatprep.subr.bf16.mxu0 0
  %1122 = vmatpush2.bf16.msra.mxu0 %v861
  %1123 = vmatprep.subr.bf16.mxu0 0
  %1124 = vmatpush2.bf16.msra.mxu0 %v860
  %1125 = vmatprep.subr.bf16.mxu0 0
  %1126 = vmatpush2.bf16.msra.mxu0 %v859
  %1127 = vmatprep.subr.bf16.mxu0 0
  %1128 = vmatpush2.bf16.msra.mxu0 %v858
  %1129 = vmatprep.subr.bf16.mxu0 0
  %1130 = vmatpush2.bf16.msra.mxu0 %v857
  %1131 = vmatprep.subr.bf16.mxu0 0
  %1132 = vmatpush2.bf16.msra.mxu0 %v856
  %1133 = vmatprep.subr.bf16.mxu0 0
  %1134 = vmatpush2.bf16.msra.mxu0 %v855
  %1135 = vmatprep.mubr.bf16.mxu0 %v304
  %1136 = vmatmul.mubr.bf16.gmra.mxu0 %v303
  %v1137 = vpop.f32.mrf.mxu0
  %v1138 = vadd.f32 0.0, %v1137
  %v1139 = vpop.f32.mrf.mxu0
  %v1140 = vpop.f32.mrf.mxu0
  %v1141 = vpop.f32.mrf.mxu0
  %1142 = vdwg.mxu0
  %1143 = vmatprep.subr.bf16.mxu0 0
  %1144 = vmatpush1.bf16.msra.mxu0 %v870
  %1145 = vmatprep.subr.bf16.mxu0 0
  %1146 = vmatpush1.bf16.msra.mxu0 %v869
  %1147 = vmatprep.subr.bf16.mxu0 0
  %1148 = vmatpush1.bf16.msra.mxu0 %v868
  %1149 = vmatprep.subr.bf16.mxu0 0
  %1150 = vmatpush1.bf16.msra.mxu0 %v867
  %1151 = vmatprep.subr.bf16.mxu0 0
  %1152 = vmatpush1.bf16.msra.mxu0 %v866
  %1153 = vmatprep.subr.bf16.mxu0 0
  %1154 = vmatpush1.bf16.msra.mxu0 %v865
  %1155 = vmatprep.subr.bf16.mxu0 0
  %1156 = vmatpush1.bf16.msra.mxu0 %v864
  %1157 = vmatprep.subr.bf16.mxu0 0
  %1158 = vmatpush1.bf16.msra.mxu0 %v863
  %1159 = vmatprep.subr.bf16.mxu0 0
  %1160 = vmatpush2.bf16.msra.mxu0 %v878
  %1161 = vmatprep.subr.bf16.mxu0 0
  %1162 = vmatpush2.bf16.msra.mxu0 %v877
  %1163 = vmatprep.subr.bf16.mxu0 0
  %1164 = vmatpush2.bf16.msra.mxu0 %v876
  %1165 = vmatprep.subr.bf16.mxu0 0
  %1166 = vmatpush2.bf16.msra.mxu0 %v875
  %1167 = vmatprep.subr.bf16.mxu0 0
  %1168 = vmatpush2.bf16.msra.mxu0 %v874
  %1169 = vmatprep.subr.bf16.mxu0 0
  %1170 = vmatpush2.bf16.msra.mxu0 %v873
  %1171 = vmatprep.subr.bf16.mxu0 0
  %1172 = vmatpush2.bf16.msra.mxu0 %v872
  %1173 = vmatprep.subr.bf16.mxu0 0
  %1174 = vmatpush2.bf16.msra.mxu0 %v871
  %1175 = vmatprep.mubr.bf16.mxu0 %v306
  %1176 = vmatmul.mubr.bf16.gmra.mxu0 %v305
  %v1177 = vpop.f32.mrf.mxu0
  %v1178 = vadd.f32 %v1138, %v1177
  %v1179 = vpop.f32.mrf.mxu0
  %v1180 = vpop.f32.mrf.mxu0
  %v1181 = vpop.f32.mrf.mxu0
  %1182 = vdwg.mxu0
  %1183 = vmatprep.subr.bf16.mxu0 0
  %1184 = vmatpush1.bf16.msra.mxu0 %v886
  %1185 = vmatprep.subr.bf16.mxu0 0
  %1186 = vmatpush1.bf16.msra.mxu0 %v885
  %1187 = vmatprep.subr.bf16.mxu0 0
  %1188 = vmatpush1.bf16.msra.mxu0 %v884
  %1189 = vmatprep.subr.bf16.mxu0 0
  %1190 = vmatpush1.bf16.msra.mxu0 %v883
  %1191 = vmatprep.subr.bf16.mxu0 0
  %1192 = vmatpush1.bf16.msra.mxu0 %v882
  %1193 = vmatprep.subr.bf16.mxu0 0
  %1194 = vmatpush1.bf16.msra.mxu0 %v881
  %1195 = vmatprep.subr.bf16.mxu0 0
  %1196 = vmatpush1.bf16.msra.mxu0 %v880
  %1197 = vmatprep.subr.bf16.mxu0 0
  %1198 = vmatpush1.bf16.msra.mxu0 %v879
  %1199 = vmatprep.subr.bf16.mxu0 0
  %1200 = vmatpush2.bf16.msra.mxu0 %v894
  %1201 = vmatprep.subr.bf16.mxu0 0
  %1202 = vmatpush2.bf16.msra.mxu0 %v893
  %1203 = vmatprep.subr.bf16.mxu0 0
  %1204 = vmatpush2.bf16.msra.mxu0 %v892
  %1205 = vmatprep.subr.bf16.mxu0 0
  %1206 = vmatpush2.bf16.msra.mxu0 %v891
  %1207 = vmatprep.subr.bf16.mxu0 0
  %1208 = vmatpush2.bf16.msra.mxu0 %v890
  %1209 = vmatprep.subr.bf16.mxu0 0
  %1210 = vmatpush2.bf16.msra.mxu0 %v889
  %1211 = vmatprep.subr.bf16.mxu0 0
  %1212 = vmatpush2.bf16.msra.mxu0 %v888
  %1213 = vmatprep.subr.bf16.mxu0 0
  %1214 = vmatpush2.bf16.msra.mxu0 %v887
  %1215 = vmatprep.mubr.bf16.mxu0 %v308
  %1216 = vmatmul.mubr.bf16.gmra.mxu0 %v307
  %v1217 = vpop.f32.mrf.mxu0
  %v1218 = vadd.f32 %v1178, %v1217
  %v1219 = vpop.f32.mrf.mxu0
  %v1220 = vpop.f32.mrf.mxu0
  %v1221 = vpop.f32.mrf.mxu0
  %1222 = vdwg.mxu0
  %1223 = vmatprep.subr.bf16.mxu0 0
  %1224 = vmatpush1.bf16.msra.mxu0 %v902
  %1225 = vmatprep.subr.bf16.mxu0 0
  %1226 = vmatpush1.bf16.msra.mxu0 %v901
  %1227 = vmatprep.subr.bf16.mxu0 0
  %1228 = vmatpush1.bf16.msra.mxu0 %v900
  %1229 = vmatprep.subr.bf16.mxu0 0
  %1230 = vmatpush1.bf16.msra.mxu0 %v899
  %1231 = vmatprep.subr.bf16.mxu0 0
  %1232 = vmatpush1.bf16.msra.mxu0 %v898
  %1233 = vmatprep.subr.bf16.mxu0 0
  %1234 = vmatpush1.bf16.msra.mxu0 %v897
  %1235 = vmatprep.subr.bf16.mxu0 0
  %1236 = vmatpush1.bf16.msra.mxu0 %v896
  %1237 = vmatprep.subr.bf16.mxu0 0
  %1238 = vmatpush1.bf16.msra.mxu0 %v895
  %1239 = vmatprep.subr.bf16.mxu0 0
  %1240 = vmatpush2.bf16.msra.mxu0 %v910
  %1241 = vmatprep.subr.bf16.mxu0 0
  %1242 = vmatpush2.bf16.msra.mxu0 %v909
  %1243 = vmatprep.subr.bf16.mxu0 0
  %1244 = vmatpush2.bf16.msra.mxu0 %v908
  %1245 = vmatprep.subr.bf16.mxu0 0
  %1246 = vmatpush2.bf16.msra.mxu0 %v907
  %1247 = vmatprep.subr.bf16.mxu0 0
  %1248 = vmatpush2.bf16.msra.mxu0 %v906
  %1249 = vmatprep.subr.bf16.mxu0 0
  %1250 = vmatpush2.bf16.msra.mxu0 %v905
  %1251 = vmatprep.subr.bf16.mxu0 0
  %1252 = vmatpush2.bf16.msra.mxu0 %v904
  %1253 = vmatprep.subr.bf16.mxu0 0
  %1254 = vmatpush2.bf16.msra.mxu0 %v903
  %1255 = vmatprep.mubr.bf16.mxu0 %v310
  %1256 = vmatmul.mubr.bf16.gmra.mxu0 %v309
  %v1257 = vpop.f32.mrf.mxu0
  %v1258 = vadd.f32 %v1218, %v1257
  %v1259 = vpop.f32.mrf.mxu0
  %v1260 = vpop.f32.mrf.mxu0
  %v1261 = vpop.f32.mrf.mxu0
  %1262 = vdwg.mxu0
  %1263 = vmatprep.subr.bf16.mxu0 0
  %1264 = vmatpush1.bf16.msra.mxu0 %v918
  %1265 = vmatprep.subr.bf16.mxu0 0
  %1266 = vmatpush1.bf16.msra.mxu0 %v917
  %1267 = vmatprep.subr.bf16.mxu0 0
  %1268 = vmatpush1.bf16.msra.mxu0 %v916
  %1269 = vmatprep.subr.bf16.mxu0 0
  %1270 = vmatpush1.bf16.msra.mxu0 %v915
  %1271 = vmatprep.subr.bf16.mxu0 0
  %1272 = vmatpush1.bf16.msra.mxu0 %v914
  %1273 = vmatprep.subr.bf16.mxu0 0
  %1274 = vmatpush1.bf16.msra.mxu0 %v913
  %1275 = vmatprep.subr.bf16.mxu0 0
  %1276 = vmatpush1.bf16.msra.mxu0 %v912
  %1277 = vmatprep.subr.bf16.mxu0 0
  %1278 = vmatpush1.bf16.msra.mxu0 %v911
  %1279 = vmatprep.subr.bf16.mxu0 0
  %1280 = vmatpush2.bf16.msra.mxu0 %v926
  %1281 = vmatprep.subr.bf16.mxu0 0
  %1282 = vmatpush2.bf16.msra.mxu0 %v925
  %1283 = vmatprep.subr.bf16.mxu0 0
  %1284 = vmatpush2.bf16.msra.mxu0 %v924
  %1285 = vmatprep.subr.bf16.mxu0 0
  %1286 = vmatpush2.bf16.msra.mxu0 %v923
  %1287 = vmatprep.subr.bf16.mxu0 0
  %1288 = vmatpush2.bf16.msra.mxu0 %v922
  %1289 = vmatprep.subr.bf16.mxu0 0
  %1290 = vmatpush2.bf16.msra.mxu0 %v921
  %1291 = vmatprep.subr.bf16.mxu0 0
  %1292 = vmatpush2.bf16.msra.mxu0 %v920
  %1293 = vmatprep.subr.bf16.mxu0 0
  %1294 = vmatpush2.bf16.msra.mxu0 %v919
  %1295 = vmatprep.mubr.bf16.mxu0 %v312
  %1296 = vmatmul.mubr.bf16.gmra.mxu0 %v311
  %v1297 = vpop.f32.mrf.mxu0
  %v1298 = vadd.f32 %v1258, %v1297
  %v1299 = vpop.f32.mrf.mxu0
  %v1300 = vpop.f32.mrf.mxu0
  %v1301 = vpop.f32.mrf.mxu0
  %1302 = vdwg.mxu0
  %1303 = vmatprep.subr.bf16.mxu0 0
  %1304 = vmatpush1.bf16.msra.mxu0 %v934
  %1305 = vmatprep.subr.bf16.mxu0 0
  %1306 = vmatpush1.bf16.msra.mxu0 %v933
  %1307 = vmatprep.subr.bf16.mxu0 0
  %1308 = vmatpush1.bf16.msra.mxu0 %v932
  %1309 = vmatprep.subr.bf16.mxu0 0
  %1310 = vmatpush1.bf16.msra.mxu0 %v931
  %1311 = vmatprep.subr.bf16.mxu0 0
  %1312 = vmatpush1.bf16.msra.mxu0 %v930
  %1313 = vmatprep.subr.bf16.mxu0 0
  %1314 = vmatpush1.bf16.msra.mxu0 %v929
  %1315 = vmatprep.subr.bf16.mxu0 0
  %1316 = vmatpush1.bf16.msra.mxu0 %v928
  %1317 = vmatprep.subr.bf16.mxu0 0
  %1318 = vmatpush1.bf16.msra.mxu0 %v927
  %1319 = vmatprep.subr.bf16.mxu0 0
  %1320 = vmatpush2.bf16.msra.mxu0 %v942
  %1321 = vmatprep.subr.bf16.mxu0 0
  %1322 = vmatpush2.bf16.msra.mxu0 %v941
  %1323 = vmatprep.subr.bf16.mxu0 0
  %1324 = vmatpush2.bf16.msra.mxu0 %v940
  %1325 = vmatprep.subr.bf16.mxu0 0
  %1326 = vmatpush2.bf16.msra.mxu0 %v939
  %1327 = vmatprep.subr.bf16.mxu0 0
  %1328 = vmatpush2.bf16.msra.mxu0 %v938
  %1329 = vmatprep.subr.bf16.mxu0 0
  %1330 = vmatpush2.bf16.msra.mxu0 %v937
  %1331 = vmatprep.subr.bf16.mxu0 0
  %1332 = vmatpush2.bf16.msra.mxu0 %v936
  %1333 = vmatprep.subr.bf16.mxu0 0
  %1334 = vmatpush2.bf16.msra.mxu0 %v935
  %1335 = vmatprep.mubr.bf16.mxu0 %v314
  %1336 = vmatmul.mubr.bf16.gmra.mxu0 %v313
  %v1337 = vpop.f32.mrf.mxu0
  %v1338 = vadd.f32 %v1298, %v1337
  %v1339 = vpop.f32.mrf.mxu0
  %v1340 = vpop.f32.mrf.mxu0
  %v1341 = vpop.f32.mrf.mxu0
  %1342 = vdwg.mxu0
  %1343 = vmatprep.subr.bf16.mxu0 0
  %1344 = vmatpush1.bf16.msra.mxu0 %v950
  %1345 = vmatprep.subr.bf16.mxu0 0
  %1346 = vmatpush1.bf16.msra.mxu0 %v949
  %1347 = vmatprep.subr.bf16.mxu0 0
  %1348 = vmatpush1.bf16.msra.mxu0 %v948
  %1349 = vmatprep.subr.bf16.mxu0 0
  %1350 = vmatpush1.bf16.msra.mxu0 %v947
  %1351 = vmatprep.subr.bf16.mxu0 0
  %1352 = vmatpush1.bf16.msra.mxu0 %v946
  %1353 = vmatprep.subr.bf16.mxu0 0
  %1354 = vmatpush1.bf16.msra.mxu0 %v945
  %1355 = vmatprep.subr.bf16.mxu0 0
  %1356 = vmatpush1.bf16.msra.mxu0 %v944
  %1357 = vmatprep.subr.bf16.mxu0 0
  %1358 = vmatpush1.bf16.msra.mxu0 %v943
  %1359 = vmatprep.subr.bf16.mxu0 0
  %1360 = vmatpush2.bf16.msra.mxu0 %v958
  %1361 = vmatprep.subr.bf16.mxu0 0
  %1362 = vmatpush2.bf16.msra.mxu0 %v957
  %1363 = vmatprep.subr.bf16.mxu0 0
  %1364 = vmatpush2.bf16.msra.mxu0 %v956
  %1365 = vmatprep.subr.bf16.mxu0 0
  %1366 = vmatpush2.bf16.msra.mxu0 %v955
  %1367 = vmatprep.subr.bf16.mxu0 0
  %1368 = vmatpush2.bf16.msra.mxu0 %v954
  %1369 = vmatprep.subr.bf16.mxu0 0
  %1370 = vmatpush2.bf16.msra.mxu0 %v953
  %1371 = vmatprep.subr.bf16.mxu0 0
  %1372 = vmatpush2.bf16.msra.mxu0 %v952
  %1373 = vmatprep.subr.bf16.mxu0 0
  %1374 = vmatpush2.bf16.msra.mxu0 %v951
  %1375 = vmatprep.mubr.bf16.mxu0 %v316
  %1376 = vmatmul.mubr.bf16.gmra.mxu0 %v315
  %v1377 = vpop.f32.mrf.mxu0
  %v1378 = vadd.f32 %v1338, %v1377
  %v1379 = vpop.f32.mrf.mxu0
  %v1380 = vpop.f32.mrf.mxu0
  %v1381 = vpop.f32.mrf.mxu0
  %1382 = vdwg.mxu0
  %1383 = vmatprep.subr.bf16.mxu0 0
  %1384 = vmatpush1.bf16.msra.mxu0 %v966
  %1385 = vmatprep.subr.bf16.mxu0 0
  %1386 = vmatpush1.bf16.msra.mxu0 %v965
  %1387 = vmatprep.subr.bf16.mxu0 0
  %1388 = vmatpush1.bf16.msra.mxu0 %v964
  %1389 = vmatprep.subr.bf16.mxu0 0
  %1390 = vmatpush1.bf16.msra.mxu0 %v963
  %1391 = vmatprep.subr.bf16.mxu0 0
  %1392 = vmatpush1.bf16.msra.mxu0 %v962
  %1393 = vmatprep.subr.bf16.mxu0 0
  %1394 = vmatpush1.bf16.msra.mxu0 %v961
  %1395 = vmatprep.subr.bf16.mxu0 0
  %1396 = vmatpush1.bf16.msra.mxu0 %v960
  %1397 = vmatprep.subr.bf16.mxu0 0
  %1398 = vmatpush1.bf16.msra.mxu0 %v959
  %1399 = vmatprep.subr.bf16.mxu0 0
  %1400 = vmatpush2.bf16.msra.mxu0 %v974
  %1401 = vmatprep.subr.bf16.mxu0 0
  %1402 = vmatpush2.bf16.msra.mxu0 %v973
  %1403 = vmatprep.subr.bf16.mxu0 0
  %1404 = vmatpush2.bf16.msra.mxu0 %v972
  %1405 = vmatprep.subr.bf16.mxu0 0
  %1406 = vmatpush2.bf16.msra.mxu0 %v971
  %1407 = vmatprep.subr.bf16.mxu0 0
  %1408 = vmatpush2.bf16.msra.mxu0 %v970
  %1409 = vmatprep.subr.bf16.mxu0 0
  %1410 = vmatpush2.bf16.msra.mxu0 %v969
  %1411 = vmatprep.subr.bf16.mxu0 0
  %1412 = vmatpush2.bf16.msra.mxu0 %v968
  %1413 = vmatprep.subr.bf16.mxu0 0
  %1414 = vmatpush2.bf16.msra.mxu0 %v967
  %1415 = vmatprep.mubr.bf16.mxu0 %v318
  %1416 = vmatmul.mubr.bf16.gmra.mxu0 %v317
  %v1417 = vpop.f32.mrf.mxu0
  %v1418 = vadd.f32 %v1378, %v1417
  %v1419 = vpop.f32.mrf.mxu0
  %v1420 = vpop.f32.mrf.mxu0
  %v1421 = vpop.f32.mrf.mxu0
  %1422 = vdwg.mxu0
  %v1423 = vpack.c.bf16 %v1418, %v1418
  %1424 = vst [vmem:[%s2] sm:$0xf] %v1423
  %v1425 = vrot.slane %v1418, 4
  %v1426 = vadd.f32 %v1418, %v1425
  %v1427 = vrot.slane %v1426, 2
  %v1428 = vadd.f32 %v1426, %v1427
  %v1429 = vrot.slane %v1428, 1
  %v1430 = vadd.f32 %v1428, %v1429
  %1431 = vst [vmem:[%s3] sm:$0x1] %v1430
  %v1432 = vmul.f32 %v1418, %v1418
  %v1433 = vrot.slane %v1432, 4
  %v1434 = vadd.f32 %v1432, %v1433
  %v1435 = vrot.slane %v1434, 2
  %v1436 = vadd.f32 %v1434, %v1435
  %v1437 = vrot.slane %v1436, 1
  %v1438 = vadd.f32 %v1436, %v1437
  %1439 = vst [vmem:[%s4] sm:$0x1] %v1438
  // Predicated region
  $region10: #{discriminator1_forward.6} parent=0 // pred_check
    _
  $region11: #{discriminator1_forward.6} parent=0 // pred_check_branch
    %1441 = sbr.rel (0) target = $region13
  $region12: #{discriminator1_forward.6} parent=0 // pred_region
    _
  $region13: #{discriminator1_forward.6} parent=0 // pred_fallthru
    _
  // Predicated region
  $region14: #{discriminator1_forward.6} parent=0 // pred_check
    _
  $region15: #{discriminator1_forward.6} parent=0 // pred_check_branch
    %1443 = sbr.rel (0) target = $region17
  $region16: #{discriminator1_forward.6} parent=0 // pred_region
    _
  $region17: #{discriminator1_forward.6} parent=0 // pred_fallthru
    _
  // Predicated region
  $region18: #{discriminator1_forward.6} parent=0 // pred_check
    _
  $region19: #{discriminator1_forward.6} parent=0 // pred_check_branch
    %1445 = sbr.rel (0) target = $region21
  $region20: #{discriminator1_forward.6} parent=0 // pred_region
    _
  $region21: #{discriminator1_forward.6} parent=0 // pred_fallthru
    _
  // Predicated region
  $region22: #{discriminator1_forward.6} parent=0 // pred_check
    _
  $region23: #{discriminator1_forward.6} parent=0 // pred_check_branch
    %1447 = sbr.rel (0) target = $region25
  $region24: #{discriminator1_forward.6} parent=0 // pred_region
    _
  $region25: #{discriminator1_forward.6} parent=0 // pred_fallthru
    _
  // Predicated region
  $region26: #{discriminator1_forward.6} parent=0 // pred_check
    _
  $region27: #{discriminator1_forward.6} parent=0 // pred_check_branch
    %1449 = sbr.rel (0) target = $region29
  $region28: #{discriminator1_forward.6} parent=0 // pred_region
    _
  $region29: #{discriminator1_forward.6} parent=0 // pred_fallthru
    _
  // Predicated region
  $region30: #{discriminator1_forward.6} parent=0 // pred_check
    _
  $region31: #{discriminator1_forward.6} parent=0 // pred_check_branch
    %1451 = sbr.rel (0) target = $region33
  $region32: #{discriminator1_forward.6} parent=0 // pred_region
    _
  $region33: #{discriminator1_forward.6} parent=0 // pred_fallthru
    _

// kernel: discriminator1_forward.7
$region0: #{discriminator1_forward.7}
  #allocation0 [shape = 'u32[]', space=smem, size = 0x4, offset = 0x4, fixed_abs, tag = 'smem constant byte address 0x4 - core index']
  #allocation1 [shape = 'u32[144,128]{1,0:T(1,128)}', space=vmem, size = 0x12000, scoped, tag = 'internal scratch']
  %s0 = inlined_call_operand.vmem [shape: bf16[8,2048], index: 0, kind: input, shape index: {}]
  %s1 = inlined_call_operand.vmem [shape: bf16[2048,128], index: 1, kind: input, shape index: {}]
  %s2 = inlined_call_operand.vmem [shape: f32[8,128], index: 2, kind: output, shape index: {}]
  %s3 = sld [smem:[#allocation0]]
  $region18: #{discriminator1_forward.7} parent=0
    _
  %s5 = ssub.s32 1, %s3
  %s6 = scalar_select 0, %s5, %s3
  // Predicated region
  $region2: #{discriminator1_forward.7} parent=0 // pred_check
    _
  $region3: #{discriminator1_forward.7} parent=0 // pred_check_branch
    %8 = sbr.rel (0) target = $region5
  $region4: #{discriminator1_forward.7} parent=0 // pred_region
    _
  $region5: #{discriminator1_forward.7} parent=0 // pred_fallthru
    _
  // Predicated region
  $region6: #{discriminator1_forward.7} parent=0 // pred_check
    _
  $region7: #{discriminator1_forward.7} parent=0 // pred_check_branch
    %10 = sbr.rel (0) target = $region9
  $region8: #{discriminator1_forward.7} parent=0 // pred_region
    _
  $region9: #{discriminator1_forward.7} parent=0 // pred_fallthru
    _
  %v12 = vld [vmem:[%s0] sm:$0xff]
  %v13 = vld [vmem:[%s0 + $0x8] sm:$0xff]
  %v14 = vld [vmem:[%s0 + $0x10] sm:$0xff]
  %v15 = vld [vmem:[%s0 + $0x18] sm:$0xff]
  %v16 = vld [vmem:[%s0 + $0x20] sm:$0xff]
  %v17 = vld [vmem:[%s0 + $0x28] sm:$0xff]
  %v18 = vld [vmem:[%s0 + $0x30] sm:$0xff]
  %v19 = vld [vmem:[%s0 + $0x38] sm:$0xff]
  %v20 = vld [vmem:[%s1] sm:$0xf]
  %v21 = vld [vmem:[%s1 + $0x4] sm:$0xf]
  %v22 = vld [vmem:[%s1 + $0x8] sm:$0xf]
  %v23 = vld [vmem:[%s1 + $0xc] sm:$0xf]
  %v24 = vld [vmem:[%s1 + $0x10] sm:$0xf]
  %v25 = vld [vmem:[%s1 + $0x14] sm:$0xf]
  %v26 = vld [vmem:[%s1 + $0x18] sm:$0xf]
  %v27 = vld [vmem:[%s1 + $0x1c] sm:$0xf]
  %v28 = vld [vmem:[%s1 + $0x20] sm:$0xf]
  %v29 = vld [vmem:[%s1 + $0x24] sm:$0xf]
  %v30 = vld [vmem:[%s1 + $0x28] sm:$0xf]
  %v31 = vld [vmem:[%s1 + $0x2c] sm:$0xf]
  %v32 = vld [vmem:[%s1 + $0x30] sm:$0xf]
  %v33 = vld [vmem:[%s1 + $0x34] sm:$0xf]
  %v34 = vld [vmem:[%s1 + $0x38] sm:$0xf]
  %v35 = vld [vmem:[%s1 + $0x3c] sm:$0xf]
  %v36 = vld [vmem:[%s1 + $0x40] sm:$0xf]
  %v37 = vld [vmem:[%s1 + $0x44] sm:$0xf]
  %v38 = vld [vmem:[%s1 + $0x48] sm:$0xf]
  %v39 = vld [vmem:[%s1 + $0x4c] sm:$0xf]
  %v40 = vld [vmem:[%s1 + $0x50] sm:$0xf]
  %v41 = vld [vmem:[%s1 + $0x54] sm:$0xf]
  %v42 = vld [vmem:[%s1 + $0x58] sm:$0xf]
  %v43 = vld [vmem:[%s1 + $0x5c] sm:$0xf]
  %v44 = vld [vmem:[%s1 + $0x60] sm:$0xf]
  %v45 = vld [vmem:[%s1 + $0x64] sm:$0xf]
  %v46 = vld [vmem:[%s1 + $0x68] sm:$0xf]
  %v47 = vld [vmem:[%s1 + $0x6c] sm:$0xf]
  %v48 = vld [vmem:[%s1 + $0x70] sm:$0xf]
  %v49 = vld [vmem:[%s1 + $0x74] sm:$0xf]
  %v50 = vld [vmem:[%s1 + $0x78] sm:$0xf]
  %v51 = vld [vmem:[%s1 + $0x7c] sm:$0xf]
  %v52 = vld [vmem:[%s1 + $0x80] sm:$0xf]
  %v53 = vld [vmem:[%s1 + $0x84] sm:$0xf]
  %v54 = vld [vmem:[%s1 + $0x88] sm:$0xf]
  %v55 = vld [vmem:[%s1 + $0x8c] sm:$0xf]
  %v56 = vld [vmem:[%s1 + $0x90] sm:$0xf]
  %v57 = vld [vmem:[%s1 + $0x94] sm:$0xf]
  %v58 = vld [vmem:[%s1 + $0x98] sm:$0xf]
  %v59 = vld [vmem:[%s1 + $0x9c] sm:$0xf]
  %v60 = vld [vmem:[%s1 + $0xa0] sm:$0xf]
  %v61 = vld [vmem:[%s1 + $0xa4] sm:$0xf]
  %v62 = vld [vmem:[%s1 + $0xa8] sm:$0xf]
  %v63 = vld [vmem:[%s1 + $0xac] sm:$0xf]
  %v64 = vld [vmem:[%s1 + $0xb0] sm:$0xf]
  %v65 = vld [vmem:[%s1 + $0xb4] sm:$0xf]
  %v66 = vld [vmem:[%s1 + $0xb8] sm:$0xf]
  %v67 = vld [vmem:[%s1 + $0xbc] sm:$0xf]
  %v68 = vld [vmem:[%s1 + $0xc0] sm:$0xf]
  %v69 = vld [vmem:[%s1 + $0xc4] sm:$0xf]
  %v70 = vld [vmem:[%s1 + $0xc8] sm:$0xf]
  %v71 = vld [vmem:[%s1 + $0xcc] sm:$0xf]
  %v72 = vld [vmem:[%s1 + $0xd0] sm:$0xf]
  %v73 = vld [vmem:[%s1 + $0xd4] sm:$0xf]
  %v74 = vld [vmem:[%s1 + $0xd8] sm:$0xf]
  %v75 = vld [vmem:[%s1 + $0xdc] sm:$0xf]
  %v76 = vld [vmem:[%s1 + $0xe0] sm:$0xf]
  %v77 = vld [vmem:[%s1 + $0xe4] sm:$0xf]
  %v78 = vld [vmem:[%s1 + $0xe8] sm:$0xf]
  %v79 = vld [vmem:[%s1 + $0xec] sm:$0xf]
  %v80 = vld [vmem:[%s1 + $0xf0] sm:$0xf]
  %v81 = vld [vmem:[%s1 + $0xf4] sm:$0xf]
  %v82 = vld [vmem:[%s1 + $0xf8] sm:$0xf]
  %v83 = vld [vmem:[%s1 + $0xfc] sm:$0xf]
  %v84 = vld [vmem:[%s1 + $0x100] sm:$0xf]
  %v85 = vld [vmem:[%s1 + $0x104] sm:$0xf]
  %v86 = vld [vmem:[%s1 + $0x108] sm:$0xf]
  %v87 = vld [vmem:[%s1 + $0x10c] sm:$0xf]
  %v88 = vld [vmem:[%s1 + $0x110] sm:$0xf]
  %v89 = vld [vmem:[%s1 + $0x114] sm:$0xf]
  %v90 = vld [vmem:[%s1 + $0x118] sm:$0xf]
  %v91 = vld [vmem:[%s1 + $0x11c] sm:$0xf]
  %v92 = vld [vmem:[%s1 + $0x120] sm:$0xf]
  %v93 = vld [vmem:[%s1 + $0x124] sm:$0xf]
  %v94 = vld [vmem:[%s1 + $0x128] sm:$0xf]
  %v95 = vld [vmem:[%s1 + $0x12c] sm:$0xf]
  %v96 = vld [vmem:[%s1 + $0x130] sm:$0xf]
  %v97 = vld [vmem:[%s1 + $0x134] sm:$0xf]
  %v98 = vld [vmem:[%s1 + $0x138] sm:$0xf]
  %v99 = vld [vmem:[%s1 + $0x13c] sm:$0xf]
  %v100 = vld [vmem:[%s1 + $0x140] sm:$0xf]
  %v101 = vld [vmem:[%s1 + $0x144] sm:$0xf]
  %v102 = vld [vmem:[%s1 + $0x148] sm:$0xf]
  %v103 = vld [vmem:[%s1 + $0x14c] sm:$0xf]
  %v104 = vld [vmem:[%s1 + $0x150] sm:$0xf]
  %v105 = vld [vmem:[%s1 + $0x154] sm:$0xf]
  %v106 = vld [vmem:[%s1 + $0x158] sm:$0xf]
  %v107 = vld [vmem:[%s1 + $0x15c] sm:$0xf]
  %v108 = vld [vmem:[%s1 + $0x160] sm:$0xf]
  %v109 = vld [vmem:[%s1 + $0x164] sm:$0xf]
  %v110 = vld [vmem:[%s1 + $0x168] sm:$0xf]
  %v111 = vld [vmem:[%s1 + $0x16c] sm:$0xf]
  %v112 = vld [vmem:[%s1 + $0x170] sm:$0xf]
  %v113 = vld [vmem:[%s1 + $0x174] sm:$0xf]
  %v114 = vld [vmem:[%s1 + $0x178] sm:$0xf]
  %v115 = vld [vmem:[%s1 + $0x17c] sm:$0xf]
  %v116 = vld [vmem:[%s1 + $0x180] sm:$0xf]
  %v117 = vld [vmem:[%s1 + $0x184] sm:$0xf]
  %v118 = vld [vmem:[%s1 + $0x188] sm:$0xf]
  %v119 = vld [vmem:[%s1 + $0x18c] sm:$0xf]
  %v120 = vld [vmem:[%s1 + $0x190] sm:$0xf]
  %v121 = vld [vmem:[%s1 + $0x194] sm:$0xf]
  %v122 = vld [vmem:[%s1 + $0x198] sm:$0xf]
  %v123 = vld [vmem:[%s1 + $0x19c] sm:$0xf]
  %v124 = vld [vmem:[%s1 + $0x1a0] sm:$0xf]
  %v125 = vld [vmem:[%s1 + $0x1a4] sm:$0xf]
  %v126 = vld [vmem:[%s1 + $0x1a8] sm:$0xf]
  %v127 = vld [vmem:[%s1 + $0x1ac] sm:$0xf]
  %v128 = vld [vmem:[%s1 + $0x1b0] sm:$0xf]
  %v129 = vld [vmem:[%s1 + $0x1b4] sm:$0xf]
  %v130 = vld [vmem:[%s1 + $0x1b8] sm:$0xf]
  %v131 = vld [vmem:[%s1 + $0x1bc] sm:$0xf]
  %v132 = vld [vmem:[%s1 + $0x1c0] sm:$0xf]
  %v133 = vld [vmem:[%s1 + $0x1c4] sm:$0xf]
  %v134 = vld [vmem:[%s1 + $0x1c8] sm:$0xf]
  %v135 = vld [vmem:[%s1 + $0x1cc] sm:$0xf]
  %v136 = vld [vmem:[%s1 + $0x1d0] sm:$0xf]
  %v137 = vld [vmem:[%s1 + $0x1d4] sm:$0xf]
  %v138 = vld [vmem:[%s1 + $0x1d8] sm:$0xf]
  %v139 = vld [vmem:[%s1 + $0x1dc] sm:$0xf]
  %v140 = vld [vmem:[%s1 + $0x1e0] sm:$0xf]
  %v141 = vld [vmem:[%s1 + $0x1e4] sm:$0xf]
  %v142 = vld [vmem:[%s1 + $0x1e8] sm:$0xf]
  %v143 = vld [vmem:[%s1 + $0x1ec] sm:$0xf]
  %v144 = vld [vmem:[%s1 + $0x1f0] sm:$0xf]
  %v145 = vld [vmem:[%s1 + $0x1f4] sm:$0xf]
  %v146 = vld [vmem:[%s1 + $0x1f8] sm:$0xf]
  %v147 = vld [vmem:[%s1 + $0x1fc] sm:$0xf]
  %v148 = vld [vmem:[%s1 + $0x200] sm:$0xf]
  %v149 = vld [vmem:[%s1 + $0x204] sm:$0xf]
  %v150 = vld [vmem:[%s1 + $0x208] sm:$0xf]
  %v151 = vld [vmem:[%s1 + $0x20c] sm:$0xf]
  %v152 = vld [vmem:[%s1 + $0x210] sm:$0xf]
  %v153 = vld [vmem:[%s1 + $0x214] sm:$0xf]
  %v154 = vld [vmem:[%s1 + $0x218] sm:$0xf]
  %v155 = vld [vmem:[%s1 + $0x21c] sm:$0xf]
  %v156 = vld [vmem:[%s1 + $0x220] sm:$0xf]
  %v157 = vld [vmem:[%s1 + $0x224] sm:$0xf]
  %v158 = vld [vmem:[%s1 + $0x228] sm:$0xf]
  %v159 = vld [vmem:[%s1 + $0x22c] sm:$0xf]
  %v160 = vld [vmem:[%s1 + $0x230] sm:$0xf]
  %v161 = vld [vmem:[%s1 + $0x234] sm:$0xf]
  %v162 = vld [vmem:[%s1 + $0x238] sm:$0xf]
  %v163 = vld [vmem:[%s1 + $0x23c] sm:$0xf]
  %v164 = vld [vmem:[%s1 + $0x240] sm:$0xf]
  %v165 = vld [vmem:[%s1 + $0x244] sm:$0xf]
  %v166 = vld [vmem:[%s1 + $0x248] sm:$0xf]
  %v167 = vld [vmem:[%s1 + $0x24c] sm:$0xf]
  %v168 = vld [vmem:[%s1 + $0x250] sm:$0xf]
  %v169 = vld [vmem:[%s1 + $0x254] sm:$0xf]
  %v170 = vld [vmem:[%s1 + $0x258] sm:$0xf]
  %v171 = vld [vmem:[%s1 + $0x25c] sm:$0xf]
  %v172 = vld [vmem:[%s1 + $0x260] sm:$0xf]
  %v173 = vld [vmem:[%s1 + $0x264] sm:$0xf]
  %v174 = vld [vmem:[%s1 + $0x268] sm:$0xf]
  %v175 = vld [vmem:[%s1 + $0x26c] sm:$0xf]
  %v176 = vld [vmem:[%s1 + $0x270] sm:$0xf]
  %v177 = vld [vmem:[%s1 + $0x274] sm:$0xf]
  %v178 = vld [vmem:[%s1 + $0x278] sm:$0xf]
  %v179 = vld [vmem:[%s1 + $0x27c] sm:$0xf]
  %v180 = vld [vmem:[%s1 + $0x280] sm:$0xf]
  %v181 = vld [vmem:[%s1 + $0x284] sm:$0xf]
  %v182 = vld [vmem:[%s1 + $0x288] sm:$0xf]
  %v183 = vld [vmem:[%s1 + $0x28c] sm:$0xf]
  %v184 = vld [vmem:[%s1 + $0x290] sm:$0xf]
  %v185 = vld [vmem:[%s1 + $0x294] sm:$0xf]
  %v186 = vld [vmem:[%s1 + $0x298] sm:$0xf]
  %v187 = vld [vmem:[%s1 + $0x29c] sm:$0xf]
  %v188 = vld [vmem:[%s1 + $0x2a0] sm:$0xf]
  %v189 = vld [vmem:[%s1 + $0x2a4] sm:$0xf]
  %v190 = vld [vmem:[%s1 + $0x2a8] sm:$0xf]
  %v191 = vld [vmem:[%s1 + $0x2ac] sm:$0xf]
  %v192 = vld [vmem:[%s1 + $0x2b0] sm:$0xf]
  %v193 = vld [vmem:[%s1 + $0x2b4] sm:$0xf]
  %v194 = vld [vmem:[%s1 + $0x2b8] sm:$0xf]
  %v195 = vld [vmem:[%s1 + $0x2bc] sm:$0xf]
  %v196 = vld [vmem:[%s1 + $0x2c0] sm:$0xf]
  %v197 = vld [vmem:[%s1 + $0x2c4] sm:$0xf]
  %v198 = vld [vmem:[%s1 + $0x2c8] sm:$0xf]
  %v199 = vld [vmem:[%s1 + $0x2cc] sm:$0xf]
  %v200 = vld [vmem:[%s1 + $0x2d0] sm:$0xf]
  %v201 = vld [vmem:[%s1 + $0x2d4] sm:$0xf]
  %v202 = vld [vmem:[%s1 + $0x2d8] sm:$0xf]
  %v203 = vld [vmem:[%s1 + $0x2dc] sm:$0xf]
  %v204 = vld [vmem:[%s1 + $0x2e0] sm:$0xf]
  %v205 = vld [vmem:[%s1 + $0x2e4] sm:$0xf]
  %v206 = vld [vmem:[%s1 + $0x2e8] sm:$0xf]
  %v207 = vld [vmem:[%s1 + $0x2ec] sm:$0xf]
  %v208 = vld [vmem:[%s1 + $0x2f0] sm:$0xf]
  %v209 = vld [vmem:[%s1 + $0x2f4] sm:$0xf]
  %v210 = vld [vmem:[%s1 + $0x2f8] sm:$0xf]
  %v211 = vld [vmem:[%s1 + $0x2fc] sm:$0xf]
  %v212 = vld [vmem:[%s1 + $0x300] sm:$0xf]
  %v213 = vld [vmem:[%s1 + $0x304] sm:$0xf]
  %v214 = vld [vmem:[%s1 + $0x308] sm:$0xf]
  %v215 = vld [vmem:[%s1 + $0x30c] sm:$0xf]
  %v216 = vld [vmem:[%s1 + $0x310] sm:$0xf]
  %v217 = vld [vmem:[%s1 + $0x314] sm:$0xf]
  %v218 = vld [vmem:[%s1 + $0x318] sm:$0xf]
  %v219 = vld [vmem:[%s1 + $0x31c] sm:$0xf]
  %v220 = vld [vmem:[%s1 + $0x320] sm:$0xf]
  %v221 = vld [vmem:[%s1 + $0x324] sm:$0xf]
  %v222 = vld [vmem:[%s1 + $0x328] sm:$0xf]
  %v223 = vld [vmem:[%s1 + $0x32c] sm:$0xf]
  %v224 = vld [vmem:[%s1 + $0x330] sm:$0xf]
  %v225 = vld [vmem:[%s1 + $0x334] sm:$0xf]
  %v226 = vld [vmem:[%s1 + $0x338] sm:$0xf]
  %v227 = vld [vmem:[%s1 + $0x33c] sm:$0xf]
  %v228 = vld [vmem:[%s1 + $0x340] sm:$0xf]
  %v229 = vld [vmem:[%s1 + $0x344] sm:$0xf]
  %v230 = vld [vmem:[%s1 + $0x348] sm:$0xf]
  %v231 = vld [vmem:[%s1 + $0x34c] sm:$0xf]
  %v232 = vld [vmem:[%s1 + $0x350] sm:$0xf]
  %v233 = vld [vmem:[%s1 + $0x354] sm:$0xf]
  %v234 = vld [vmem:[%s1 + $0x358] sm:$0xf]
  %v235 = vld [vmem:[%s1 + $0x35c] sm:$0xf]
  %v236 = vld [vmem:[%s1 + $0x360] sm:$0xf]
  %v237 = vld [vmem:[%s1 + $0x364] sm:$0xf]
  %v238 = vld [vmem:[%s1 + $0x368] sm:$0xf]
  %v239 = vld [vmem:[%s1 + $0x36c] sm:$0xf]
  %v240 = vld [vmem:[%s1 + $0x370] sm:$0xf]
  %v241 = vld [vmem:[%s1 + $0x374] sm:$0xf]
  %v242 = vld [vmem:[%s1 + $0x378] sm:$0xf]
  %v243 = vld [vmem:[%s1 + $0x37c] sm:$0xf]
  %v244 = vld [vmem:[%s1 + $0x380] sm:$0xf]
  %v245 = vld [vmem:[%s1 + $0x384] sm:$0xf]
  %v246 = vld [vmem:[%s1 + $0x388] sm:$0xf]
  %v247 = vld [vmem:[%s1 + $0x38c] sm:$0xf]
  %v248 = vld [vmem:[%s1 + $0x390] sm:$0xf]
  %v249 = vld [vmem:[%s1 + $0x394] sm:$0xf]
  %v250 = vld [vmem:[%s1 + $0x398] sm:$0xf]
  %v251 = vld [vmem:[%s1 + $0x39c] sm:$0xf]
  %v252 = vld [vmem:[%s1 + $0x3a0] sm:$0xf]
  %v253 = vld [vmem:[%s1 + $0x3a4] sm:$0xf]
  %v254 = vld [vmem:[%s1 + $0x3a8] sm:$0xf]
  %v255 = vld [vmem:[%s1 + $0x3ac] sm:$0xf]
  %v256 = vld [vmem:[%s1 + $0x3b0] sm:$0xf]
  %v257 = vld [vmem:[%s1 + $0x3b4] sm:$0xf]
  %v258 = vld [vmem:[%s1 + $0x3b8] sm:$0xf]
  %v259 = vld [vmem:[%s1 + $0x3bc] sm:$0xf]
  %v260 = vld [vmem:[%s1 + $0x3c0] sm:$0xf]
  %v261 = vld [vmem:[%s1 + $0x3c4] sm:$0xf]
  %v262 = vld [vmem:[%s1 + $0x3c8] sm:$0xf]
  %v263 = vld [vmem:[%s1 + $0x3cc] sm:$0xf]
  %v264 = vld [vmem:[%s1 + $0x3d0] sm:$0xf]
  %v265 = vld [vmem:[%s1 + $0x3d4] sm:$0xf]
  %v266 = vld [vmem:[%s1 + $0x3d8] sm:$0xf]
  %v267 = vld [vmem:[%s1 + $0x3dc] sm:$0xf]
  %v268 = vld [vmem:[%s1 + $0x3e0] sm:$0xf]
  %v269 = vld [vmem:[%s1 + $0x3e4] sm:$0xf]
  %v270 = vld [vmem:[%s1 + $0x3e8] sm:$0xf]
  %v271 = vld [vmem:[%s1 + $0x3ec] sm:$0xf]
  %v272 = vld [vmem:[%s1 + $0x3f0] sm:$0xf]
  %v273 = vld [vmem:[%s1 + $0x3f4] sm:$0xf]
  %v274 = vld [vmem:[%s1 + $0x3f8] sm:$0xf]
  %v275 = vld [vmem:[%s1 + $0x3fc] sm:$0xf]
  %v284 = vunpack.c.l.b16 %v12
  %v285 = vunpack.c.h.b16 %v12
  %v286 = vunpack.c.l.b16 %v13
  %v287 = vunpack.c.h.b16 %v13
  %v288 = vunpack.c.l.b16 %v14
  %v289 = vunpack.c.h.b16 %v14
  %v290 = vunpack.c.l.b16 %v15
  %v291 = vunpack.c.h.b16 %v15
  %v292 = vunpack.c.l.b16 %v16
  %v293 = vunpack.c.h.b16 %v16
  %v294 = vunpack.c.l.b16 %v17
  %v295 = vunpack.c.h.b16 %v17
  %v296 = vunpack.c.l.b16 %v18
  %v297 = vunpack.c.h.b16 %v18
  %v298 = vunpack.c.l.b16 %v19
  %v299 = vunpack.c.h.b16 %v19
  %v300 = vpack.c.b16 %v284, %v284
  %v301 = vpack.c.b16 %v285, %v285
  %v302 = vpack.c.b16 %v286, %v286
  %v303 = vpack.c.b16 %v287, %v287
  %v304 = vpack.c.b16 %v288, %v288
  %v305 = vpack.c.b16 %v289, %v289
  %v306 = vpack.c.b16 %v290, %v290
  %v307 = vpack.c.b16 %v291, %v291
  %v308 = vpack.c.b16 %v292, %v292
  %v309 = vpack.c.b16 %v293, %v293
  %v310 = vpack.c.b16 %v294, %v294
  %v311 = vpack.c.b16 %v295, %v295
  %v312 = vpack.c.b16 %v296, %v296
  %v313 = vpack.c.b16 %v297, %v297
  %v314 = vpack.c.b16 %v298, %v298
  %v315 = vpack.c.b16 %v299, %v299
  %v588 = vunpack.c.l.b16 %v20
  %v589 = vunpack.c.l.b16 %v21
  %v590 = vunpack.c.l.b16 %v22
  %v591 = vunpack.c.l.b16 %v23
  %v592 = vunpack.c.l.b16 %v24
  %v593 = vunpack.c.l.b16 %v25
  %v594 = vunpack.c.l.b16 %v26
  %v595 = vunpack.c.l.b16 %v27
  %v596 = vunpack.c.l.b16 %v28
  %v597 = vunpack.c.l.b16 %v29
  %v598 = vunpack.c.l.b16 %v30
  %v599 = vunpack.c.l.b16 %v31
  %v600 = vunpack.c.l.b16 %v32
  %v601 = vunpack.c.l.b16 %v33
  %v602 = vunpack.c.l.b16 %v34
  %v603 = vunpack.c.l.b16 %v35
  %v604 = vunpack.c.l.b16 %v36
  %v605 = vunpack.c.l.b16 %v37
  %v606 = vunpack.c.l.b16 %v38
  %v607 = vunpack.c.l.b16 %v39
  %v608 = vunpack.c.l.b16 %v40
  %v609 = vunpack.c.l.b16 %v41
  %v610 = vunpack.c.l.b16 %v42
  %v611 = vunpack.c.l.b16 %v43
  %v612 = vunpack.c.l.b16 %v44
  %v613 = vunpack.c.l.b16 %v45
  %v614 = vunpack.c.l.b16 %v46
  %v615 = vunpack.c.l.b16 %v47
  %v616 = vunpack.c.l.b16 %v48
  %v617 = vunpack.c.l.b16 %v49
  %v618 = vunpack.c.l.b16 %v50
  %v619 = vunpack.c.l.b16 %v51
  %v620 = vunpack.c.l.b16 %v52
  %v621 = vunpack.c.l.b16 %v53
  %v622 = vunpack.c.l.b16 %v54
  %v623 = vunpack.c.l.b16 %v55
  %v624 = vunpack.c.l.b16 %v56
  %v625 = vunpack.c.l.b16 %v57
  %v626 = vunpack.c.l.b16 %v58
  %v627 = vunpack.c.l.b16 %v59
  %v628 = vunpack.c.l.b16 %v60
  %v629 = vunpack.c.l.b16 %v61
  %v630 = vunpack.c.l.b16 %v62
  %v631 = vunpack.c.l.b16 %v63
  %v632 = vunpack.c.l.b16 %v64
  %v633 = vunpack.c.l.b16 %v65
  %v634 = vunpack.c.l.b16 %v66
  %v635 = vunpack.c.l.b16 %v67
  %v636 = vunpack.c.l.b16 %v68
  %v637 = vunpack.c.l.b16 %v69
  %v638 = vunpack.c.l.b16 %v70
  %v639 = vunpack.c.l.b16 %v71
  %v640 = vunpack.c.l.b16 %v72
  %v641 = vunpack.c.l.b16 %v73
  %v642 = vunpack.c.l.b16 %v74
  %v643 = vunpack.c.l.b16 %v75
  %v644 = vunpack.c.l.b16 %v76
  %v645 = vunpack.c.l.b16 %v77
  %v646 = vunpack.c.l.b16 %v78
  %v647 = vunpack.c.l.b16 %v79
  %v648 = vunpack.c.l.b16 %v80
  %v649 = vunpack.c.l.b16 %v81
  %v650 = vunpack.c.l.b16 %v82
  %v651 = vunpack.c.l.b16 %v83
  %v652 = vunpack.c.l.b16 %v84
  %v653 = vunpack.c.l.b16 %v85
  %v654 = vunpack.c.l.b16 %v86
  %v655 = vunpack.c.l.b16 %v87
  %v656 = vunpack.c.l.b16 %v88
  %v657 = vunpack.c.l.b16 %v89
  %v658 = vunpack.c.l.b16 %v90
  %v659 = vunpack.c.l.b16 %v91
  %v660 = vunpack.c.l.b16 %v92
  %v661 = vunpack.c.l.b16 %v93
  %v662 = vunpack.c.l.b16 %v94
  %v663 = vunpack.c.l.b16 %v95
  %v664 = vunpack.c.l.b16 %v96
  %v665 = vunpack.c.l.b16 %v97
  %v666 = vunpack.c.l.b16 %v98
  %v667 = vunpack.c.l.b16 %v99
  %v668 = vunpack.c.l.b16 %v100
  %v669 = vunpack.c.l.b16 %v101
  %v670 = vunpack.c.l.b16 %v102
  %v671 = vunpack.c.l.b16 %v103
  %v672 = vunpack.c.l.b16 %v104
  %v673 = vunpack.c.l.b16 %v105
  %v674 = vunpack.c.l.b16 %v106
  %v675 = vunpack.c.l.b16 %v107
  %v676 = vunpack.c.l.b16 %v108
  %v677 = vunpack.c.l.b16 %v109
  %v678 = vunpack.c.l.b16 %v110
  %v679 = vunpack.c.l.b16 %v111
  %v680 = vunpack.c.l.b16 %v112
  %v681 = vunpack.c.l.b16 %v113
  %v682 = vunpack.c.l.b16 %v114
  %v683 = vunpack.c.l.b16 %v115
  %v684 = vunpack.c.l.b16 %v116
  %v685 = vunpack.c.l.b16 %v117
  %v686 = vunpack.c.l.b16 %v118
  %v687 = vunpack.c.l.b16 %v119
  %v688 = vunpack.c.l.b16 %v120
  %v689 = vunpack.c.l.b16 %v121
  %v690 = vunpack.c.l.b16 %v122
  %v691 = vunpack.c.l.b16 %v123
  %v692 = vunpack.c.l.b16 %v124
  %v693 = vunpack.c.l.b16 %v125
  %v694 = vunpack.c.l.b16 %v126
  %v695 = vunpack.c.l.b16 %v127
  %v696 = vunpack.c.l.b16 %v128
  %v697 = vunpack.c.l.b16 %v129
  %v698 = vunpack.c.l.b16 %v130
  %v699 = vunpack.c.l.b16 %v131
  %v700 = vunpack.c.l.b16 %v132
  %v701 = vunpack.c.l.b16 %v133
  %v702 = vunpack.c.l.b16 %v134
  %v703 = vunpack.c.l.b16 %v135
  %v704 = vunpack.c.l.b16 %v136
  %v705 = vunpack.c.l.b16 %v137
  %v706 = vunpack.c.l.b16 %v138
  %v707 = vunpack.c.l.b16 %v139
  %v708 = vunpack.c.l.b16 %v140
  %v709 = vunpack.c.l.b16 %v141
  %v710 = vunpack.c.l.b16 %v142
  %v711 = vunpack.c.l.b16 %v143
  %v712 = vunpack.c.l.b16 %v144
  %v713 = vunpack.c.l.b16 %v145
  %v714 = vunpack.c.l.b16 %v146
  %v715 = vunpack.c.l.b16 %v147
  %v716 = vunpack.c.l.b16 %v148
  %v717 = vunpack.c.l.b16 %v149
  %v718 = vunpack.c.l.b16 %v150
  %v719 = vunpack.c.l.b16 %v151
  %v720 = vunpack.c.l.b16 %v152
  %v721 = vunpack.c.l.b16 %v153
  %v722 = vunpack.c.l.b16 %v154
  %v723 = vunpack.c.l.b16 %v155
  %v724 = vunpack.c.l.b16 %v156
  %v725 = vunpack.c.l.b16 %v157
  %v726 = vunpack.c.l.b16 %v158
  %v727 = vunpack.c.l.b16 %v159
  %v728 = vunpack.c.l.b16 %v160
  %v729 = vunpack.c.l.b16 %v161
  %v730 = vunpack.c.l.b16 %v162
  %v731 = vunpack.c.l.b16 %v163
  %v732 = vunpack.c.l.b16 %v164
  %v733 = vunpack.c.l.b16 %v165
  %v734 = vunpack.c.l.b16 %v166
  %v735 = vunpack.c.l.b16 %v167
  %v736 = vunpack.c.l.b16 %v168
  %v737 = vunpack.c.l.b16 %v169
  %v738 = vunpack.c.l.b16 %v170
  %v739 = vunpack.c.l.b16 %v171
  %v740 = vunpack.c.l.b16 %v172
  %v741 = vunpack.c.l.b16 %v173
  %v742 = vunpack.c.l.b16 %v174
  %v743 = vunpack.c.l.b16 %v175
  %v744 = vunpack.c.l.b16 %v176
  %v745 = vunpack.c.l.b16 %v177
  %v746 = vunpack.c.l.b16 %v178
  %v747 = vunpack.c.l.b16 %v179
  %v748 = vunpack.c.l.b16 %v180
  %v749 = vunpack.c.l.b16 %v181
  %v750 = vunpack.c.l.b16 %v182
  %v751 = vunpack.c.l.b16 %v183
  %v752 = vunpack.c.l.b16 %v184
  %v753 = vunpack.c.l.b16 %v185
  %v754 = vunpack.c.l.b16 %v186
  %v755 = vunpack.c.l.b16 %v187
  %v756 = vunpack.c.l.b16 %v188
  %v757 = vunpack.c.l.b16 %v189
  %v758 = vunpack.c.l.b16 %v190
  %v759 = vunpack.c.l.b16 %v191
  %v760 = vunpack.c.l.b16 %v192
  %v761 = vunpack.c.l.b16 %v193
  %v762 = vunpack.c.l.b16 %v194
  %v763 = vunpack.c.l.b16 %v195
  %v764 = vunpack.c.l.b16 %v196
  %v765 = vunpack.c.l.b16 %v197
  %v766 = vunpack.c.l.b16 %v198
  %v767 = vunpack.c.l.b16 %v199
  %v768 = vunpack.c.l.b16 %v200
  %v769 = vunpack.c.l.b16 %v201
  %v770 = vunpack.c.l.b16 %v202
  %v771 = vunpack.c.l.b16 %v203
  %v772 = vunpack.c.l.b16 %v204
  %v773 = vunpack.c.l.b16 %v205
  %v774 = vunpack.c.l.b16 %v206
  %v775 = vunpack.c.l.b16 %v207
  %v776 = vunpack.c.l.b16 %v208
  %v777 = vunpack.c.l.b16 %v209
  %v778 = vunpack.c.l.b16 %v210
  %v779 = vunpack.c.l.b16 %v211
  %v780 = vunpack.c.l.b16 %v212
  %v781 = vunpack.c.l.b16 %v213
  %v782 = vunpack.c.l.b16 %v214
  %v783 = vunpack.c.l.b16 %v215
  %v784 = vunpack.c.l.b16 %v216
  %v785 = vunpack.c.l.b16 %v217
  %v786 = vunpack.c.l.b16 %v218
  %v787 = vunpack.c.l.b16 %v219
  %v788 = vunpack.c.l.b16 %v220
  %v789 = vunpack.c.l.b16 %v221
  %v790 = vunpack.c.l.b16 %v222
  %v791 = vunpack.c.l.b16 %v223
  %v792 = vunpack.c.l.b16 %v224
  %v793 = vunpack.c.l.b16 %v225
  %v794 = vunpack.c.l.b16 %v226
  %v795 = vunpack.c.l.b16 %v227
  %v796 = vunpack.c.l.b16 %v228
  %v797 = vunpack.c.l.b16 %v229
  %v798 = vunpack.c.l.b16 %v230
  %v799 = vunpack.c.l.b16 %v231
  %v800 = vunpack.c.l.b16 %v232
  %v801 = vunpack.c.l.b16 %v233
  %v802 = vunpack.c.l.b16 %v234
  %v803 = vunpack.c.l.b16 %v235
  %v804 = vunpack.c.l.b16 %v236
  %v805 = vunpack.c.l.b16 %v237
  %v806 = vunpack.c.l.b16 %v238
  %v807 = vunpack.c.l.b16 %v239
  %v808 = vunpack.c.l.b16 %v240
  %v809 = vunpack.c.l.b16 %v241
  %v810 = vunpack.c.l.b16 %v242
  %v811 = vunpack.c.l.b16 %v243
  %v812 = vunpack.c.l.b16 %v244
  %v813 = vunpack.c.l.b16 %v245
  %v814 = vunpack.c.l.b16 %v246
  %v815 = vunpack.c.l.b16 %v247
  %v816 = vunpack.c.l.b16 %v248
  %v817 = vunpack.c.l.b16 %v249
  %v818 = vunpack.c.l.b16 %v250
  %v819 = vunpack.c.l.b16 %v251
  %v820 = vunpack.c.l.b16 %v252
  %v821 = vunpack.c.l.b16 %v253
  %v822 = vunpack.c.l.b16 %v254
  %v823 = vunpack.c.l.b16 %v255
  %v824 = vunpack.c.l.b16 %v256
  %v825 = vunpack.c.l.b16 %v257
  %v826 = vunpack.c.l.b16 %v258
  %v827 = vunpack.c.l.b16 %v259
  %v828 = vunpack.c.l.b16 %v260
  %v829 = vunpack.c.l.b16 %v261
  %v830 = vunpack.c.l.b16 %v262
  %v831 = vunpack.c.l.b16 %v263
  %v832 = vunpack.c.l.b16 %v264
  %v833 = vunpack.c.l.b16 %v265
  %v834 = vunpack.c.l.b16 %v266
  %v835 = vunpack.c.l.b16 %v267
  %v836 = vunpack.c.l.b16 %v268
  %v837 = vunpack.c.l.b16 %v269
  %v838 = vunpack.c.l.b16 %v270
  %v839 = vunpack.c.l.b16 %v271
  %v840 = vunpack.c.l.b16 %v272
  %v841 = vunpack.c.l.b16 %v273
  %v842 = vunpack.c.l.b16 %v274
  %v843 = vunpack.c.l.b16 %v275
  %v844 = vpack.c.b16 %v589, %v588
  %v845 = vpack.c.b16 %v591, %v590
  %v846 = vpack.c.b16 %v593, %v592
  %v847 = vpack.c.b16 %v595, %v594
  %v848 = vpack.c.b16 %v597, %v596
  %v849 = vpack.c.b16 %v599, %v598
  %v850 = vpack.c.b16 %v601, %v600
  %v851 = vpack.c.b16 %v603, %v602
  %v852 = vpack.c.b16 %v605, %v604
  %v853 = vpack.c.b16 %v607, %v606
  %v854 = vpack.c.b16 %v609, %v608
  %v855 = vpack.c.b16 %v611, %v610
  %v856 = vpack.c.b16 %v613, %v612
  %v857 = vpack.c.b16 %v615, %v614
  %v858 = vpack.c.b16 %v617, %v616
  %v859 = vpack.c.b16 %v619, %v618
  %v860 = vpack.c.b16 %v621, %v620
  %v861 = vpack.c.b16 %v623, %v622
  %v862 = vpack.c.b16 %v625, %v624
  %v863 = vpack.c.b16 %v627, %v626
  %v864 = vpack.c.b16 %v629, %v628
  %v865 = vpack.c.b16 %v631, %v630
  %v866 = vpack.c.b16 %v633, %v632
  %v867 = vpack.c.b16 %v635, %v634
  %v868 = vpack.c.b16 %v637, %v636
  %v869 = vpack.c.b16 %v639, %v638
  %v870 = vpack.c.b16 %v641, %v640
  %v871 = vpack.c.b16 %v643, %v642
  %v872 = vpack.c.b16 %v645, %v644
  %v873 = vpack.c.b16 %v647, %v646
  %v874 = vpack.c.b16 %v649, %v648
  %v875 = vpack.c.b16 %v651, %v650
  %v876 = vpack.c.b16 %v653, %v652
  %v877 = vpack.c.b16 %v655, %v654
  %v878 = vpack.c.b16 %v657, %v656
  %v879 = vpack.c.b16 %v659, %v658
  %v880 = vpack.c.b16 %v661, %v660
  %v881 = vpack.c.b16 %v663, %v662
  %v882 = vpack.c.b16 %v665, %v664
  %v883 = vpack.c.b16 %v667, %v666
  %v884 = vpack.c.b16 %v669, %v668
  %v885 = vpack.c.b16 %v671, %v670
  %v886 = vpack.c.b16 %v673, %v672
  %v887 = vpack.c.b16 %v675, %v674
  %v888 = vpack.c.b16 %v677, %v676
  %v889 = vpack.c.b16 %v679, %v678
  %v890 = vpack.c.b16 %v681, %v680
  %v891 = vpack.c.b16 %v683, %v682
  %v892 = vpack.c.b16 %v685, %v684
  %v893 = vpack.c.b16 %v687, %v686
  %v894 = vpack.c.b16 %v689, %v688
  %v895 = vpack.c.b16 %v691, %v690
  %v896 = vpack.c.b16 %v693, %v692
  %v897 = vpack.c.b16 %v695, %v694
  %v898 = vpack.c.b16 %v697, %v696
  %v899 = vpack.c.b16 %v699, %v698
  %v900 = vpack.c.b16 %v701, %v700
  %v901 = vpack.c.b16 %v703, %v702
  %v902 = vpack.c.b16 %v705, %v704
  %v903 = vpack.c.b16 %v707, %v706
  %v904 = vpack.c.b16 %v709, %v708
  %v905 = vpack.c.b16 %v711, %v710
  %v906 = vpack.c.b16 %v713, %v712
  %v907 = vpack.c.b16 %v715, %v714
  %v908 = vpack.c.b16 %v717, %v716
  %v909 = vpack.c.b16 %v719, %v718
  %v910 = vpack.c.b16 %v721, %v720
  %v911 = vpack.c.b16 %v723, %v722
  %v912 = vpack.c.b16 %v725, %v724
  %v913 = vpack.c.b16 %v727, %v726
  %v914 = vpack.c.b16 %v729, %v728
  %v915 = vpack.c.b16 %v731, %v730
  %v916 = vpack.c.b16 %v733, %v732
  %v917 = vpack.c.b16 %v735, %v734
  %v918 = vpack.c.b16 %v737, %v736
  %v919 = vpack.c.b16 %v739, %v738
  %v920 = vpack.c.b16 %v741, %v740
  %v921 = vpack.c.b16 %v743, %v742
  %v922 = vpack.c.b16 %v745, %v744
  %v923 = vpack.c.b16 %v747, %v746
  %v924 = vpack.c.b16 %v749, %v748
  %v925 = vpack.c.b16 %v751, %v750
  %v926 = vpack.c.b16 %v753, %v752
  %v927 = vpack.c.b16 %v755, %v754
  %v928 = vpack.c.b16 %v757, %v756
  %v929 = vpack.c.b16 %v759, %v758
  %v930 = vpack.c.b16 %v761, %v760
  %v931 = vpack.c.b16 %v763, %v762
  %v932 = vpack.c.b16 %v765, %v764
  %v933 = vpack.c.b16 %v767, %v766
  %v934 = vpack.c.b16 %v769, %v768
  %v935 = vpack.c.b16 %v771, %v770
  %v936 = vpack.c.b16 %v773, %v772
  %v937 = vpack.c.b16 %v775, %v774
  %v938 = vpack.c.b16 %v777, %v776
  %v939 = vpack.c.b16 %v779, %v778
  %v940 = vpack.c.b16 %v781, %v780
  %v941 = vpack.c.b16 %v783, %v782
  %v942 = vpack.c.b16 %v785, %v784
  %v943 = vpack.c.b16 %v787, %v786
  %v944 = vpack.c.b16 %v789, %v788
  %v945 = vpack.c.b16 %v791, %v790
  %v946 = vpack.c.b16 %v793, %v792
  %v947 = vpack.c.b16 %v795, %v794
  %v948 = vpack.c.b16 %v797, %v796
  %v949 = vpack.c.b16 %v799, %v798
  %v950 = vpack.c.b16 %v801, %v800
  %v951 = vpack.c.b16 %v803, %v802
  %v952 = vpack.c.b16 %v805, %v804
  %v953 = vpack.c.b16 %v807, %v806
  %v954 = vpack.c.b16 %v809, %v808
  %v955 = vpack.c.b16 %v811, %v810
  %v956 = vpack.c.b16 %v813, %v812
  %v957 = vpack.c.b16 %v815, %v814
  %v958 = vpack.c.b16 %v817, %v816
  %v959 = vpack.c.b16 %v819, %v818
  %v960 = vpack.c.b16 %v821, %v820
  %v961 = vpack.c.b16 %v823, %v822
  %v962 = vpack.c.b16 %v825, %v824
  %v963 = vpack.c.b16 %v827, %v826
  %v964 = vpack.c.b16 %v829, %v828
  %v965 = vpack.c.b16 %v831, %v830
  %v966 = vpack.c.b16 %v833, %v832
  %v967 = vpack.c.b16 %v835, %v834
  %v968 = vpack.c.b16 %v837, %v836
  %v969 = vpack.c.b16 %v839, %v838
  %v970 = vpack.c.b16 %v841, %v840
  %v971 = vpack.c.b16 %v843, %v842
  %1100 = vmatprep.subr.bf16.mxu0 0
  %1101 = vmatpush1.bf16.msra.mxu0 %v851
  %1102 = vmatprep.subr.bf16.mxu0 0
  %1103 = vmatpush1.bf16.msra.mxu0 %v850
  %1104 = vmatprep.subr.bf16.mxu0 0
  %1105 = vmatpush1.bf16.msra.mxu0 %v849
  %1106 = vmatprep.subr.bf16.mxu0 0
  %1107 = vmatpush1.bf16.msra.mxu0 %v848
  %1108 = vmatprep.subr.bf16.mxu0 0
  %1109 = vmatpush1.bf16.msra.mxu0 %v847
  %1110 = vmatprep.subr.bf16.mxu0 0
  %1111 = vmatpush1.bf16.msra.mxu0 %v846
  %1112 = vmatprep.subr.bf16.mxu0 0
  %1113 = vmatpush1.bf16.msra.mxu0 %v845
  %1114 = vmatprep.subr.bf16.mxu0 0
  %1115 = vmatpush1.bf16.msra.mxu0 %v844
  %1116 = vmatprep.subr.bf16.mxu0 0
  %1117 = vmatpush2.bf16.msra.mxu0 %v859
  %1118 = vmatprep.subr.bf16.mxu0 0
  %1119 = vmatpush2.bf16.msra.mxu0 %v858
  %1120 = vmatprep.subr.bf16.mxu0 0
  %1121 = vmatpush2.bf16.msra.mxu0 %v857
  %1122 = vmatprep.subr.bf16.mxu0 0
  %1123 = vmatpush2.bf16.msra.mxu0 %v856
  %1124 = vmatprep.subr.bf16.mxu0 0
  %1125 = vmatpush2.bf16.msra.mxu0 %v855
  %1126 = vmatprep.subr.bf16.mxu0 0
  %1127 = vmatpush2.bf16.msra.mxu0 %v854
  %1128 = vmatprep.subr.bf16.mxu0 0
  %1129 = vmatpush2.bf16.msra.mxu0 %v853
  %1130 = vmatprep.subr.bf16.mxu0 0
  %1131 = vmatpush2.bf16.msra.mxu0 %v852
  %1132 = vmatprep.mubr.bf16.mxu0 %v301
  %1133 = vmatmul.mubr.bf16.gmra.mxu0 %v300
  %v1134 = vpop.f32.mrf.mxu0
  %v1135 = vadd.f32 0.0, %v1134
  %v1136 = vpop.f32.mrf.mxu0
  %v1137 = vpop.f32.mrf.mxu0
  %v1138 = vpop.f32.mrf.mxu0
  %1139 = vdwg.mxu0
  %1140 = vmatprep.subr.bf16.mxu0 0
  %1141 = vmatpush1.bf16.msra.mxu0 %v867
  %1142 = vmatprep.subr.bf16.mxu0 0
  %1143 = vmatpush1.bf16.msra.mxu0 %v866
  %1144 = vmatprep.subr.bf16.mxu0 0
  %1145 = vmatpush1.bf16.msra.mxu0 %v865
  %1146 = vmatprep.subr.bf16.mxu0 0
  %1147 = vmatpush1.bf16.msra.mxu0 %v864
  %1148 = vmatprep.subr.bf16.mxu0 0
  %1149 = vmatpush1.bf16.msra.mxu0 %v863
  %1150 = vmatprep.subr.bf16.mxu0 0
  %1151 = vmatpush1.bf16.msra.mxu0 %v862
  %1152 = vmatprep.subr.bf16.mxu0 0
  %1153 = vmatpush1.bf16.msra.mxu0 %v861
  %1154 = vmatprep.subr.bf16.mxu0 0
  %1155 = vmatpush1.bf16.msra.mxu0 %v860
  %1156 = vmatprep.subr.bf16.mxu0 0
  %1157 = vmatpush2.bf16.msra.mxu0 %v875
  %1158 = vmatprep.subr.bf16.mxu0 0
  %1159 = vmatpush2.bf16.msra.mxu0 %v874
  %1160 = vmatprep.subr.bf16.mxu0 0
  %1161 = vmatpush2.bf16.msra.mxu0 %v873
  %1162 = vmatprep.subr.bf16.mxu0 0
  %1163 = vmatpush2.bf16.msra.mxu0 %v872
  %1164 = vmatprep.subr.bf16.mxu0 0
  %1165 = vmatpush2.bf16.msra.mxu0 %v871
  %1166 = vmatprep.subr.bf16.mxu0 0
  %1167 = vmatpush2.bf16.msra.mxu0 %v870
  %1168 = vmatprep.subr.bf16.mxu0 0
  %1169 = vmatpush2.bf16.msra.mxu0 %v869
  %1170 = vmatprep.subr.bf16.mxu0 0
  %1171 = vmatpush2.bf16.msra.mxu0 %v868
  %1172 = vmatprep.mubr.bf16.mxu0 %v303
  %1173 = vmatmul.mubr.bf16.gmra.mxu0 %v302
  %v1174 = vpop.f32.mrf.mxu0
  %v1175 = vadd.f32 %v1135, %v1174
  %v1176 = vpop.f32.mrf.mxu0
  %v1177 = vpop.f32.mrf.mxu0
  %v1178 = vpop.f32.mrf.mxu0
  %1179 = vdwg.mxu0
  %1180 = vmatprep.subr.bf16.mxu0 0
  %1181 = vmatpush1.bf16.msra.mxu0 %v883
  %1182 = vmatprep.subr.bf16.mxu0 0
  %1183 = vmatpush1.bf16.msra.mxu0 %v882
  %1184 = vmatprep.subr.bf16.mxu0 0
  %1185 = vmatpush1.bf16.msra.mxu0 %v881
  %1186 = vmatprep.subr.bf16.mxu0 0
  %1187 = vmatpush1.bf16.msra.mxu0 %v880
  %1188 = vmatprep.subr.bf16.mxu0 0
  %1189 = vmatpush1.bf16.msra.mxu0 %v879
  %1190 = vmatprep.subr.bf16.mxu0 0
  %1191 = vmatpush1.bf16.msra.mxu0 %v878
  %1192 = vmatprep.subr.bf16.mxu0 0
  %1193 = vmatpush1.bf16.msra.mxu0 %v877
  %1194 = vmatprep.subr.bf16.mxu0 0
  %1195 = vmatpush1.bf16.msra.mxu0 %v876
  %1196 = vmatprep.subr.bf16.mxu0 0
  %1197 = vmatpush2.bf16.msra.mxu0 %v891
  %1198 = vmatprep.subr.bf16.mxu0 0
  %1199 = vmatpush2.bf16.msra.mxu0 %v890
  %1200 = vmatprep.subr.bf16.mxu0 0
  %1201 = vmatpush2.bf16.msra.mxu0 %v889
  %1202 = vmatprep.subr.bf16.mxu0 0
  %1203 = vmatpush2.bf16.msra.mxu0 %v888
  %1204 = vmatprep.subr.bf16.mxu0 0
  %1205 = vmatpush2.bf16.msra.mxu0 %v887
  %1206 = vmatprep.subr.bf16.mxu0 0
  %1207 = vmatpush2.bf16.msra.mxu0 %v886
  %1208 = vmatprep.subr.bf16.mxu0 0
  %1209 = vmatpush2.bf16.msra.mxu0 %v885
  %1210 = vmatprep.subr.bf16.mxu0 0
  %1211 = vmatpush2.bf16.msra.mxu0 %v884
  %1212 = vmatprep.mubr.bf16.mxu0 %v305
  %1213 = vmatmul.mubr.bf16.gmra.mxu0 %v304
  %v1214 = vpop.f32.mrf.mxu0
  %v1215 = vadd.f32 %v1175, %v1214
  %v1216 = vpop.f32.mrf.mxu0
  %v1217 = vpop.f32.mrf.mxu0
  %v1218 = vpop.f32.mrf.mxu0
  %1219 = vdwg.mxu0
  %1220 = vmatprep.subr.bf16.mxu0 0
  %1221 = vmatpush1.bf16.msra.mxu0 %v899
  %1222 = vmatprep.subr.bf16.mxu0 0
  %1223 = vmatpush1.bf16.msra.mxu0 %v898
  %1224 = vmatprep.subr.bf16.mxu0 0
  %1225 = vmatpush1.bf16.msra.mxu0 %v897
  %1226 = vmatprep.subr.bf16.mxu0 0
  %1227 = vmatpush1.bf16.msra.mxu0 %v896
  %1228 = vmatprep.subr.bf16.mxu0 0
  %1229 = vmatpush1.bf16.msra.mxu0 %v895
  %1230 = vmatprep.subr.bf16.mxu0 0
  %1231 = vmatpush1.bf16.msra.mxu0 %v894
  %1232 = vmatprep.subr.bf16.mxu0 0
  %1233 = vmatpush1.bf16.msra.mxu0 %v893
  %1234 = vmatprep.subr.bf16.mxu0 0
  %1235 = vmatpush1.bf16.msra.mxu0 %v892
  %1236 = vmatprep.subr.bf16.mxu0 0
  %1237 = vmatpush2.bf16.msra.mxu0 %v907
  %1238 = vmatprep.subr.bf16.mxu0 0
  %1239 = vmatpush2.bf16.msra.mxu0 %v906
  %1240 = vmatprep.subr.bf16.mxu0 0
  %1241 = vmatpush2.bf16.msra.mxu0 %v905
  %1242 = vmatprep.subr.bf16.mxu0 0
  %1243 = vmatpush2.bf16.msra.mxu0 %v904
  %1244 = vmatprep.subr.bf16.mxu0 0
  %1245 = vmatpush2.bf16.msra.mxu0 %v903
  %1246 = vmatprep.subr.bf16.mxu0 0
  %1247 = vmatpush2.bf16.msra.mxu0 %v902
  %1248 = vmatprep.subr.bf16.mxu0 0
  %1249 = vmatpush2.bf16.msra.mxu0 %v901
  %1250 = vmatprep.subr.bf16.mxu0 0
  %1251 = vmatpush2.bf16.msra.mxu0 %v900
  %1252 = vmatprep.mubr.bf16.mxu0 %v307
  %1253 = vmatmul.mubr.bf16.gmra.mxu0 %v306
  %v1254 = vpop.f32.mrf.mxu0
  %v1255 = vadd.f32 %v1215, %v1254
  %v1256 = vpop.f32.mrf.mxu0
  %v1257 = vpop.f32.mrf.mxu0
  %v1258 = vpop.f32.mrf.mxu0
  %1259 = vdwg.mxu0
  %1260 = vmatprep.subr.bf16.mxu0 0
  %1261 = vmatpush1.bf16.msra.mxu0 %v915
  %1262 = vmatprep.subr.bf16.mxu0 0
  %1263 = vmatpush1.bf16.msra.mxu0 %v914
  %1264 = vmatprep.subr.bf16.mxu0 0
  %1265 = vmatpush1.bf16.msra.mxu0 %v913
  %1266 = vmatprep.subr.bf16.mxu0 0
  %1267 = vmatpush1.bf16.msra.mxu0 %v912
  %1268 = vmatprep.subr.bf16.mxu0 0
  %1269 = vmatpush1.bf16.msra.mxu0 %v911
  %1270 = vmatprep.subr.bf16.mxu0 0
  %1271 = vmatpush1.bf16.msra.mxu0 %v910
  %1272 = vmatprep.subr.bf16.mxu0 0
  %1273 = vmatpush1.bf16.msra.mxu0 %v909
  %1274 = vmatprep.subr.bf16.mxu0 0
  %1275 = vmatpush1.bf16.msra.mxu0 %v908
  %1276 = vmatprep.subr.bf16.mxu0 0
  %1277 = vmatpush2.bf16.msra.mxu0 %v923
  %1278 = vmatprep.subr.bf16.mxu0 0
  %1279 = vmatpush2.bf16.msra.mxu0 %v922
  %1280 = vmatprep.subr.bf16.mxu0 0
  %1281 = vmatpush2.bf16.msra.mxu0 %v921
  %1282 = vmatprep.subr.bf16.mxu0 0
  %1283 = vmatpush2.bf16.msra.mxu0 %v920
  %1284 = vmatprep.subr.bf16.mxu0 0
  %1285 = vmatpush2.bf16.msra.mxu0 %v919
  %1286 = vmatprep.subr.bf16.mxu0 0
  %1287 = vmatpush2.bf16.msra.mxu0 %v918
  %1288 = vmatprep.subr.bf16.mxu0 0
  %1289 = vmatpush2.bf16.msra.mxu0 %v917
  %1290 = vmatprep.subr.bf16.mxu0 0
  %1291 = vmatpush2.bf16.msra.mxu0 %v916
  %1292 = vmatprep.mubr.bf16.mxu0 %v309
  %1293 = vmatmul.mubr.bf16.gmra.mxu0 %v308
  %v1294 = vpop.f32.mrf.mxu0
  %v1295 = vadd.f32 %v1255, %v1294
  %v1296 = vpop.f32.mrf.mxu0
  %v1297 = vpop.f32.mrf.mxu0
  %v1298 = vpop.f32.mrf.mxu0
  %1299 = vdwg.mxu0
  %1300 = vmatprep.subr.bf16.mxu0 0
  %1301 = vmatpush1.bf16.msra.mxu0 %v931
  %1302 = vmatprep.subr.bf16.mxu0 0
  %1303 = vmatpush1.bf16.msra.mxu0 %v930
  %1304 = vmatprep.subr.bf16.mxu0 0
  %1305 = vmatpush1.bf16.msra.mxu0 %v929
  %1306 = vmatprep.subr.bf16.mxu0 0
  %1307 = vmatpush1.bf16.msra.mxu0 %v928
  %1308 = vmatprep.subr.bf16.mxu0 0
  %1309 = vmatpush1.bf16.msra.mxu0 %v927
  %1310 = vmatprep.subr.bf16.mxu0 0
  %1311 = vmatpush1.bf16.msra.mxu0 %v926
  %1312 = vmatprep.subr.bf16.mxu0 0
  %1313 = vmatpush1.bf16.msra.mxu0 %v925
  %1314 = vmatprep.subr.bf16.mxu0 0
  %1315 = vmatpush1.bf16.msra.mxu0 %v924
  %1316 = vmatprep.subr.bf16.mxu0 0
  %1317 = vmatpush2.bf16.msra.mxu0 %v939
  %1318 = vmatprep.subr.bf16.mxu0 0
  %1319 = vmatpush2.bf16.msra.mxu0 %v938
  %1320 = vmatprep.subr.bf16.mxu0 0
  %1321 = vmatpush2.bf16.msra.mxu0 %v937
  %1322 = vmatprep.subr.bf16.mxu0 0
  %1323 = vmatpush2.bf16.msra.mxu0 %v936
  %1324 = vmatprep.subr.bf16.mxu0 0
  %1325 = vmatpush2.bf16.msra.mxu0 %v935
  %1326 = vmatprep.subr.bf16.mxu0 0
  %1327 = vmatpush2.bf16.msra.mxu0 %v934
  %1328 = vmatprep.subr.bf16.mxu0 0
  %1329 = vmatpush2.bf16.msra.mxu0 %v933
  %1330 = vmatprep.subr.bf16.mxu0 0
  %1331 = vmatpush2.bf16.msra.mxu0 %v932
  %1332 = vmatprep.mubr.bf16.mxu0 %v311
  %1333 = vmatmul.mubr.bf16.gmra.mxu0 %v310
  %v1334 = vpop.f32.mrf.mxu0
  %v1335 = vadd.f32 %v1295, %v1334
  %v1336 = vpop.f32.mrf.mxu0
  %v1337 = vpop.f32.mrf.mxu0
  %v1338 = vpop.f32.mrf.mxu0
  %1339 = vdwg.mxu0
  %1340 = vmatprep.subr.bf16.mxu0 0
  %1341 = vmatpush1.bf16.msra.mxu0 %v947
  %1342 = vmatprep.subr.bf16.mxu0 0
  %1343 = vmatpush1.bf16.msra.mxu0 %v946
  %1344 = vmatprep.subr.bf16.mxu0 0
  %1345 = vmatpush1.bf16.msra.mxu0 %v945
  %1346 = vmatprep.subr.bf16.mxu0 0
  %1347 = vmatpush1.bf16.msra.mxu0 %v944
  %1348 = vmatprep.subr.bf16.mxu0 0
  %1349 = vmatpush1.bf16.msra.mxu0 %v943
  %1350 = vmatprep.subr.bf16.mxu0 0
  %1351 = vmatpush1.bf16.msra.mxu0 %v942
  %1352 = vmatprep.subr.bf16.mxu0 0
  %1353 = vmatpush1.bf16.msra.mxu0 %v941
  %1354 = vmatprep.subr.bf16.mxu0 0
  %1355 = vmatpush1.bf16.msra.mxu0 %v940
  %1356 = vmatprep.subr.bf16.mxu0 0
  %1357 = vmatpush2.bf16.msra.mxu0 %v955
  %1358 = vmatprep.subr.bf16.mxu0 0
  %1359 = vmatpush2.bf16.msra.mxu0 %v954
  %1360 = vmatprep.subr.bf16.mxu0 0
  %1361 = vmatpush2.bf16.msra.mxu0 %v953
  %1362 = vmatprep.subr.bf16.mxu0 0
  %1363 = vmatpush2.bf16.msra.mxu0 %v952
  %1364 = vmatprep.subr.bf16.mxu0 0
  %1365 = vmatpush2.bf16.msra.mxu0 %v951
  %1366 = vmatprep.subr.bf16.mxu0 0
  %1367 = vmatpush2.bf16.msra.mxu0 %v950
  %1368 = vmatprep.subr.bf16.mxu0 0
  %1369 = vmatpush2.bf16.msra.mxu0 %v949
  %1370 = vmatprep.subr.bf16.mxu0 0
  %1371 = vmatpush2.bf16.msra.mxu0 %v948
  %1372 = vmatprep.mubr.bf16.mxu0 %v313
  %1373 = vmatmul.mubr.bf16.gmra.mxu0 %v312
  %v1374 = vpop.f32.mrf.mxu0
  %v1375 = vadd.f32 %v1335, %v1374
  %v1376 = vpop.f32.mrf.mxu0
  %v1377 = vpop.f32.mrf.mxu0
  %v1378 = vpop.f32.mrf.mxu0
  %1379 = vdwg.mxu0
  %1380 = vmatprep.subr.bf16.mxu0 0
  %1381 = vmatpush1.bf16.msra.mxu0 %v963
  %1382 = vmatprep.subr.bf16.mxu0 0
  %1383 = vmatpush1.bf16.msra.mxu0 %v962
  %1384 = vmatprep.subr.bf16.mxu0 0
  %1385 = vmatpush1.bf16.msra.mxu0 %v961
  %1386 = vmatprep.subr.bf16.mxu0 0
  %1387 = vmatpush1.bf16.msra.mxu0 %v960
  %1388 = vmatprep.subr.bf16.mxu0 0
  %1389 = vmatpush1.bf16.msra.mxu0 %v959
  %1390 = vmatprep.subr.bf16.mxu0 0
  %1391 = vmatpush1.bf16.msra.mxu0 %v958
  %1392 = vmatprep.subr.bf16.mxu0 0
  %1393 = vmatpush1.bf16.msra.mxu0 %v957
  %1394 = vmatprep.subr.bf16.mxu0 0
  %1395 = vmatpush1.bf16.msra.mxu0 %v956
  %1396 = vmatprep.subr.bf16.mxu0 0
  %1397 = vmatpush2.bf16.msra.mxu0 %v971
  %1398 = vmatprep.subr.bf16.mxu0 0
  %1399 = vmatpush2.bf16.msra.mxu0 %v970
  %1400 = vmatprep.subr.bf16.mxu0 0
  %1401 = vmatpush2.bf16.msra.mxu0 %v969
  %1402 = vmatprep.subr.bf16.mxu0 0
  %1403 = vmatpush2.bf16.msra.mxu0 %v968
  %1404 = vmatprep.subr.bf16.mxu0 0
  %1405 = vmatpush2.bf16.msra.mxu0 %v967
  %1406 = vmatprep.subr.bf16.mxu0 0
  %1407 = vmatpush2.bf16.msra.mxu0 %v966
  %1408 = vmatprep.subr.bf16.mxu0 0
  %1409 = vmatpush2.bf16.msra.mxu0 %v965
  %1410 = vmatprep.subr.bf16.mxu0 0
  %1411 = vmatpush2.bf16.msra.mxu0 %v964
  %1412 = vmatprep.mubr.bf16.mxu0 %v315
  %1413 = vmatmul.mubr.bf16.gmra.mxu0 %v314
  %v1414 = vpop.f32.mrf.mxu0
  %v1415 = vadd.f32 %v1375, %v1414
  %v1416 = vpop.f32.mrf.mxu0
  %v1417 = vpop.f32.mrf.mxu0
  %v1418 = vpop.f32.mrf.mxu0
  %1419 = vdwg.mxu0
  %1420 = vst [vmem:[%s2] sm:$0xff] %v1415
  // Predicated region
  $region10: #{discriminator1_forward.7} parent=0 // pred_check
    _
  $region11: #{discriminator1_forward.7} parent=0 // pred_check_branch
    %1422 = sbr.rel (0) target = $region13
  $region12: #{discriminator1_forward.7} parent=0 // pred_region
    _
  $region13: #{discriminator1_forward.7} parent=0 // pred_fallthru
    _
  // Predicated region
  $region14: #{discriminator1_forward.7} parent=0 // pred_check
    _
  $region15: #{discriminator1_forward.7} parent=0 // pred_check_branch
    %1424 = sbr.rel (0) target = $region17
  $region16: #{discriminator1_forward.7} parent=0 // pred_region
    _
  $region17: #{discriminator1_forward.7} parent=0 // pred_fallthru
    _

</llo_original>
